<compile_context>
chip_gen: v5e
topology: v5e:2x2
jax: 0.10.0
libtpu: 0.0.40
codegen_flags: <defaults>
</compile_context>

<pallas_src>
import math
import functools

import jax
import jax.numpy as jnp
from jax.experimental import pallas as pl
from jax.experimental.pallas import tpu as pltpu

EPS = 1e-5
MASK_NEG = -1e30


# -----------------------------------------------------------------------------
# Fused kernel: GCN -> temporal multi-head attention -> post linear + residual
# One grid step processes B samples; channel-major with lane dim = T*V = 128.
# -----------------------------------------------------------------------------
def tagcn_kernel(x_ref, ablk_ref, mask_ref, wg_ref, wqkv_ref, wlin_ref, *rest,
                 num_heads, d_head, has_res_conv):
    if has_res_conv:
        wr_ref, bias_ref, o_ref = rest
    else:
        wr_ref = None
        bias_ref, o_ref = rest

    H, d = num_heads, d_head
    C = H * d
    f32, bf16 = jnp.float32, jnp.bfloat16

    x = x_ref[...]                                   # (B, C_in, TV) f32
    B, C_in, TV = x.shape

    # packed per-channel biases + PReLU slopes (one small VMEM input)
    bg = bias_ref[0:C]                               # (C, 1)   GCN conv+BN bias
    bqkv = bias_ref[C:4 * C]                         # (3C, 1)  qkv conv bias
    bpost = bias_ref[4 * C:5 * C]                    # (C, 1)   lin+BN (+res BN) bias
    a_gcn = bias_ref[5 * C:5 * C + 1]                # (1, 1)   PReLU slope (GCN)
    a_out = bias_ref[5 * C + 8:5 * C + 9]            # (1, 1)   PReLU slope (output)

    # ---- GCN graph mix: samples stacked along sublanes -> one 2D matmul -----
    x_bf = x.astype(bf16)
    g = jnp.dot(x_bf.reshape(B * C_in, TV), ablk_ref[...],
                preferred_element_type=f32).reshape(B, C_in, TV)

    # ---- GCN 1x1 conv (BN folded) + PReLU, batched over the B samples -------
    wg_b = jnp.broadcast_to(wg_ref[...], (B, C, C_in))
    z = jnp.einsum('boc,bct->bot', wg_b, g.astype(bf16),
                   preferred_element_type=f32) + bg[None]          # (B, C, TV)
    gcn = jnp.where(z >= 0, z, a_gcn[None] * z)

    # ---- temporal attention: folded qkv conv (1/sqrt(d) folded into Q rows) --
    wqkv_b = jnp.broadcast_to(wqkv_ref[...], (B, 3 * C, C))
    qkv = jnp.einsum('boc,bct->bot', wqkv_b, gcn.astype(bf16),
                     preferred_element_type=f32) + bqkv[None]      # (B, 3C, TV)

    G2 = B * H
    q = qkv[:, 0:C, :].reshape(G2, d, TV).astype(bf16)             # (B*H, d, TV)
    k = qkv[:, C:2 * C, :].reshape(G2, d, TV).astype(bf16)
    v = qkv[:, 2 * C:3 * C, :].reshape(G2, d, TV).astype(bf16)

    # contract d directly (no swapaxes); the mask is a resident additive const
    logits = jnp.einsum('gdt,gds->gts', q, k,
                        preferred_element_type=f32)                # (B*H, TV, TV)
    logits = logits + mask_ref[...][None]

    m = jnp.max(logits, axis=-1, keepdims=True)
    e = jnp.exp(logits - m)                                        # masked -> 0
    w = e * pl.reciprocal(jnp.sum(e, axis=-1, keepdims=True), approx=True)

    attn = jnp.einsum('gds,gts->gdt', v, w.astype(bf16),
                      preferred_element_type=f32)                  # (B*H, d, TV)
    attn = attn.reshape(B, C, TV)                                  # channel = h*d+i

    # ---- post: folded concat_bn + attn_linear + bn, residual, PReLU ---------
    wlin_b = jnp.broadcast_to(wlin_ref[...], (B, C, C))
    y = jnp.einsum('boc,bct->bot', wlin_b, attn.astype(bf16),
                   preferred_element_type=f32)
    if has_res_conv:
        wr_b = jnp.broadcast_to(wr_ref[...], (B, C, C_in))
        y = y + jnp.einsum('boc,bct->bot', wr_b, x_bf,
                           preferred_element_type=f32)
    else:
        y = y + x                     # identity residual: skip the matmul
    y = y + bpost[None]
    o_ref[...] = jnp.where(y >= 0, y, a_out[None] * y)             # (B, C, TV)


def _pick_samples_per_step(n, cap):
    """Largest divisor of n <= cap, preferring an even grid length (v7x 2 TCs)."""
    divisors = [b for b in range(1, min(n, cap) + 1) if n % b == 0]
    even_grid = [b for b in divisors if (n // b) % 2 == 0]
    return max(even_grid) if even_grid else max(divisors)


# -----------------------------------------------------------------------------
# Wrapper: trace-time weight folding + single pallas_call
# -----------------------------------------------------------------------------
def tagcn_block_forward(x, p, *, num_heads, max_samples_per_step=8):
    N, C_in, T, V = x.shape
    C = p['Wg'].shape[0]
    d_head = C // num_heads
    TV = T * V
    f32, bf16 = jnp.float32, jnp.bfloat16
    has_res_conv = (C_in != C)

    # block-diagonal adjacency: (TV, TV) with A[t] in the t-th diagonal block
    a_blk = (jnp.eye(T, dtype=f32)[:, None, :, None]
             * p['A'][:, :, None, :]).reshape(TV, TV).astype(bf16)

    # additive same-joint attention mask (precomputed resident constant, f32)
    lane = jnp.arange(TV, dtype=jnp.int32)
    same_joint = (lane[:, None] % V) == (lane[None, :] % V)
    attn_mask = jnp.where(same_joint, 0.0, MASK_NEG).astype(f32)

    # --- fold GCN BatchNorm into the GCN conv ---
    gs, gsh = p['gbn_scale'], p['gbn_shift']
    Wg_f = (p['Wg'] * gs[:, None]).astype(bf16)
    bg_f = gs * p['bg'] + gsh

    # --- fold the 1/sqrt(d_head) attention scale into the Q rows of Wqkv ---
    qscale = jnp.concatenate([jnp.full((C,), 1.0 / math.sqrt(d_head), f32),
                              jnp.ones((2 * C,), f32)])
    Wqkv_f = (p['Wqkv'] * qscale[:, None]).astype(bf16)
    bqkv_f = p['bqkv'] * qscale

    # --- fold concat_bn (input side) and bn (output side) into attn_linear ---
    cbs, cbsh = p['cbn_scale'], p['cbn_shift']
    bns, bnb = p['bn_scale'], p['bn_shift']
    Wlin_f = ((bns[:, None] * p['Wlin']) * cbs[None, :]).astype(bf16)
    blin_f = bns * (p['Wlin'] @ cbsh + p['blin']) + bnb

    bpost = blin_f
    weight_args = [Wg_f, Wqkv_f, Wlin_f]
    weight_specs = [pl.BlockSpec((C, C_in), lambda g: (0, 0)),
                    pl.BlockSpec((3 * C, C), lambda g: (0, 0)),
                    pl.BlockSpec((C, C), lambda g: (0, 0))]
    if has_res_conv:
        rs, rsh = p['rbn_scale'], p['rbn_shift']
        Wr_f = (p['Wr'] * rs[:, None]).astype(bf16)
        bpost = bpost + (rs * p['br'] + rsh)
        weight_args.append(Wr_f)
        weight_specs.append(pl.BlockSpec((C, C_in), lambda g: (0, 0)))

    # pack all per-channel biases + the two PReLU slopes into one small input
    pad7 = jnp.zeros((7,), f32)
    bias_alpha = jnp.concatenate([
        bg_f, bqkv_f, bpost,
        jnp.asarray(p['alpha_gcn'], f32).reshape(1), pad7,
        jnp.asarray(p['alpha_out'], f32).reshape(1), pad7,
    ]).reshape(5 * C + 16, 1)

    # B samples per step (overhead amortization); even grid when possible (v7x).
    B = _pick_samples_per_step(N, max_samples_per_step)
    G = N // B

    x_flat = x.reshape(N, C_in, TV)                  # channel-major, no transpose

    out_flat = pl.pallas_call(
        functools.partial(tagcn_kernel, num_heads=num_heads, d_head=d_head,
                          has_res_conv=has_res_conv),
        out_shape=jax.ShapeDtypeStruct((N, C, TV), f32),
        grid=(G,),
        in_specs=[
            pl.BlockSpec((B, C_in, TV), lambda g: (g, 0, 0)),   # x (B samples)
            pl.BlockSpec((TV, TV), lambda g: (0, 0)),           # block-diag A (bf16)
            pl.BlockSpec((TV, TV), lambda g: (0, 0)),           # additive mask (f32)
            *weight_specs,                                      # bf16 folded weights
            pl.BlockSpec((5 * C + 16, 1), lambda g: (0, 0)),    # packed biases+alphas
        ],
        out_specs=pl.BlockSpec((B, C, TV), lambda g: (g, 0, 0)),  # lane-dense TV=128
        compiler_params=pltpu.CompilerParams(
            dimension_semantics=("parallel",),
            vmem_limit_bytes=48 * 1024 * 1024),
    )(x_flat, a_blk, attn_mask, *weight_args, bias_alpha)

    # output is already NCHW channel-major; reshape only, no transpose
    return out_flat.reshape(N, C, T, V)


# -----------------------------------------------------------------------------
# Deterministic parameter init (mirrors the module's __init__ shapes)
# -----------------------------------------------------------------------------
def _bn_affine(C):
    # PyTorch BatchNorm2d defaults in eval: gamma=1, beta=0, mean=0, var=1
    gamma = jnp.ones((C,), jnp.float32)
    beta = jnp.zeros((C,), jnp.float32)
    mean = jnp.zeros((C,), jnp.float32)
    var = jnp.ones((C,), jnp.float32)
    scale = gamma / jnp.sqrt(var + EPS)
    return scale, beta - mean * scale


def init_params(key, C_in, C_out, T, V):
    ks = jax.random.split(key, 5)

    def conv1x1(kk, o, i):
        bound = 1.0 / math.sqrt(i)
        kw, kb = jax.random.split(kk)
        return (jax.random.uniform(kw, (o, i), jnp.float32, -bound, bound),
                jax.random.uniform(kb, (o,), jnp.float32, -bound, bound))

    p = {}
    stdv = 1.0 / math.sqrt(V)
    p['A'] = jax.random.uniform(ks[0], (T, V, V), jnp.float32, -stdv, stdv)
    p['Wg'], p['bg'] = conv1x1(ks[1], C_out, C_in)
    p['gbn_scale'], p['gbn_shift'] = _bn_affine(C_out)
    p['Wqkv'], p['bqkv'] = conv1x1(ks[2], 3 * C_out, C_out)
    p['cbn_scale'], p['cbn_shift'] = _bn_affine(C_out)
    p['Wlin'], p['blin'] = conv1x1(ks[3], C_out, C_out)
    p['bn_scale'], p['bn_shift'] = _bn_affine(C_out)
    if C_in != C_out:
        p['Wr'], p['br'] = conv1x1(ks[4], C_out, C_in)
        p['rbn_scale'], p['rbn_shift'] = _bn_affine(C_out)
    # two independent learnable PReLU slopes (nn.PReLU default init = 0.25)
    p['alpha_gcn'] = jnp.float32(0.25)
    p['alpha_out'] = jnp.float32(0.25)
    return p


# -----------------------------------------------------------------------------
# Pure-JAX reference (mirrors the PyTorch forward, eval mode)
# -----------------------------------------------------------------------------
def reference_forward(x, p, *, num_heads):
    N, C_in, T, V = x.shape
    C = p['Wg'].shape[0]
    d = C // num_heads
    a_g, a_o = p['alpha_gcn'], p['alpha_out']
    bc = lambda v: v[None, :, None, None]

    if C_in != C:
        res = jnp.einsum('oc,nctv->notv', p['Wr'], x) + bc(p['br'])
        res = res * bc(p['rbn_scale']) + bc(p['rbn_shift'])
    else:
        res = x

    g = jnp.einsum('nctv,tvw->nctw', x, p['A'])
    g = jnp.einsum('oc,nctw->notw', p['Wg'], g) + bc(p['bg'])
    g = g * bc(p['gbn_scale']) + bc(p['gbn_shift'])
    g = jnp.where(g >= 0, g, a_g * g)

    xa = jnp.transpose(g, (0, 3, 1, 2)).reshape(N * V, C, T)
    qkv = jnp.einsum('oc,bct->bot', p['Wqkv'], xa) + p['bqkv'][None, :, None]
    q = qkv[:, :C].reshape(N * V, num_heads, d, T) / math.sqrt(d)
    k = qkv[:, C:2 * C].reshape(N * V, num_heads, d, T)
    v = qkv[:, 2 * C:].reshape(N * V, num_heads, d, T)
    logits = jnp.einsum('bhdt,bhds->bhts', q, k)
    w = jax.nn.softmax(logits, axis=-1)
    attn = jnp.einsum('bhts,bhds->bhtd', w, v)                       # (B,H,T,d)
    attn = jnp.transpose(attn, (0, 1, 3, 2)).reshape(N, V, C, T)
    attn = jnp.transpose(attn, (0, 2, 3, 1))                         # (N,C,T,V)
    y = attn * bc(p['cbn_scale']) + bc(p['cbn_shift'])
    y = jnp.einsum('oc,nctv->notv', p['Wlin'], y) + bc(p['blin'])
    y = y * bc(p['bn_scale']) + bc(p['bn_shift'])
    out = y + res
    return jnp.where(out >= 0, out, a_o * out)


if __name__ == "__main__":
    N, C_in, C_out = 2, 4, 32
    T, V = 8, 16          # num_frames, num_joints  (T*V = 128 = one lane tile)
    num_heads = 8

    key = jax.random.PRNGKey(0)
    kx, kp = jax.random.split(key)
    x = jax.random.normal(kx, (N, C_in, T, V), jnp.float32)
    params = init_params(kp, C_in, C_out, T, V)

    fwd = jax.jit(functools.partial(tagcn_block_forward, num_heads=num_heads))
    out = jax.block_until_ready(fwd(x, params))

    ref = reference_forward(x, params, num_heads=num_heads)
    assert out.shape == (N, C_out, T, V)
    assert bool(jnp.all(jnp.isfinite(out)))
    max_err = float(jnp.max(jnp.abs(out - ref)))
    # bf16 MXU operands (f32 accumulation) -> allow ~1-2% tolerance
    assert bool(jnp.allclose(out, ref, rtol=2e-2, atol=2e-2)), max_err
    print("KERNEL_OK")
</pallas_src>

<mosaic_0001>
module attributes {stable_mosaic.version = 11 : i64} {
  func.func @tagcn_kernel(%arg0: i32, %arg1: memref<1x4x128xf32, #tpu.memory_space<vmem>>, %arg2: memref<128x128xbf16, #tpu.memory_space<vmem>>, %arg3: memref<128x128xf32, #tpu.memory_space<vmem>>, %arg4: memref<32x4xbf16, #tpu.memory_space<vmem>>, %arg5: memref<96x32xbf16, #tpu.memory_space<vmem>>, %arg6: memref<32x32xbf16, #tpu.memory_space<vmem>>, %arg7: memref<32x4xbf16, #tpu.memory_space<vmem>>, %arg8: memref<176x1xf32, #tpu.memory_space<vmem>>, %arg9: memref<1x32x128xf32, #tpu.memory_space<vmem>>) attributes {dimension_semantics = [#tpu.dimension_semantics<parallel>], iteration_bounds = array<i64: 2>, scalar_prefetch = 0 : i64, scratch_operands = 0 : i64, tpu.core_type = #tpu.core_type<tc>, window_params = [{transform_indices = @transform_0, window_bounds = array<i64: 1, 4, 128>}, {pipeline_mode = #tpu.pipeline_mode<synchronous>, transform_indices = @transform_1, window_bounds = array<i64: 128, 128>}, {pipeline_mode = #tpu.pipeline_mode<synchronous>, transform_indices = @transform_2, window_bounds = array<i64: 128, 128>}, {pipeline_mode = #tpu.pipeline_mode<synchronous>, transform_indices = @transform_3, window_bounds = array<i64: 32, 4>}, {pipeline_mode = #tpu.pipeline_mode<synchronous>, transform_indices = @transform_4, window_bounds = array<i64: 96, 32>}, {pipeline_mode = #tpu.pipeline_mode<synchronous>, transform_indices = @transform_5, window_bounds = array<i64: 32, 32>}, {pipeline_mode = #tpu.pipeline_mode<synchronous>, transform_indices = @transform_6, window_bounds = array<i64: 32, 4>}, {pipeline_mode = #tpu.pipeline_mode<synchronous>, transform_indices = @transform_7, window_bounds = array<i64: 176, 1>}, {transform_indices = @transform_8, window_bounds = array<i64: 1, 32, 128>}]} {
    %c0 = arith.constant 0 : index
    %c0_0 = arith.constant 0 : index
    %c0_1 = arith.constant 0 : index
    %0 = vector.load %arg1[%c0, %c0_0, %c0_1] : memref<1x4x128xf32, #tpu.memory_space<vmem>>, vector<1x4x128xf32>
    %c0_2 = arith.constant 0 : index
    %c0_3 = arith.constant 0 : index
    %1 = vector.load %arg8[%c0_2, %c0_3] : memref<176x1xf32, #tpu.memory_space<vmem>>, vector<32x1xf32>
    %c32 = arith.constant 32 : index
    %c0_4 = arith.constant 0 : index
    %2 = vector.load %arg8[%c32, %c0_4] : memref<176x1xf32, #tpu.memory_space<vmem>>, vector<96x1xf32>
    %c128 = arith.constant 128 : index
    %c0_5 = arith.constant 0 : index
    %3 = vector.load %arg8[%c128, %c0_5] : memref<176x1xf32, #tpu.memory_space<vmem>>, vector<32x1xf32>
    %c160 = arith.constant 160 : index
    %c0_6 = arith.constant 0 : index
    %4 = vector.load %arg8[%c160, %c0_6] : memref<176x1xf32, #tpu.memory_space<vmem>>, vector<1x1xf32>
    %c168 = arith.constant 168 : index
    %c0_7 = arith.constant 0 : index
    %5 = vector.load %arg8[%c168, %c0_7] : memref<176x1xf32, #tpu.memory_space<vmem>>, vector<1x1xf32>
    %6 = arith.truncf %0 : vector<1x4x128xf32> to vector<1x4x128xbf16>
    %7 = vector.shape_cast %6 : vector<1x4x128xbf16> to vector<4x128xbf16>
    %c0_8 = arith.constant 0 : index
    %c0_9 = arith.constant 0 : index
    %8 = vector.load %arg2[%c0_8, %c0_9] : memref<128x128xbf16, #tpu.memory_space<vmem>>, vector<128x128xbf16>
    %cst = arith.constant dense<0.000000e+00> : vector<4x128xf32>
    %9 = tpu.matmul %7, %8, %cst {dimension_numbers = #tpu.dot_dimension_numbers<[1], [0], [0], [1], [0, 0, 1, 1], [], []>} : vector<4x128xbf16>, vector<128x128xbf16>, vector<4x128xf32> -> vector<4x128xf32>
    %10 = vector.shape_cast %9 : vector<4x128xf32> to vector<1x4x128xf32>
    %c0_10 = arith.constant 0 : index
    %c0_11 = arith.constant 0 : index
    %11 = vector.load %arg4[%c0_10, %c0_11] : memref<32x4xbf16, #tpu.memory_space<vmem>>, vector<32x4xbf16>
    %12 = vector.shape_cast %11 : vector<32x4xbf16> to vector<1x32x4xbf16>
    %13 = arith.truncf %10 : vector<1x4x128xf32> to vector<1x4x128xbf16>
    "tpu.trace_start"() <{level = 10 : i32, message = "boc,bct->bot"}> : () -> ()
    %cst_12 = arith.constant dense<0.000000e+00> : vector<1x32x128xf32>
    %14 = tpu.matmul %12, %13, %cst_12 {dimension_numbers = #tpu.dot_dimension_numbers<[2], [1], [1], [2], [0, 0, 0, 1, 1, 2], [0], [0]>} : vector<1x32x4xbf16>, vector<1x4x128xbf16>, vector<1x32x128xf32> -> vector<1x32x128xf32>
    "tpu.trace_stop"() : () -> ()
    %15 = vector.shape_cast %1 : vector<32x1xf32> to vector<1x32x1xf32>
    %16 = vector.broadcast %15 : vector<1x32x1xf32> to vector<1x32x128xf32>
    %17 = arith.addf %14, %16 : vector<1x32x128xf32>
    %cst_13 = arith.constant 0.000000e+00 : f32
    %18 = vector.broadcast %cst_13 : f32 to vector<1x32x128xf32>
    %19 = arith.cmpf oge, %17, %18 : vector<1x32x128xf32>
    %20 = vector.shape_cast %4 : vector<1x1xf32> to vector<1x1x1xf32>
    %21 = vector.broadcast %20 : vector<1x1x1xf32> to vector<1x32x128xf32>
    %22 = arith.mulf %21, %17 : vector<1x32x128xf32>
    %23 = arith.select %19, %17, %22 : vector<1x32x128xi1>, vector<1x32x128xf32>
    %c0_14 = arith.constant 0 : index
    %c0_15 = arith.constant 0 : index
    %24 = vector.load %arg5[%c0_14, %c0_15] : memref<96x32xbf16, #tpu.memory_space<vmem>>, vector<96x32xbf16>
    %25 = vector.shape_cast %24 : vector<96x32xbf16> to vector<1x96x32xbf16>
    %26 = arith.truncf %23 : vector<1x32x128xf32> to vector<1x32x128xbf16>
    "tpu.trace_start"() <{level = 10 : i32, message = "boc,bct->bot"}> : () -> ()
    %cst_16 = arith.constant dense<0.000000e+00> : vector<1x96x128xf32>
    %27 = tpu.matmul %25, %26, %cst_16 {dimension_numbers = #tpu.dot_dimension_numbers<[2], [1], [1], [2], [0, 0, 0, 1, 1, 2], [0], [0]>} : vector<1x96x32xbf16>, vector<1x32x128xbf16>, vector<1x96x128xf32> -> vector<1x96x128xf32>
    "tpu.trace_stop"() : () -> ()
    %28 = vector.shape_cast %2 : vector<96x1xf32> to vector<1x96x1xf32>
    %29 = vector.broadcast %28 : vector<1x96x1xf32> to vector<1x96x128xf32>
    %30 = arith.addf %27, %29 : vector<1x96x128xf32>
    %31 = vector.extract_strided_slice %30 {offsets = [0, 0, 0], sizes = [1, 32, 128], strides = [1, 1, 1]} : vector<1x96x128xf32> to vector<1x32x128xf32>
    %32 = vector.shape_cast %31 : vector<1x32x128xf32> to vector<8x4x128xf32>
    %33 = arith.truncf %32 : vector<8x4x128xf32> to vector<8x4x128xbf16>
    %34 = vector.extract_strided_slice %30 {offsets = [0, 32, 0], sizes = [1, 32, 128], strides = [1, 1, 1]} : vector<1x96x128xf32> to vector<1x32x128xf32>
    %35 = vector.shape_cast %34 : vector<1x32x128xf32> to vector<8x4x128xf32>
    %36 = arith.truncf %35 : vector<8x4x128xf32> to vector<8x4x128xbf16>
    %37 = vector.extract_strided_slice %30 {offsets = [0, 64, 0], sizes = [1, 32, 128], strides = [1, 1, 1]} : vector<1x96x128xf32> to vector<1x32x128xf32>
    %38 = vector.shape_cast %37 : vector<1x32x128xf32> to vector<8x4x128xf32>
    %39 = arith.truncf %38 : vector<8x4x128xf32> to vector<8x4x128xbf16>
    "tpu.trace_start"() <{level = 10 : i32, message = "gdt,gds->gts"}> : () -> ()
    %cst_17 = arith.constant dense<0.000000e+00> : vector<8x128x128xf32>
    %40 = tpu.matmul %33, %36, %cst_17 {dimension_numbers = #tpu.dot_dimension_numbers<[1], [1], [2], [2], [0, 0, 0, 2, 1, 2], [0], [0]>} : vector<8x4x128xbf16>, vector<8x4x128xbf16>, vector<8x128x128xf32> -> vector<8x128x128xf32>
    "tpu.trace_stop"() : () -> ()
    %c0_18 = arith.constant 0 : index
    %c0_19 = arith.constant 0 : index
    %41 = vector.load %arg3[%c0_18, %c0_19] : memref<128x128xf32, #tpu.memory_space<vmem>>, vector<128x128xf32>
    %42 = vector.shape_cast %41 : vector<128x128xf32> to vector<1x128x128xf32>
    %43 = vector.broadcast %42 : vector<1x128x128xf32> to vector<8x128x128xf32>
    %44 = arith.addf %40, %43 : vector<8x128x128xf32>
    %cst_20 = arith.constant dense<0xFF800000> : vector<8x128xf32>
    %45 = vector.multi_reduction <maximumf>, %44, %cst_20 [2] : vector<8x128x128xf32> to vector<8x128xf32>
    %46 = vector.shape_cast %45 : vector<8x128xf32> to vector<8x128x1xf32>
    %47 = vector.broadcast %46 : vector<8x128x1xf32> to vector<8x128x128xf32>
    %48 = arith.subf %44, %47 : vector<8x128x128xf32>
    %49 = math.exp %48 : vector<8x128x128xf32>
    %cst_21 = arith.constant dense<0.000000e+00> : vector<8x128xf32>
    %50 = vector.multi_reduction <add>, %49, %cst_21 [2] : vector<8x128x128xf32> to vector<8x128xf32>
    %51 = vector.shape_cast %50 : vector<8x128xf32> to vector<8x128x1xf32>
    %52 = tpu.reciprocal %51 {approx = true} : vector<8x128x1xf32> -> vector<8x128x1xf32>
    %53 = vector.broadcast %52 : vector<8x128x1xf32> to vector<8x128x128xf32>
    %54 = arith.mulf %49, %53 : vector<8x128x128xf32>
    %55 = arith.truncf %54 : vector<8x128x128xf32> to vector<8x128x128xbf16>
    "tpu.trace_start"() <{level = 10 : i32, message = "gds,gts->gdt"}> : () -> ()
    %cst_22 = arith.constant dense<0.000000e+00> : vector<8x4x128xf32>
    %56 = tpu.matmul %39, %55, %cst_22 {dimension_numbers = #tpu.dot_dimension_numbers<[2], [2], [1], [1], [0, 0, 0, 1, 1, 1], [0], [0]>} : vector<8x4x128xbf16>, vector<8x128x128xbf16>, vector<8x4x128xf32> -> vector<8x4x128xf32>
    "tpu.trace_stop"() : () -> ()
    %57 = vector.shape_cast %56 : vector<8x4x128xf32> to vector<1x32x128xf32>
    %c0_23 = arith.constant 0 : index
    %c0_24 = arith.constant 0 : index
    %58 = vector.load %arg6[%c0_23, %c0_24] : memref<32x32xbf16, #tpu.memory_space<vmem>>, vector<32x32xbf16>
    %59 = vector.shape_cast %58 : vector<32x32xbf16> to vector<1x32x32xbf16>
    %60 = arith.truncf %57 : vector<1x32x128xf32> to vector<1x32x128xbf16>
    "tpu.trace_start"() <{level = 10 : i32, message = "boc,bct->bot"}> : () -> ()
    %cst_25 = arith.constant dense<0.000000e+00> : vector<1x32x128xf32>
    %61 = tpu.matmul %59, %60, %cst_25 {dimension_numbers = #tpu.dot_dimension_numbers<[2], [1], [1], [2], [0, 0, 0, 1, 1, 2], [0], [0]>} : vector<1x32x32xbf16>, vector<1x32x128xbf16>, vector<1x32x128xf32> -> vector<1x32x128xf32>
    "tpu.trace_stop"() : () -> ()
    %c0_26 = arith.constant 0 : index
    %c0_27 = arith.constant 0 : index
    %62 = vector.load %arg7[%c0_26, %c0_27] : memref<32x4xbf16, #tpu.memory_space<vmem>>, vector<32x4xbf16>
    %63 = vector.shape_cast %62 : vector<32x4xbf16> to vector<1x32x4xbf16>
    "tpu.trace_start"() <{level = 10 : i32, message = "boc,bct->bot"}> : () -> ()
    %cst_28 = arith.constant dense<0.000000e+00> : vector<1x32x128xf32>
    %64 = tpu.matmul %63, %6, %cst_28 {dimension_numbers = #tpu.dot_dimension_numbers<[2], [1], [1], [2], [0, 0, 0, 1, 1, 2], [0], [0]>} : vector<1x32x4xbf16>, vector<1x4x128xbf16>, vector<1x32x128xf32> -> vector<1x32x128xf32>
    "tpu.trace_stop"() : () -> ()
    %65 = arith.addf %61, %64 : vector<1x32x128xf32>
    %66 = vector.shape_cast %3 : vector<32x1xf32> to vector<1x32x1xf32>
    %67 = vector.broadcast %66 : vector<1x32x1xf32> to vector<1x32x128xf32>
    %68 = arith.addf %65, %67 : vector<1x32x128xf32>
    %cst_29 = arith.constant 0.000000e+00 : f32
    %69 = vector.broadcast %cst_29 : f32 to vector<1x32x128xf32>
    %70 = arith.cmpf oge, %68, %69 : vector<1x32x128xf32>
    %71 = vector.shape_cast %5 : vector<1x1xf32> to vector<1x1x1xf32>
    %72 = vector.broadcast %71 : vector<1x1x1xf32> to vector<1x32x128xf32>
    %73 = arith.mulf %72, %68 : vector<1x32x128xf32>
    %74 = arith.select %70, %68, %73 : vector<1x32x128xi1>, vector<1x32x128xf32>
    %c0_30 = arith.constant 0 : index
    %c0_31 = arith.constant 0 : index
    %c0_32 = arith.constant 0 : index
    %75 = vector.load %arg9[%c0_30, %c0_31, %c0_32] : memref<1x32x128xf32, #tpu.memory_space<vmem>>, vector<1x32x128xf32>
    tpu.vector_store %arg9[%c0_30, %c0_31, %c0_32], %74 {strides = array<i32>} : memref<1x32x128xf32, #tpu.memory_space<vmem>>, vector<1x32x128xf32>,
    return
  }
  func.func @transform_0(%arg0: i32) -> (i32, i32, i32) {
    %c0_i32 = arith.constant 0 : i32
    %c0_i32_0 = arith.constant 0 : i32
    %c0_i32_1 = arith.constant 0 : i32
    return %arg0, %c0_i32, %c0_i32_0 : i32, i32, i32
  }
  func.func @transform_1(%arg0: i32) -> (i32, i32) {
    %c0_i32 = arith.constant 0 : i32
    %c0_i32_0 = arith.constant 0 : i32
    %c0_i32_1 = arith.constant 0 : i32
    return %c0_i32, %c0_i32_0 : i32, i32
  }
  func.func @transform_2(%arg0: i32) -> (i32, i32) {
    %c0_i32 = arith.constant 0 : i32
    %c0_i32_0 = arith.constant 0 : i32
    %c0_i32_1 = arith.constant 0 : i32
    return %c0_i32, %c0_i32_0 : i32, i32
  }
  func.func @transform_3(%arg0: i32) -> (i32, i32) {
    %c0_i32 = arith.constant 0 : i32
    %c0_i32_0 = arith.constant 0 : i32
    %c0_i32_1 = arith.constant 0 : i32
    return %c0_i32, %c0_i32_0 : i32, i32
  }
  func.func @transform_4(%arg0: i32) -> (i32, i32) {
    %c0_i32 = arith.constant 0 : i32
    %c0_i32_0 = arith.constant 0 : i32
    %c0_i32_1 = arith.constant 0 : i32
    return %c0_i32, %c0_i32_0 : i32, i32
  }
  func.func @transform_5(%arg0: i32) -> (i32, i32) {
    %c0_i32 = arith.constant 0 : i32
    %c0_i32_0 = arith.constant 0 : i32
    %c0_i32_1 = arith.constant 0 : i32
    return %c0_i32, %c0_i32_0 : i32, i32
  }
  func.func @transform_6(%arg0: i32) -> (i32, i32) {
    %c0_i32 = arith.constant 0 : i32
    %c0_i32_0 = arith.constant 0 : i32
    %c0_i32_1 = arith.constant 0 : i32
    return %c0_i32, %c0_i32_0 : i32, i32
  }
  func.func @transform_7(%arg0: i32) -> (i32, i32) {
    %c0_i32 = arith.constant 0 : i32
    %c0_i32_0 = arith.constant 0 : i32
    %c0_i32_1 = arith.constant 0 : i32
    return %c0_i32, %c0_i32_0 : i32, i32
  }
  func.func @transform_8(%arg0: i32) -> (i32, i32, i32) {
    %c0_i32 = arith.constant 0 : i32
    %c0_i32_0 = arith.constant 0 : i32
    %c0_i32_1 = arith.constant 0 : i32
    return %arg0, %c0_i32, %c0_i32_0 : i32, i32, i32
  }
}

</mosaic_0001>

<llo_original>
// kernel: mul.47
$region0: #{mul.47}
  #allocation0 [shape = 's32[1]{0}', space=sflag, size = 0x4, scoped, tag = 'scoped memory for mul.47']
  %s0 = inlined_call_operand.vmem [shape: f32[96], index: 0, kind: input, shape index: {}]
  %s1 = inlined_call_operand.vmem [shape: f32[96], index: 1, kind: input, shape index: {}]
  %s2 = inlined_call_operand.vmem [shape: f32[96], index: 2, kind: output, shape index: {}]
  %v3 = vld [vmem:[%s0] sm:$0x1]
  %v4 = vld [vmem:[%s1] sm:$0x1]
  %5 = xla_tuple %v3, %v4
  %6 = xla_tuple %5
  %v7 = vmul.f32 %v3, %v4
  %8 = xla_tuple %v7
  %9 = vst [vmem:[%s2] sm:$0x1] %v7

// kernel: tagcn_block_forward.1
$region0: #{tagcn_block_forward.1}
  #allocation0 [shape = 'u32[]', space=smem, size = 0x4, offset = 0x4, fixed_abs, tag = 'smem constant byte address 0x4 - core index']
  #allocation1 [shape = 'u32[72,128]{1,0:T(1,128)}', space=vmem, size = 0x9000, scoped, tag = 'internal scratch']
  %s0 = inlined_call_operand.vmem [shape: f32[2,4,128], index: 0, kind: input, shape index: {}]
  %s1 = inlined_call_operand.vmem [shape: bf16[128,128], index: 1, kind: input, shape index: {}]
  %s2 = inlined_call_operand.vmem [shape: f32[128,128], index: 2, kind: input, shape index: {}]
  %s3 = inlined_call_operand.vmem [shape: bf16[32,4], index: 3, kind: input, shape index: {}]
  %s4 = inlined_call_operand.vmem [shape: bf16[96,32], index: 4, kind: input, shape index: {}]
  %s5 = inlined_call_operand.vmem [shape: bf16[32,32], index: 5, kind: input, shape index: {}]
  %s6 = inlined_call_operand.vmem [shape: bf16[32,4], index: 6, kind: input, shape index: {}]
  %s7 = inlined_call_operand.vmem [shape: f32[176,1], index: 7, kind: input, shape index: {}]
  %s8 = inlined_call_operand.vmem [shape: f32[2,32,128], index: 8, kind: output, shape index: {}]
  %s9 = sld [smem:[#allocation0]]
  $region65: #{tagcn_block_forward.1} parent=0
    _
  %s11 = ssub.s32 1, %s9
  %s12 = scalar_select 0, %s11, %s9
  loop: start=0, step=1, limit=4
  $region2: #{tagcn_block_forward.1} parent=0 // loop_pre_header
    _
  $region3: #{tagcn_block_forward.1} parent=0 // loop_header
    %s14 = sphi 0, %s18
    %p15 = scmp.ge.s32.totalorder %s14, 4
    %s24 = sphi 0, %s26
    %s27 = sphi 0, %s24
    %s28 = sphi 0, %s27
    %s44 = sphi 0, %s28
    %s48 = sphi 0, %s48
    %s50 = sphi 0, %s48
    %s51 = sphi 0, %s50
    %s65 = sphi 0, %s51
    %s69 = sphi 0, %s69
    %s71 = sphi 0, %s69
    %s72 = sphi 0, %s71
    %s86 = sphi 0, %s72
    %s90 = sphi 0, %s90
    %s92 = sphi 0, %s90
    %s93 = sphi 0, %s92
    %s107 = sphi 0, %s93
    %s111 = sphi 0, %s111
    %s113 = sphi 0, %s111
    %s114 = sphi 0, %s113
    %s128 = sphi 0, %s114
    %s132 = sphi 0, %s132
    %s134 = sphi 0, %s132
    %s135 = sphi 0, %s134
    %s149 = sphi 0, %s135
    %s153 = sphi 0, %s153
    %s155 = sphi 0, %s153
    %s156 = sphi 0, %s155
    %s170 = sphi 0, %s156
    %s174 = sphi 0, %s174
    %s176 = sphi 0, %s174
    %s177 = sphi 0, %s176
    %s191 = sphi 0, %s177
    %s197 = sphi 0, %s199
    %s200 = sphi 0, %s197
    %s201 = sphi 0, %s200
    %s217 = sphi 0, %s201
  $region4: #{tagcn_block_forward.1} parent=0 // loop_header_branch
    %17 = sbr.rel (%p15) target = $region8
  $region5: #{tagcn_block_forward.1} parent=0 // loop_body
    %s19 = ssub.s32 %s14, 1
    %s20 = ssub.s32 %s14, 2
    %s21 = sadd.s32 %s14, 1
    %s22 = ssub.s32 %s14, %s21
    %p23 = scmp.eq.s32.totalorder %s22, 0
    %s25 = sadd.s32 %s24, 1
    %s26 = scalar_select %p23, %s24, %s25
    %p29 = pneg %p23
    %p30 = scmp.eq.s32.totalorder %s14, 1
    %p31 = por %p29, %p30
    %p32 = scmp.ne.s32.totalorder %s24, %s27
    %p33 = scmp.eq.s32.totalorder %s14, 0
    %p34 = por %p32, %p33
    %p35 = scmp.ne.s32.totalorder %s24, %s27
    %p36 = scmp.eq.s32.totalorder %s19, 1
    %p37 = por %p35, %p36
    %p38 = scmp.ne.s32.totalorder %s27, %s28
    %p39 = scmp.eq.s32.totalorder %s19, 0
    %p40 = por %p38, %p39
    %p41 = scmp.ne.s32.totalorder %s27, %s28
    %p42 = scmp.eq.s32.totalorder %s20, 1
    %p43 = por %p41, %p42
    %p45 = scmp.ne.s32.totalorder %s28, %s44
    %p46 = scmp.eq.s32.totalorder %s20, 0
    %p47 = por %p45, %p46
    %s49 = sadd.s32 %s48, 1
    %p52 = scmp.eq.s32.totalorder %s14, 1
    %p53 = scmp.ne.s32.totalorder %s48, %s50
    %p54 = scmp.eq.s32.totalorder %s14, 0
    %p55 = por %p53, %p54
    %p56 = scmp.ne.s32.totalorder %s48, %s50
    %p57 = scmp.eq.s32.totalorder %s19, 1
    %p58 = por %p56, %p57
    %p59 = scmp.ne.s32.totalorder %s50, %s51
    %p60 = scmp.eq.s32.totalorder %s19, 0
    %p61 = por %p59, %p60
    %p62 = scmp.ne.s32.totalorder %s50, %s51
    %p63 = scmp.eq.s32.totalorder %s20, 1
    %p64 = por %p62, %p63
    %p66 = scmp.ne.s32.totalorder %s51, %s65
    %p67 = scmp.eq.s32.totalorder %s20, 0
    %p68 = por %p66, %p67
    %s70 = sadd.s32 %s69, 1
    %p73 = scmp.eq.s32.totalorder %s14, 1
    %p74 = scmp.ne.s32.totalorder %s69, %s71
    %p75 = scmp.eq.s32.totalorder %s14, 0
    %p76 = por %p74, %p75
    %p77 = scmp.ne.s32.totalorder %s69, %s71
    %p78 = scmp.eq.s32.totalorder %s19, 1
    %p79 = por %p77, %p78
    %p80 = scmp.ne.s32.totalorder %s71, %s72
    %p81 = scmp.eq.s32.totalorder %s19, 0
    %p82 = por %p80, %p81
    %p83 = scmp.ne.s32.totalorder %s71, %s72
    %p84 = scmp.eq.s32.totalorder %s20, 1
    %p85 = por %p83, %p84
    %p87 = scmp.ne.s32.totalorder %s72, %s86
    %p88 = scmp.eq.s32.totalorder %s20, 0
    %p89 = por %p87, %p88
    %s91 = sadd.s32 %s90, 1
    %p94 = scmp.eq.s32.totalorder %s14, 1
    %p95 = scmp.ne.s32.totalorder %s90, %s92
    %p96 = scmp.eq.s32.totalorder %s14, 0
    %p97 = por %p95, %p96
    %p98 = scmp.ne.s32.totalorder %s90, %s92
    %p99 = scmp.eq.s32.totalorder %s19, 1
    %p100 = por %p98, %p99
    %p101 = scmp.ne.s32.totalorder %s92, %s93
    %p102 = scmp.eq.s32.totalorder %s19, 0
    %p103 = por %p101, %p102
    %p104 = scmp.ne.s32.totalorder %s92, %s93
    %p105 = scmp.eq.s32.totalorder %s20, 1
    %p106 = por %p104, %p105
    %p108 = scmp.ne.s32.totalorder %s93, %s107
    %p109 = scmp.eq.s32.totalorder %s20, 0
    %p110 = por %p108, %p109
    %s112 = sadd.s32 %s111, 1
    %p115 = scmp.eq.s32.totalorder %s14, 1
    %p116 = scmp.ne.s32.totalorder %s111, %s113
    %p117 = scmp.eq.s32.totalorder %s14, 0
    %p118 = por %p116, %p117
    %p119 = scmp.ne.s32.totalorder %s111, %s113
    %p120 = scmp.eq.s32.totalorder %s19, 1
    %p121 = por %p119, %p120
    %p122 = scmp.ne.s32.totalorder %s113, %s114
    %p123 = scmp.eq.s32.totalorder %s19, 0
    %p124 = por %p122, %p123
    %p125 = scmp.ne.s32.totalorder %s113, %s114
    %p126 = scmp.eq.s32.totalorder %s20, 1
    %p127 = por %p125, %p126
    %p129 = scmp.ne.s32.totalorder %s114, %s128
    %p130 = scmp.eq.s32.totalorder %s20, 0
    %p131 = por %p129, %p130
    %s133 = sadd.s32 %s132, 1
    %p136 = scmp.eq.s32.totalorder %s14, 1
    %p137 = scmp.ne.s32.totalorder %s132, %s134
    %p138 = scmp.eq.s32.totalorder %s14, 0
    %p139 = por %p137, %p138
    %p140 = scmp.ne.s32.totalorder %s132, %s134
    %p141 = scmp.eq.s32.totalorder %s19, 1
    %p142 = por %p140, %p141
    %p143 = scmp.ne.s32.totalorder %s134, %s135
    %p144 = scmp.eq.s32.totalorder %s19, 0
    %p145 = por %p143, %p144
    %p146 = scmp.ne.s32.totalorder %s134, %s135
    %p147 = scmp.eq.s32.totalorder %s20, 1
    %p148 = por %p146, %p147
    %p150 = scmp.ne.s32.totalorder %s135, %s149
    %p151 = scmp.eq.s32.totalorder %s20, 0
    %p152 = por %p150, %p151
    %s154 = sadd.s32 %s153, 1
    %p157 = scmp.eq.s32.totalorder %s14, 1
    %p158 = scmp.ne.s32.totalorder %s153, %s155
    %p159 = scmp.eq.s32.totalorder %s14, 0
    %p160 = por %p158, %p159
    %p161 = scmp.ne.s32.totalorder %s153, %s155
    %p162 = scmp.eq.s32.totalorder %s19, 1
    %p163 = por %p161, %p162
    %p164 = scmp.ne.s32.totalorder %s155, %s156
    %p165 = scmp.eq.s32.totalorder %s19, 0
    %p166 = por %p164, %p165
    %p167 = scmp.ne.s32.totalorder %s155, %s156
    %p168 = scmp.eq.s32.totalorder %s20, 1
    %p169 = por %p167, %p168
    %p171 = scmp.ne.s32.totalorder %s156, %s170
    %p172 = scmp.eq.s32.totalorder %s20, 0
    %p173 = por %p171, %p172
    %s175 = sadd.s32 %s174, 1
    %p178 = scmp.eq.s32.totalorder %s14, 1
    %p179 = scmp.ne.s32.totalorder %s174, %s176
    %p180 = scmp.eq.s32.totalorder %s14, 0
    %p181 = por %p179, %p180
    %p182 = scmp.ne.s32.totalorder %s174, %s176
    %p183 = scmp.eq.s32.totalorder %s19, 1
    %p184 = por %p182, %p183
    %p185 = scmp.ne.s32.totalorder %s176, %s177
    %p186 = scmp.eq.s32.totalorder %s19, 0
    %p187 = por %p185, %p186
    %p188 = scmp.ne.s32.totalorder %s176, %s177
    %p189 = scmp.eq.s32.totalorder %s20, 1
    %p190 = por %p188, %p189
    %p192 = scmp.ne.s32.totalorder %s177, %s191
    %p193 = scmp.eq.s32.totalorder %s20, 0
    %p194 = por %p192, %p193
    %s195 = ssub.s32 %s14, %s21
    %p196 = scmp.eq.s32.totalorder %s195, 0
    %s198 = sadd.s32 %s197, 1
    %s199 = scalar_select %p196, %s197, %s198
    %p202 = pneg %p196
    %p203 = scmp.eq.s32.totalorder %s14, 1
    %p204 = por %p202, %p203
    %p205 = scmp.ne.s32.totalorder %s197, %s200
    %p206 = scmp.eq.s32.totalorder %s14, 0
    %p207 = por %p205, %p206
    %p208 = scmp.ne.s32.totalorder %s197, %s200
    %p209 = scmp.eq.s32.totalorder %s19, 1
    %p210 = por %p208, %p209
    %p211 = scmp.ne.s32.totalorder %s200, %s201
    %p212 = scmp.eq.s32.totalorder %s19, 0
    %p213 = por %p211, %p212
    %p214 = scmp.ne.s32.totalorder %s200, %s201
    %p215 = scmp.eq.s32.totalorder %s20, 1
    %p216 = por %p214, %p215
    %p218 = scmp.ne.s32.totalorder %s201, %s217
    %p219 = scmp.eq.s32.totalorder %s20, 0
    %p220 = por %p218, %p219
    %p221 = scmp.le.s32.totalorder 1, %s14
    %p222 = scmp.lt.s32.totalorder %s14, 3
    %p223 = pnand %p221, %p222
    %p224 = pneg %p223
    // Predicated region
    $region9: #{tagcn_block_forward.1} parent=5 // pred_check
      _
    $region10: #{tagcn_block_forward.1} parent=5 // pred_check_branch
      %226 = sbr.rel (%p223) target = $region12
    $region11: #{tagcn_block_forward.1} parent=5 // pred_region
      %s227 = ssub.s32 %s14, 1
      // Predicated region
      $region13: #{tagcn_block_forward.1} parent=11 // pred_check
        %p228 = pneg %p61
      $region14: #{tagcn_block_forward.1} parent=11 // pred_check_branch
        %230 = sbr.rel (%p228) target = $region16
      $region15: #{tagcn_block_forward.1} parent=11 // pred_region
        _
      $region16: #{tagcn_block_forward.1} parent=11 // pred_fallthru
        _
      // Predicated region
      $region17: #{tagcn_block_forward.1} parent=11 // pred_check
        %p231 = pneg %p82
      $region18: #{tagcn_block_forward.1} parent=11 // pred_check_branch
        %233 = sbr.rel (%p231) target = $region20
      $region19: #{tagcn_block_forward.1} parent=11 // pred_region
        _
      $region20: #{tagcn_block_forward.1} parent=11 // pred_fallthru
        _
      // Predicated region
      $region21: #{tagcn_block_forward.1} parent=11 // pred_check
        %p234 = pneg %p103
      $region22: #{tagcn_block_forward.1} parent=11 // pred_check_branch
        %236 = sbr.rel (%p234) target = $region24
      $region23: #{tagcn_block_forward.1} parent=11 // pred_region
        _
      $region24: #{tagcn_block_forward.1} parent=11 // pred_fallthru
        _
      // Predicated region
      $region25: #{tagcn_block_forward.1} parent=11 // pred_check
        %p237 = pneg %p124
      $region26: #{tagcn_block_forward.1} parent=11 // pred_check_branch
        %239 = sbr.rel (%p237) target = $region28
      $region27: #{tagcn_block_forward.1} parent=11 // pred_region
        _
      $region28: #{tagcn_block_forward.1} parent=11 // pred_fallthru
        _
      // Predicated region
      $region29: #{tagcn_block_forward.1} parent=11 // pred_check
        %p240 = pneg %p145
      $region30: #{tagcn_block_forward.1} parent=11 // pred_check_branch
        %242 = sbr.rel (%p240) target = $region32
      $region31: #{tagcn_block_forward.1} parent=11 // pred_region
        _
      $region32: #{tagcn_block_forward.1} parent=11 // pred_fallthru
        _
      // Predicated region
      $region33: #{tagcn_block_forward.1} parent=11 // pred_check
        %p243 = pneg %p166
      $region34: #{tagcn_block_forward.1} parent=11 // pred_check_branch
        %245 = sbr.rel (%p243) target = $region36
      $region35: #{tagcn_block_forward.1} parent=11 // pred_region
        _
      $region36: #{tagcn_block_forward.1} parent=11 // pred_fallthru
        _
      // Predicated region
      $region37: #{tagcn_block_forward.1} parent=11 // pred_check
        %p246 = pneg %p187
      $region38: #{tagcn_block_forward.1} parent=11 // pred_check_branch
        %248 = sbr.rel (%p246) target = $region40
      $region39: #{tagcn_block_forward.1} parent=11 // pred_region
        _
      $region40: #{tagcn_block_forward.1} parent=11 // pred_fallthru
        _
    $region12: #{tagcn_block_forward.1} parent=5 // pred_fallthru
      _
    %p249 = scmp.lt.s32.totalorder %s14, 2
    // Predicated region
    $region41: #{tagcn_block_forward.1} parent=5 // pred_check
      %p250 = pneg %p249
    $region42: #{tagcn_block_forward.1} parent=5 // pred_check_branch
      %252 = sbr.rel (%p250) target = $region44
    $region43: #{tagcn_block_forward.1} parent=5 // pred_region
      // Predicated region
      $region45: #{tagcn_block_forward.1} parent=43 // pred_check
        %p253 = pneg %p34
      $region46: #{tagcn_block_forward.1} parent=43 // pred_check_branch
        %255 = sbr.rel (%p253) target = $region48
      $region47: #{tagcn_block_forward.1} parent=43 // pred_region
        %p256 = scmp.lt.s32.totalorder %s14, 1
        %s257 = scalar_select %p256, %s14, 1
        %s258 = smul.addr %s257, 4
        %s259 = scalar_lea.vmem %s0, %s258
      $region48: #{tagcn_block_forward.1} parent=43 // pred_fallthru
        _
    $region44: #{tagcn_block_forward.1} parent=5 // pred_fallthru
      _
    %p260 = scmp.le.s32.totalorder 1, %s14
    %p261 = scmp.lt.s32.totalorder %s14, 3
    %p262 = pnand %p260, %p261
    %p263 = pneg %p262
    // Predicated region
    $region49: #{tagcn_block_forward.1} parent=5 // pred_check
      _
    $region50: #{tagcn_block_forward.1} parent=5 // pred_check_branch
      %265 = sbr.rel (%p262) target = $region52
    $region51: #{tagcn_block_forward.1} parent=5 // pred_region
      %s266 = ssub.s32 %s14, 1
      %p267 = scmp.lt.s32.totalorder %s19, 1
      %s268 = scalar_select %p267, %s19, 1
      %s269 = smul.addr %s268, 4
      %s270 = scalar_lea.vmem %s0, %s269
      %p271 = pneg %p40
      %p272 = pneg %p37
      %p273 = pneg %p61
      %p274 = pneg %p58
      %p275 = pneg %p82
      %p276 = pneg %p79
      %p277 = pneg %p103
      %p278 = pneg %p100
      %p279 = pneg %p124
      %p280 = pneg %p121
      %p281 = pneg %p145
      %p282 = pneg %p142
      %p283 = pneg %p166
      %p284 = pneg %p163
      %p285 = pneg %p187
      %p286 = pneg %p184
      %p287 = pneg %p213
      %p288 = pneg %p210
      %p289 = scmp.lt.s32.totalorder %s19, 1
      %s290 = scalar_select %p289, %s19, 1
      %s291 = smul.addr %s290, 4
      %s292 = smul.addr %s291, 8
      %s293 = scalar_lea.vmem %s8, %s292
      %p294 = scmp.lt.s32.totalorder %s19, 1
      %s295 = scalar_select %p294, %s19, 1
      %s296 = smul.addr %s295, 4
      %s297 = scalar_lea.vmem %s0, %s296
      %p298 = scmp.lt.s32.totalorder %s19, 1
      %s299 = scalar_select %p298, %s19, 1
      %s300 = smul.addr %s299, 4
      %s301 = smul.addr %s300, 8
      %s302 = scalar_lea.vmem %s8, %s301
      %v304 = vld [vmem:[%s297] sm:$0xf]
      %v305 = vld [vmem:[%s7] sm:$0xff]
      %v306 = vld [vmem:[%s7 + $0x8] sm:$0xff]
      %v307 = vld [vmem:[%s7 + $0x10] sm:$0xff]
      %v308 = vld [vmem:[%s7 + $0x18] sm:$0xff]
      %v309 = vld [vmem:[%s7 + $0x20] sm:$0xff]
      %v310 = vld [vmem:[%s7 + $0x28] sm:$0xff]
      %v311 = vld [vmem:[%s7 + $0x30] sm:$0xff]
      %v312 = vld [vmem:[%s7 + $0x38] sm:$0xff]
      %v313 = vld [vmem:[%s7 + $0x40] sm:$0xff]
      %v314 = vld [vmem:[%s7 + $0x48] sm:$0xff]
      %v315 = vld [vmem:[%s7 + $0x50] sm:$0xff]
      %v316 = vld [vmem:[%s7 + $0x58] sm:$0xff]
      %v317 = vld [vmem:[%s7 + $0x60] sm:$0xff]
      %v318 = vld [vmem:[%s7 + $0x68] sm:$0xff]
      %v319 = vld [vmem:[%s7 + $0x70] sm:$0xff]
      %v320 = vld [vmem:[%s7 + $0x78] sm:$0xff]
      %v321 = vld [vmem:[%s7 + $0x80] sm:$0xff]
      %v322 = vld [vmem:[%s7 + $0x88] sm:$0xff]
      %v323 = vld [vmem:[%s7 + $0x90] sm:$0xff]
      %v324 = vld [vmem:[%s7 + $0x98] sm:$0xff]
      %v325 = vld [vmem:[%s7 + $0xa0] sm:$0x1]
      %v326 = vld [vmem:[%s7 + $0xa8] sm:$0x1]
      %v327 = vpack.c.bf16 %v304, %v304
      %v328 = vld [vmem:[%s1] sm:$0xf]
      %v329 = vld [vmem:[%s1 + $0x4] sm:$0xf]
      %v330 = vld [vmem:[%s1 + $0x8] sm:$0xf]
      %v331 = vld [vmem:[%s1 + $0xc] sm:$0xf]
      %v332 = vld [vmem:[%s1 + $0x10] sm:$0xf]
      %v333 = vld [vmem:[%s1 + $0x14] sm:$0xf]
      %v334 = vld [vmem:[%s1 + $0x18] sm:$0xf]
      %v335 = vld [vmem:[%s1 + $0x1c] sm:$0xf]
      %v336 = vld [vmem:[%s1 + $0x20] sm:$0xf]
      %v337 = vld [vmem:[%s1 + $0x24] sm:$0xf]
      %v338 = vld [vmem:[%s1 + $0x28] sm:$0xf]
      %v339 = vld [vmem:[%s1 + $0x2c] sm:$0xf]
      %v340 = vld [vmem:[%s1 + $0x30] sm:$0xf]
      %v341 = vld [vmem:[%s1 + $0x34] sm:$0xf]
      %v342 = vld [vmem:[%s1 + $0x38] sm:$0xf]
      %v343 = vld [vmem:[%s1 + $0x3c] sm:$0xf]
      %v360 = vunpack.c.l.b16 %v328
      %v361 = vunpack.c.l.b16 %v329
      %v362 = vunpack.c.l.b16 %v330
      %v363 = vunpack.c.l.b16 %v331
      %v364 = vunpack.c.l.b16 %v332
      %v365 = vunpack.c.l.b16 %v333
      %v366 = vunpack.c.l.b16 %v334
      %v367 = vunpack.c.l.b16 %v335
      %v368 = vunpack.c.l.b16 %v336
      %v369 = vunpack.c.l.b16 %v337
      %v370 = vunpack.c.l.b16 %v338
      %v371 = vunpack.c.l.b16 %v339
      %v372 = vunpack.c.l.b16 %v340
      %v373 = vunpack.c.l.b16 %v341
      %v374 = vunpack.c.l.b16 %v342
      %v375 = vunpack.c.l.b16 %v343
      %v376 = vpack.c.b16 %v361, %v360
      %v377 = vpack.c.b16 %v363, %v362
      %v378 = vpack.c.b16 %v365, %v364
      %v379 = vpack.c.b16 %v367, %v366
      %v380 = vpack.c.b16 %v369, %v368
      %v381 = vpack.c.b16 %v371, %v370
      %v382 = vpack.c.b16 %v373, %v372
      %v383 = vpack.c.b16 %v375, %v374
      %392 = vmatpush.bf16.msra.mxu0 %v383
      %393 = vmatpush.bf16.msra.mxu0 %v382
      %394 = vmatpush.bf16.msra.mxu0 %v381
      %395 = vmatpush.bf16.msra.mxu0 %v380
      %396 = vmatpush.bf16.msra.mxu0 %v379
      %397 = vmatpush.bf16.msra.mxu0 %v378
      %398 = vmatpush.bf16.msra.mxu0 %v377
      %399 = vmatpush.bf16.msra.mxu0 %v376
      %400 = vmatmul.bf16.gmra.mxu0 %v327
      %v401 = vpop.f32.mrf.mxu0
      %v402 = vadd.f32 0.0, %v401
      %v403 = vpop.f32.mrf.mxu0
      %404 = vdwg.mxu0
      %v405 = vld [vmem:[%s3] sm:$0xf]
      %v406 = vld [vmem:[%s3 + $0x4] sm:$0xf]
      %v407 = vld [vmem:[%s3 + $0x8] sm:$0xf]
      %v408 = vld [vmem:[%s3 + $0xc] sm:$0xf]
      %v409 = vpack.c.bf16 %v402, %v402
      %411 = vset.pattern.permute.xlu0 0
      %412 = vperm.xlu0 %411, %v305
      %v413 = vpop.permute.xlu0 %412
      %416 = vset.pattern.permute.xlu0 0
      %417 = vperm.xlu0 %416, %v306
      %v418 = vpop.permute.xlu0 %417
      %421 = vset.pattern.permute.xlu0 0
      %422 = vperm.xlu0 %421, %v307
      %v423 = vpop.permute.xlu0 %422
      %426 = vset.pattern.permute.xlu0 0
      %427 = vperm.xlu0 %426, %v308
      %v428 = vpop.permute.xlu0 %427
      %v434 = vunpack.c.l.b16 %v405
      %v435 = vunpack.c.l.b16 %v406
      %v436 = vunpack.c.l.b16 %v407
      %v437 = vunpack.c.l.b16 %v408
      %v438 = vpack.c.b16 %v435, %v434
      %v439 = vpack.c.b16 %v437, %v436
      %vm440 = vcmask 31744
      %v442 = vsel %vm440, %v438, 0
      %v445 = vsel %vm440, %v439, 0
      %vm447 = vcmask 1041408
      %v449 = vsel %vm447, %v409, 0
      %451 = vmatpush.bf16.msra.mxu0 0
      %452 = vmatpush.bf16.msra.mxu0 0
      %453 = vmatpush.bf16.msra.mxu0 0
      %454 = vmatpush.bf16.msra.mxu0 0
      %455 = vmatpush.bf16.msra.mxu0 0
      %456 = vmatpush.bf16.msra.mxu0 0
      %457 = vmatpush.bf16.msra.mxu0 0
      %458 = vmatpush.bf16.msra.mxu0 %v449
      %459 = vmatmul.bf16.gmra.mxu0 %v442
      %v460 = vpop.f32.mrf.mxu0
      %v461 = vadd.f32 %v413, %v460
      %v462 = vpop.f32.mrf.mxu0
      %v463 = vadd.f32 %v418, %v462
      %464 = vmatmul.bf16.gmra.mxu0 %v445
      %v465 = vpop.f32.mrf.mxu0
      %v466 = vadd.f32 %v423, %v465
      %v467 = vpop.f32.mrf.mxu0
      %v468 = vadd.f32 %v428, %v467
      %469 = vdwg.mxu0
      %vm470 = vcmp.ge.f32.partialorder %v461, 0.0
      %vm471 = vcmp.ge.f32.partialorder %v463, 0.0
      %vm472 = vcmp.ge.f32.partialorder %v466, 0.0
      %vm473 = vcmp.ge.f32.partialorder %v468, 0.0
      %s475 = vtos %v325
      %v476 = vstv %s475
      %v478 = vmul.f32 %v476, %v461
      %v479 = vmul.f32 %v476, %v463
      %v480 = vmul.f32 %v476, %v466
      %v481 = vmul.f32 %v476, %v468
      %v482 = vsel %vm470, %v461, %v478
      %v483 = vsel %vm471, %v463, %v479
      %v484 = vsel %vm472, %v466, %v480
      %v485 = vsel %vm473, %v468, %v481
      %v486 = vld [vmem:[%s4] sm:$0xf]
      %v487 = vld [vmem:[%s4 + $0x4] sm:$0xf]
      %v488 = vld [vmem:[%s4 + $0x8] sm:$0xf]
      %v489 = vld [vmem:[%s4 + $0xc] sm:$0xf]
      %v490 = vld [vmem:[%s4 + $0x10] sm:$0xf]
      %v491 = vld [vmem:[%s4 + $0x14] sm:$0xf]
      %v492 = vld [vmem:[%s4 + $0x18] sm:$0xf]
      %v493 = vld [vmem:[%s4 + $0x1c] sm:$0xf]
      %v494 = vld [vmem:[%s4 + $0x20] sm:$0xf]
      %v495 = vld [vmem:[%s4 + $0x24] sm:$0xf]
      %v496 = vld [vmem:[%s4 + $0x28] sm:$0xf]
      %v497 = vld [vmem:[%s4 + $0x2c] sm:$0xf]
      %v498 = vpack.c.bf16 %v482, %v482
      %v499 = vpack.c.bf16 %v483, %v483
      %v500 = vpack.c.bf16 %v484, %v484
      %v501 = vpack.c.bf16 %v485, %v485
      %503 = vset.pattern.permute.xlu0 0
      %504 = vperm.xlu0 %503, %v309
      %v505 = vpop.permute.xlu0 %504
      %508 = vset.pattern.permute.xlu0 0
      %509 = vperm.xlu0 %508, %v310
      %v510 = vpop.permute.xlu0 %509
      %513 = vset.pattern.permute.xlu0 0
      %514 = vperm.xlu0 %513, %v311
      %v515 = vpop.permute.xlu0 %514
      %518 = vset.pattern.permute.xlu0 0
      %519 = vperm.xlu0 %518, %v312
      %v520 = vpop.permute.xlu0 %519
      %523 = vset.pattern.permute.xlu0 0
      %524 = vperm.xlu0 %523, %v313
      %v525 = vpop.permute.xlu0 %524
      %528 = vset.pattern.permute.xlu0 0
      %529 = vperm.xlu0 %528, %v314
      %v530 = vpop.permute.xlu0 %529
      %533 = vset.pattern.permute.xlu0 0
      %534 = vperm.xlu0 %533, %v315
      %v535 = vpop.permute.xlu0 %534
      %538 = vset.pattern.permute.xlu0 0
      %539 = vperm.xlu0 %538, %v316
      %v540 = vpop.permute.xlu0 %539
      %543 = vset.pattern.permute.xlu0 0
      %544 = vperm.xlu0 %543, %v317
      %v545 = vpop.permute.xlu0 %544
      %548 = vset.pattern.permute.xlu0 0
      %549 = vperm.xlu0 %548, %v318
      %v550 = vpop.permute.xlu0 %549
      %553 = vset.pattern.permute.xlu0 0
      %554 = vperm.xlu0 %553, %v319
      %v555 = vpop.permute.xlu0 %554
      %558 = vset.pattern.permute.xlu0 0
      %559 = vperm.xlu0 %558, %v320
      %v560 = vpop.permute.xlu0 %559
      %v574 = vunpack.c.l.b16 %v486
      %v575 = vunpack.c.l.b16 %v487
      %v576 = vunpack.c.l.b16 %v488
      %v577 = vunpack.c.l.b16 %v489
      %v578 = vunpack.c.l.b16 %v490
      %v579 = vunpack.c.l.b16 %v491
      %v580 = vunpack.c.l.b16 %v492
      %v581 = vunpack.c.l.b16 %v493
      %v582 = vunpack.c.l.b16 %v494
      %v583 = vunpack.c.l.b16 %v495
      %v584 = vunpack.c.l.b16 %v496
      %v585 = vunpack.c.l.b16 %v497
      %v586 = vpack.c.b16 %v575, %v574
      %v587 = vpack.c.b16 %v577, %v576
      %v588 = vpack.c.b16 %v579, %v578
      %v589 = vpack.c.b16 %v581, %v580
      %v590 = vpack.c.b16 %v583, %v582
      %v591 = vpack.c.b16 %v585, %v584
      %v596 = vunpack.c.l.b16 %v498
      %v597 = vunpack.c.l.b16 %v499
      %v598 = vunpack.c.l.b16 %v500
      %v599 = vunpack.c.l.b16 %v501
      %v600 = vpack.c.b16 %v597, %v596
      %v601 = vpack.c.b16 %v599, %v598
      %vm604 = vcmask 261120
      %v606 = vsel %vm604, %v586, 0
      %v609 = vsel %vm604, %v587, 0
      %v612 = vsel %vm604, %v588, 0
      %v615 = vsel %vm604, %v589, 0
      %v618 = vsel %vm604, %v590, 0
      %v621 = vsel %vm604, %v591, 0
      %623 = vmatpush.bf16.msra.mxu0 0
      %624 = vmatpush.bf16.msra.mxu0 0
      %625 = vmatpush.bf16.msra.mxu0 0
      %626 = vmatpush.bf16.msra.mxu0 0
      %627 = vmatpush.bf16.msra.mxu0 0
      %628 = vmatpush.bf16.msra.mxu0 0
      %629 = vmatpush.bf16.msra.mxu0 %v601
      %630 = vmatpush.bf16.msra.mxu0 %v600
      %631 = vmatmul.bf16.gmra.mxu0 %v606
      %v632 = vpop.f32.mrf.mxu0
      %v633 = vadd.f32 %v505, %v632
      %v634 = vpop.f32.mrf.mxu0
      %v635 = vadd.f32 %v510, %v634
      %636 = vmatmul.bf16.gmra.mxu0 %v609
      %v637 = vpop.f32.mrf.mxu0
      %v638 = vadd.f32 %v515, %v637
      %v639 = vpop.f32.mrf.mxu0
      %v640 = vadd.f32 %v520, %v639
      %641 = vmatmul.bf16.gmra.mxu0 %v612
      %v642 = vpop.f32.mrf.mxu0
      %v643 = vadd.f32 %v525, %v642
      %v644 = vpop.f32.mrf.mxu0
      %v645 = vadd.f32 %v530, %v644
      %646 = vmatmul.bf16.gmra.mxu0 %v615
      %v647 = vpop.f32.mrf.mxu0
      %v648 = vadd.f32 %v535, %v647
      %v649 = vpop.f32.mrf.mxu0
      %v650 = vadd.f32 %v540, %v649
      %651 = vmatmul.bf16.gmra.mxu0 %v618
      %v652 = vpop.f32.mrf.mxu0
      %v653 = vadd.f32 %v545, %v652
      %v654 = vpop.f32.mrf.mxu0
      %v655 = vadd.f32 %v550, %v654
      %656 = vmatmul.bf16.gmra.mxu0 %v621
      %v657 = vpop.f32.mrf.mxu0
      %v658 = vadd.f32 %v555, %v657
      %v659 = vpop.f32.mrf.mxu0
      %v660 = vadd.f32 %v560, %v659
      %661 = vdwg.mxu0
      %v666 = vrot.slane %v633, 4
      %v667 = vrot.slane %v635, 4
      %v668 = vrot.slane %v638, 4
      %v669 = vrot.slane %v640, 4
      %v674 = vpack.c.bf16 %v633, %v633
      %v675 = vpack.c.bf16 %v666, %v666
      %v676 = vpack.c.bf16 %v635, %v635
      %v677 = vpack.c.bf16 %v667, %v667
      %v678 = vpack.c.bf16 %v638, %v638
      %v679 = vpack.c.bf16 %v668, %v668
      %v680 = vpack.c.bf16 %v640, %v640
      %v681 = vpack.c.bf16 %v669, %v669
      %v686 = vrot.slane %v643, 4
      %v687 = vrot.slane %v645, 4
      %v688 = vrot.slane %v648, 4
      %v689 = vrot.slane %v650, 4
      %v694 = vpack.c.bf16 %v643, %v643
      %v695 = vpack.c.bf16 %v686, %v686
      %v696 = vpack.c.bf16 %v645, %v645
      %v697 = vpack.c.bf16 %v687, %v687
      %v698 = vpack.c.bf16 %v648, %v648
      %v699 = vpack.c.bf16 %v688, %v688
      %v700 = vpack.c.bf16 %v650, %v650
      %v701 = vpack.c.bf16 %v689, %v689
      %v706 = vrot.slane %v653, 4
      %v707 = vrot.slane %v655, 4
      %v708 = vrot.slane %v658, 4
      %v709 = vrot.slane %v660, 4
      %v714 = vpack.c.bf16 %v653, %v653
      %v715 = vpack.c.bf16 %v706, %v706
      %v716 = vpack.c.bf16 %v655, %v655
      %v717 = vpack.c.bf16 %v707, %v707
      %v718 = vpack.c.bf16 %v658, %v658
      %v719 = vpack.c.bf16 %v708, %v708
      %v720 = vpack.c.bf16 %v660, %v660
      %v721 = vpack.c.bf16 %v709, %v709
      %v722 = vld [vmem:[%s2] sm:$0xff]
      %v723 = vld [vmem:[%s2 + $0x8] sm:$0xff]
      %v724 = vld [vmem:[%s2 + $0x10] sm:$0xff]
      %v725 = vld [vmem:[%s2 + $0x18] sm:$0xff]
      %v726 = vld [vmem:[%s2 + $0x20] sm:$0xff]
      %v727 = vld [vmem:[%s2 + $0x28] sm:$0xff]
      %v728 = vld [vmem:[%s2 + $0x30] sm:$0xff]
      %v729 = vld [vmem:[%s2 + $0x38] sm:$0xff]
      %v730 = vld [vmem:[%s2 + $0x40] sm:$0xff]
      %v731 = vld [vmem:[%s2 + $0x48] sm:$0xff]
      %v732 = vld [vmem:[%s2 + $0x50] sm:$0xff]
      %v733 = vld [vmem:[%s2 + $0x58] sm:$0xff]
      %v734 = vld [vmem:[%s2 + $0x60] sm:$0xff]
      %v735 = vld [vmem:[%s2 + $0x68] sm:$0xff]
      %v736 = vld [vmem:[%s2 + $0x70] sm:$0xff]
      %v737 = vld [vmem:[%s2 + $0x78] sm:$0xff]
      %738 = vxpose.xlu0.c.b16.start [1/8] %v674, 128
      %739 = vxpose.xlu0.c.b16.cont [2/8] 0, 128
      %740 = vxpose.xlu0.c.b16.cont [3/8] 0, 128
      %741 = vxpose.xlu0.c.b16.cont [4/8] 0, 128
      %742 = vxpose.xlu0.c.b16.cont [5/8] 0, 128
      %743 = vxpose.xlu0.c.b16.cont [6/8] 0, 128
      %744 = vxpose.xlu0.c.b16.cont [7/8] 0, 128
      %745 = vxpose.xlu0.c.b16.end [8/8] 0, 128
      %v746 = vpop.trf.xlu0
      %v747 = vpop.trf.xlu0
      %v748 = vpop.trf.xlu0
      %v749 = vpop.trf.xlu0
      %v750 = vpop.trf.xlu0
      %v751 = vpop.trf.xlu0
      %v752 = vpop.trf.xlu0
      %v753 = vpop.trf.xlu0
      %v755 = vsel %vm440, %v746, 0
      %v758 = vsel %vm440, %v747, 0
      %v761 = vsel %vm440, %v748, 0
      %v764 = vsel %vm440, %v749, 0
      %v767 = vsel %vm440, %v750, 0
      %v770 = vsel %vm440, %v751, 0
      %v773 = vsel %vm440, %v752, 0
      %v776 = vsel %vm440, %v753, 0
      %v779 = vsel %vm447, %v694, 0
      %781 = vmatpush.bf16.msra.mxu0 0
      %782 = vmatpush.bf16.msra.mxu0 0
      %783 = vmatpush.bf16.msra.mxu0 0
      %784 = vmatpush.bf16.msra.mxu0 0
      %785 = vmatpush.bf16.msra.mxu0 0
      %786 = vmatpush.bf16.msra.mxu0 0
      %787 = vmatpush.bf16.msra.mxu0 0
      %788 = vmatpush.bf16.msra.mxu0 %v779
      %789 = vmatmul.bf16.gmra.mxu0 %v755
      %v790 = vpop.f32.mrf.mxu0
      %v791 = vadd.f32 %v722, %v790
      %v792 = vpop.f32.mrf.mxu0
      %v793 = vadd.f32 %v723, %v792
      %794 = vmatmul.bf16.gmra.mxu0 %v758
      %v795 = vpop.f32.mrf.mxu0
      %v796 = vadd.f32 %v724, %v795
      %v797 = vpop.f32.mrf.mxu0
      %v798 = vadd.f32 %v725, %v797
      %799 = vmatmul.bf16.gmra.mxu0 %v761
      %v800 = vpop.f32.mrf.mxu0
      %v801 = vadd.f32 %v726, %v800
      %v802 = vpop.f32.mrf.mxu0
      %v803 = vadd.f32 %v727, %v802
      %804 = vmatmul.bf16.gmra.mxu0 %v764
      %v805 = vpop.f32.mrf.mxu0
      %v806 = vadd.f32 %v728, %v805
      %v807 = vpop.f32.mrf.mxu0
      %v808 = vadd.f32 %v729, %v807
      %809 = vmatmul.bf16.gmra.mxu0 %v767
      %v810 = vpop.f32.mrf.mxu0
      %v811 = vadd.f32 %v730, %v810
      %v812 = vpop.f32.mrf.mxu0
      %v813 = vadd.f32 %v731, %v812
      %814 = vmatmul.bf16.gmra.mxu0 %v770
      %v815 = vpop.f32.mrf.mxu0
      %v816 = vadd.f32 %v732, %v815
      %v817 = vpop.f32.mrf.mxu0
      %v818 = vadd.f32 %v733, %v817
      %819 = vmatmul.bf16.gmra.mxu0 %v773
      %v820 = vpop.f32.mrf.mxu0
      %v821 = vadd.f32 %v734, %v820
      %v822 = vpop.f32.mrf.mxu0
      %v823 = vadd.f32 %v735, %v822
      %824 = vmatmul.bf16.gmra.mxu0 %v776
      %v825 = vpop.f32.mrf.mxu0
      %v826 = vadd.f32 %v736, %v825
      %v827 = vpop.f32.mrf.mxu0
      %v828 = vadd.f32 %v737, %v827
      %829 = vdwg.mxu0
      %830 = vxpose.xlu0.c.b16.start [1/8] %v675, 128
      %831 = vxpose.xlu0.c.b16.cont [2/8] 0, 128
      %832 = vxpose.xlu0.c.b16.cont [3/8] 0, 128
      %833 = vxpose.xlu0.c.b16.cont [4/8] 0, 128
      %834 = vxpose.xlu0.c.b16.cont [5/8] 0, 128
      %835 = vxpose.xlu0.c.b16.cont [6/8] 0, 128
      %836 = vxpose.xlu0.c.b16.cont [7/8] 0, 128
      %837 = vxpose.xlu0.c.b16.end [8/8] 0, 128
      %v838 = vpop.trf.xlu0
      %v839 = vpop.trf.xlu0
      %v840 = vpop.trf.xlu0
      %v841 = vpop.trf.xlu0
      %v842 = vpop.trf.xlu0
      %v843 = vpop.trf.xlu0
      %v844 = vpop.trf.xlu0
      %v845 = vpop.trf.xlu0
      %v847 = vsel %vm440, %v838, 0
      %v850 = vsel %vm440, %v839, 0
      %v853 = vsel %vm440, %v840, 0
      %v856 = vsel %vm440, %v841, 0
      %v859 = vsel %vm440, %v842, 0
      %v862 = vsel %vm440, %v843, 0
      %v865 = vsel %vm440, %v844, 0
      %v868 = vsel %vm440, %v845, 0
      %v871 = vsel %vm447, %v695, 0
      %873 = vmatpush.bf16.msra.mxu0 0
      %874 = vmatpush.bf16.msra.mxu0 0
      %875 = vmatpush.bf16.msra.mxu0 0
      %876 = vmatpush.bf16.msra.mxu0 0
      %877 = vmatpush.bf16.msra.mxu0 0
      %878 = vmatpush.bf16.msra.mxu0 0
      %879 = vmatpush.bf16.msra.mxu0 0
      %880 = vmatpush.bf16.msra.mxu0 %v871
      %881 = vmatmul.bf16.gmra.mxu0 %v847
      %v882 = vpop.f32.mrf.mxu0
      %v883 = vadd.f32 %v722, %v882
      %v884 = vpop.f32.mrf.mxu0
      %v885 = vadd.f32 %v723, %v884
      %886 = vmatmul.bf16.gmra.mxu0 %v850
      %v887 = vpop.f32.mrf.mxu0
      %v888 = vadd.f32 %v724, %v887
      %v889 = vpop.f32.mrf.mxu0
      %v890 = vadd.f32 %v725, %v889
      %891 = vmatmul.bf16.gmra.mxu0 %v853
      %v892 = vpop.f32.mrf.mxu0
      %v893 = vadd.f32 %v726, %v892
      %v894 = vpop.f32.mrf.mxu0
      %v895 = vadd.f32 %v727, %v894
      %896 = vmatmul.bf16.gmra.mxu0 %v856
      %v897 = vpop.f32.mrf.mxu0
      %v898 = vadd.f32 %v728, %v897
      %v899 = vpop.f32.mrf.mxu0
      %v900 = vadd.f32 %v729, %v899
      %901 = vmatmul.bf16.gmra.mxu0 %v859
      %v902 = vpop.f32.mrf.mxu0
      %v903 = vadd.f32 %v730, %v902
      %v904 = vpop.f32.mrf.mxu0
      %v905 = vadd.f32 %v731, %v904
      %906 = vmatmul.bf16.gmra.mxu0 %v862
      %v907 = vpop.f32.mrf.mxu0
      %v908 = vadd.f32 %v732, %v907
      %v909 = vpop.f32.mrf.mxu0
      %v910 = vadd.f32 %v733, %v909
      %911 = vmatmul.bf16.gmra.mxu0 %v865
      %v912 = vpop.f32.mrf.mxu0
      %v913 = vadd.f32 %v734, %v912
      %v914 = vpop.f32.mrf.mxu0
      %v915 = vadd.f32 %v735, %v914
      %916 = vmatmul.bf16.gmra.mxu0 %v868
      %v917 = vpop.f32.mrf.mxu0
      %v918 = vadd.f32 %v736, %v917
      %v919 = vpop.f32.mrf.mxu0
      %v920 = vadd.f32 %v737, %v919
      %921 = vdwg.mxu0
      %922 = vxpose.xlu0.c.b16.start [1/8] %v676, 128
      %923 = vxpose.xlu0.c.b16.cont [2/8] 0, 128
      %924 = vxpose.xlu0.c.b16.cont [3/8] 0, 128
      %925 = vxpose.xlu0.c.b16.cont [4/8] 0, 128
      %926 = vxpose.xlu0.c.b16.cont [5/8] 0, 128
      %927 = vxpose.xlu0.c.b16.cont [6/8] 0, 128
      %928 = vxpose.xlu0.c.b16.cont [7/8] 0, 128
      %929 = vxpose.xlu0.c.b16.end [8/8] 0, 128
      %v930 = vpop.trf.xlu0
      %v931 = vpop.trf.xlu0
      %v932 = vpop.trf.xlu0
      %v933 = vpop.trf.xlu0
      %v934 = vpop.trf.xlu0
      %v935 = vpop.trf.xlu0
      %v936 = vpop.trf.xlu0
      %v937 = vpop.trf.xlu0
      %v939 = vsel %vm440, %v930, 0
      %v942 = vsel %vm440, %v931, 0
      %v945 = vsel %vm440, %v932, 0
      %v948 = vsel %vm440, %v933, 0
      %v951 = vsel %vm440, %v934, 0
      %v954 = vsel %vm440, %v935, 0
      %v957 = vsel %vm440, %v936, 0
      %v960 = vsel %vm440, %v937, 0
      %v963 = vsel %vm447, %v696, 0
      %965 = vmatpush.bf16.msra.mxu0 0
      %966 = vmatpush.bf16.msra.mxu0 0
      %967 = vmatpush.bf16.msra.mxu0 0
      %968 = vmatpush.bf16.msra.mxu0 0
      %969 = vmatpush.bf16.msra.mxu0 0
      %970 = vmatpush.bf16.msra.mxu0 0
      %971 = vmatpush.bf16.msra.mxu0 0
      %972 = vmatpush.bf16.msra.mxu0 %v963
      %973 = vmatmul.bf16.gmra.mxu0 %v939
      %v974 = vpop.f32.mrf.mxu0
      %v975 = vadd.f32 %v722, %v974
      %v976 = vpop.f32.mrf.mxu0
      %v977 = vadd.f32 %v723, %v976
      %978 = vmatmul.bf16.gmra.mxu0 %v942
      %v979 = vpop.f32.mrf.mxu0
      %v980 = vadd.f32 %v724, %v979
      %v981 = vpop.f32.mrf.mxu0
      %v982 = vadd.f32 %v725, %v981
      %983 = vmatmul.bf16.gmra.mxu0 %v945
      %v984 = vpop.f32.mrf.mxu0
      %v985 = vadd.f32 %v726, %v984
      %v986 = vpop.f32.mrf.mxu0
      %v987 = vadd.f32 %v727, %v986
      %988 = vmatmul.bf16.gmra.mxu0 %v948
      %v989 = vpop.f32.mrf.mxu0
      %v990 = vadd.f32 %v728, %v989
      %v991 = vpop.f32.mrf.mxu0
      %v992 = vadd.f32 %v729, %v991
      %993 = vmatmul.bf16.gmra.mxu0 %v951
      %v994 = vpop.f32.mrf.mxu0
      %v995 = vadd.f32 %v730, %v994
      %v996 = vpop.f32.mrf.mxu0
      %v997 = vadd.f32 %v731, %v996
      %998 = vmatmul.bf16.gmra.mxu0 %v954
      %v999 = vpop.f32.mrf.mxu0
      %v1000 = vadd.f32 %v732, %v999
      %v1001 = vpop.f32.mrf.mxu0
      %v1002 = vadd.f32 %v733, %v1001
      %1003 = vmatmul.bf16.gmra.mxu0 %v957
      %v1004 = vpop.f32.mrf.mxu0
      %v1005 = vadd.f32 %v734, %v1004
      %v1006 = vpop.f32.mrf.mxu0
      %v1007 = vadd.f32 %v735, %v1006
      %1008 = vmatmul.bf16.gmra.mxu0 %v960
      %v1009 = vpop.f32.mrf.mxu0
      %v1010 = vadd.f32 %v736, %v1009
      %v1011 = vpop.f32.mrf.mxu0
      %v1012 = vadd.f32 %v737, %v1011
      %1013 = vdwg.mxu0
      %1014 = vxpose.xlu0.c.b16.start [1/8] %v677, 128
      %1015 = vxpose.xlu0.c.b16.cont [2/8] 0, 128
      %1016 = vxpose.xlu0.c.b16.cont [3/8] 0, 128
      %1017 = vxpose.xlu0.c.b16.cont [4/8] 0, 128
      %1018 = vxpose.xlu0.c.b16.cont [5/8] 0, 128
      %1019 = vxpose.xlu0.c.b16.cont [6/8] 0, 128
      %1020 = vxpose.xlu0.c.b16.cont [7/8] 0, 128
      %1021 = vxpose.xlu0.c.b16.end [8/8] 0, 128
      %v1022 = vpop.trf.xlu0
      %v1023 = vpop.trf.xlu0
      %v1024 = vpop.trf.xlu0
      %v1025 = vpop.trf.xlu0
      %v1026 = vpop.trf.xlu0
      %v1027 = vpop.trf.xlu0
      %v1028 = vpop.trf.xlu0
      %v1029 = vpop.trf.xlu0
      %v1031 = vsel %vm440, %v1022, 0
      %v1034 = vsel %vm440, %v1023, 0
      %v1037 = vsel %vm440, %v1024, 0
      %v1040 = vsel %vm440, %v1025, 0
      %v1043 = vsel %vm440, %v1026, 0
      %v1046 = vsel %vm440, %v1027, 0
      %v1049 = vsel %vm440, %v1028, 0
      %v1052 = vsel %vm440, %v1029, 0
      %v1055 = vsel %vm447, %v697, 0
      %1057 = vmatpush.bf16.msra.mxu0 0
      %1058 = vmatpush.bf16.msra.mxu0 0
      %1059 = vmatpush.bf16.msra.mxu0 0
      %1060 = vmatpush.bf16.msra.mxu0 0
      %1061 = vmatpush.bf16.msra.mxu0 0
      %1062 = vmatpush.bf16.msra.mxu0 0
      %1063 = vmatpush.bf16.msra.mxu0 0
      %1064 = vmatpush.bf16.msra.mxu0 %v1055
      %1065 = vmatmul.bf16.gmra.mxu0 %v1031
      %v1066 = vpop.f32.mrf.mxu0
      %v1067 = vadd.f32 %v722, %v1066
      %v1068 = vpop.f32.mrf.mxu0
      %v1069 = vadd.f32 %v723, %v1068
      %1070 = vmatmul.bf16.gmra.mxu0 %v1034
      %v1071 = vpop.f32.mrf.mxu0
      %v1072 = vadd.f32 %v724, %v1071
      %v1073 = vpop.f32.mrf.mxu0
      %v1074 = vadd.f32 %v725, %v1073
      %1075 = vmatmul.bf16.gmra.mxu0 %v1037
      %v1076 = vpop.f32.mrf.mxu0
      %v1077 = vadd.f32 %v726, %v1076
      %v1078 = vpop.f32.mrf.mxu0
      %v1079 = vadd.f32 %v727, %v1078
      %1080 = vmatmul.bf16.gmra.mxu0 %v1040
      %v1081 = vpop.f32.mrf.mxu0
      %v1082 = vadd.f32 %v728, %v1081
      %v1083 = vpop.f32.mrf.mxu0
      %v1084 = vadd.f32 %v729, %v1083
      %1085 = vmatmul.bf16.gmra.mxu0 %v1043
      %v1086 = vpop.f32.mrf.mxu0
      %v1087 = vadd.f32 %v730, %v1086
      %v1088 = vpop.f32.mrf.mxu0
      %v1089 = vadd.f32 %v731, %v1088
      %1090 = vmatmul.bf16.gmra.mxu0 %v1046
      %v1091 = vpop.f32.mrf.mxu0
      %v1092 = vadd.f32 %v732, %v1091
      %v1093 = vpop.f32.mrf.mxu0
      %v1094 = vadd.f32 %v733, %v1093
      %1095 = vmatmul.bf16.gmra.mxu0 %v1049
      %v1096 = vpop.f32.mrf.mxu0
      %v1097 = vadd.f32 %v734, %v1096
      %v1098 = vpop.f32.mrf.mxu0
      %v1099 = vadd.f32 %v735, %v1098
      %1100 = vmatmul.bf16.gmra.mxu0 %v1052
      %v1101 = vpop.f32.mrf.mxu0
      %v1102 = vadd.f32 %v736, %v1101
      %v1103 = vpop.f32.mrf.mxu0
      %v1104 = vadd.f32 %v737, %v1103
      %1105 = vdwg.mxu0
      %1106 = vxpose.xlu0.c.b16.start [1/8] %v678, 128
      %1107 = vxpose.xlu0.c.b16.cont [2/8] 0, 128
      %1108 = vxpose.xlu0.c.b16.cont [3/8] 0, 128
      %1109 = vxpose.xlu0.c.b16.cont [4/8] 0, 128
      %1110 = vxpose.xlu0.c.b16.cont [5/8] 0, 128
      %1111 = vxpose.xlu0.c.b16.cont [6/8] 0, 128
      %1112 = vxpose.xlu0.c.b16.cont [7/8] 0, 128
      %1113 = vxpose.xlu0.c.b16.end [8/8] 0, 128
      %v1114 = vpop.trf.xlu0
      %v1115 = vpop.trf.xlu0
      %v1116 = vpop.trf.xlu0
      %v1117 = vpop.trf.xlu0
      %v1118 = vpop.trf.xlu0
      %v1119 = vpop.trf.xlu0
      %v1120 = vpop.trf.xlu0
      %v1121 = vpop.trf.xlu0
      %v1123 = vsel %vm440, %v1114, 0
      %v1126 = vsel %vm440, %v1115, 0
      %v1129 = vsel %vm440, %v1116, 0
      %v1132 = vsel %vm440, %v1117, 0
      %v1135 = vsel %vm440, %v1118, 0
      %v1138 = vsel %vm440, %v1119, 0
      %v1141 = vsel %vm440, %v1120, 0
      %v1144 = vsel %vm440, %v1121, 0
      %v1147 = vsel %vm447, %v698, 0
      %1149 = vmatpush.bf16.msra.mxu0 0
      %1150 = vmatpush.bf16.msra.mxu0 0
      %1151 = vmatpush.bf16.msra.mxu0 0
      %1152 = vmatpush.bf16.msra.mxu0 0
      %1153 = vmatpush.bf16.msra.mxu0 0
      %1154 = vmatpush.bf16.msra.mxu0 0
      %1155 = vmatpush.bf16.msra.mxu0 0
      %1156 = vmatpush.bf16.msra.mxu0 %v1147
      %1157 = vmatmul.bf16.gmra.mxu0 %v1123
      %v1158 = vpop.f32.mrf.mxu0
      %v1159 = vadd.f32 %v722, %v1158
      %v1160 = vpop.f32.mrf.mxu0
      %v1161 = vadd.f32 %v723, %v1160
      %1162 = vmatmul.bf16.gmra.mxu0 %v1126
      %v1163 = vpop.f32.mrf.mxu0
      %v1164 = vadd.f32 %v724, %v1163
      %v1165 = vpop.f32.mrf.mxu0
      %v1166 = vadd.f32 %v725, %v1165
      %1167 = vmatmul.bf16.gmra.mxu0 %v1129
      %v1168 = vpop.f32.mrf.mxu0
      %v1169 = vadd.f32 %v726, %v1168
      %v1170 = vpop.f32.mrf.mxu0
      %v1171 = vadd.f32 %v727, %v1170
      %1172 = vmatmul.bf16.gmra.mxu0 %v1132
      %v1173 = vpop.f32.mrf.mxu0
      %v1174 = vadd.f32 %v728, %v1173
      %v1175 = vpop.f32.mrf.mxu0
      %v1176 = vadd.f32 %v729, %v1175
      %1177 = vmatmul.bf16.gmra.mxu0 %v1135
      %v1178 = vpop.f32.mrf.mxu0
      %v1179 = vadd.f32 %v730, %v1178
      %v1180 = vpop.f32.mrf.mxu0
      %v1181 = vadd.f32 %v731, %v1180
      %1182 = vmatmul.bf16.gmra.mxu0 %v1138
      %v1183 = vpop.f32.mrf.mxu0
      %v1184 = vadd.f32 %v732, %v1183
      %v1185 = vpop.f32.mrf.mxu0
      %v1186 = vadd.f32 %v733, %v1185
      %1187 = vmatmul.bf16.gmra.mxu0 %v1141
      %v1188 = vpop.f32.mrf.mxu0
      %v1189 = vadd.f32 %v734, %v1188
      %v1190 = vpop.f32.mrf.mxu0
      %v1191 = vadd.f32 %v735, %v1190
      %1192 = vmatmul.bf16.gmra.mxu0 %v1144
      %v1193 = vpop.f32.mrf.mxu0
      %v1194 = vadd.f32 %v736, %v1193
      %v1195 = vpop.f32.mrf.mxu0
      %v1196 = vadd.f32 %v737, %v1195
      %1197 = vdwg.mxu0
      %1198 = vxpose.xlu0.c.b16.start [1/8] %v679, 128
      %1199 = vxpose.xlu0.c.b16.cont [2/8] 0, 128
      %1200 = vxpose.xlu0.c.b16.cont [3/8] 0, 128
      %1201 = vxpose.xlu0.c.b16.cont [4/8] 0, 128
      %1202 = vxpose.xlu0.c.b16.cont [5/8] 0, 128
      %1203 = vxpose.xlu0.c.b16.cont [6/8] 0, 128
      %1204 = vxpose.xlu0.c.b16.cont [7/8] 0, 128
      %1205 = vxpose.xlu0.c.b16.end [8/8] 0, 128
      %v1206 = vpop.trf.xlu0
      %v1207 = vpop.trf.xlu0
      %v1208 = vpop.trf.xlu0
      %v1209 = vpop.trf.xlu0
      %v1210 = vpop.trf.xlu0
      %v1211 = vpop.trf.xlu0
      %v1212 = vpop.trf.xlu0
      %v1213 = vpop.trf.xlu0
      %v1215 = vsel %vm440, %v1206, 0
      %v1218 = vsel %vm440, %v1207, 0
      %v1221 = vsel %vm440, %v1208, 0
      %v1224 = vsel %vm440, %v1209, 0
      %v1227 = vsel %vm440, %v1210, 0
      %v1230 = vsel %vm440, %v1211, 0
      %v1233 = vsel %vm440, %v1212, 0
      %v1236 = vsel %vm440, %v1213, 0
      %v1239 = vsel %vm447, %v699, 0
      %1241 = vmatpush.bf16.msra.mxu0 0
      %1242 = vmatpush.bf16.msra.mxu0 0
      %1243 = vmatpush.bf16.msra.mxu0 0
      %1244 = vmatpush.bf16.msra.mxu0 0
      %1245 = vmatpush.bf16.msra.mxu0 0
      %1246 = vmatpush.bf16.msra.mxu0 0
      %1247 = vmatpush.bf16.msra.mxu0 0
      %1248 = vmatpush.bf16.msra.mxu0 %v1239
      %1249 = vmatmul.bf16.gmra.mxu0 %v1215
      %v1250 = vpop.f32.mrf.mxu0
      %v1251 = vadd.f32 %v722, %v1250
      %v1252 = vpop.f32.mrf.mxu0
      %v1253 = vadd.f32 %v723, %v1252
      %1254 = vmatmul.bf16.gmra.mxu0 %v1218
      %v1255 = vpop.f32.mrf.mxu0
      %v1256 = vadd.f32 %v724, %v1255
      %v1257 = vpop.f32.mrf.mxu0
      %v1258 = vadd.f32 %v725, %v1257
      %1259 = vmatmul.bf16.gmra.mxu0 %v1221
      %v1260 = vpop.f32.mrf.mxu0
      %v1261 = vadd.f32 %v726, %v1260
      %v1262 = vpop.f32.mrf.mxu0
      %v1263 = vadd.f32 %v727, %v1262
      %1264 = vmatmul.bf16.gmra.mxu0 %v1224
      %v1265 = vpop.f32.mrf.mxu0
      %v1266 = vadd.f32 %v728, %v1265
      %v1267 = vpop.f32.mrf.mxu0
      %v1268 = vadd.f32 %v729, %v1267
      %1269 = vmatmul.bf16.gmra.mxu0 %v1227
      %v1270 = vpop.f32.mrf.mxu0
      %v1271 = vadd.f32 %v730, %v1270
      %v1272 = vpop.f32.mrf.mxu0
      %v1273 = vadd.f32 %v731, %v1272
      %1274 = vmatmul.bf16.gmra.mxu0 %v1230
      %v1275 = vpop.f32.mrf.mxu0
      %v1276 = vadd.f32 %v732, %v1275
      %v1277 = vpop.f32.mrf.mxu0
      %v1278 = vadd.f32 %v733, %v1277
      %1279 = vmatmul.bf16.gmra.mxu0 %v1233
      %v1280 = vpop.f32.mrf.mxu0
      %v1281 = vadd.f32 %v734, %v1280
      %v1282 = vpop.f32.mrf.mxu0
      %v1283 = vadd.f32 %v735, %v1282
      %1284 = vmatmul.bf16.gmra.mxu0 %v1236
      %v1285 = vpop.f32.mrf.mxu0
      %v1286 = vadd.f32 %v736, %v1285
      %v1287 = vpop.f32.mrf.mxu0
      %v1288 = vadd.f32 %v737, %v1287
      %1289 = vdwg.mxu0
      %1290 = vxpose.xlu0.c.b16.start [1/8] %v680, 128
      %1291 = vxpose.xlu0.c.b16.cont [2/8] 0, 128
      %1292 = vxpose.xlu0.c.b16.cont [3/8] 0, 128
      %1293 = vxpose.xlu0.c.b16.cont [4/8] 0, 128
      %1294 = vxpose.xlu0.c.b16.cont [5/8] 0, 128
      %1295 = vxpose.xlu0.c.b16.cont [6/8] 0, 128
      %1296 = vxpose.xlu0.c.b16.cont [7/8] 0, 128
      %1297 = vxpose.xlu0.c.b16.end [8/8] 0, 128
      %v1298 = vpop.trf.xlu0
      %v1299 = vpop.trf.xlu0
      %v1300 = vpop.trf.xlu0
      %v1301 = vpop.trf.xlu0
      %v1302 = vpop.trf.xlu0
      %v1303 = vpop.trf.xlu0
      %v1304 = vpop.trf.xlu0
      %v1305 = vpop.trf.xlu0
      %v1307 = vsel %vm440, %v1298, 0
      %v1310 = vsel %vm440, %v1299, 0
      %v1313 = vsel %vm440, %v1300, 0
      %v1316 = vsel %vm440, %v1301, 0
      %v1319 = vsel %vm440, %v1302, 0
      %v1322 = vsel %vm440, %v1303, 0
      %v1325 = vsel %vm440, %v1304, 0
      %v1328 = vsel %vm440, %v1305, 0
      %v1331 = vsel %vm447, %v700, 0
      %1333 = vmatpush.bf16.msra.mxu0 0
      %1334 = vmatpush.bf16.msra.mxu0 0
      %1335 = vmatpush.bf16.msra.mxu0 0
      %1336 = vmatpush.bf16.msra.mxu0 0
      %1337 = vmatpush.bf16.msra.mxu0 0
      %1338 = vmatpush.bf16.msra.mxu0 0
      %1339 = vmatpush.bf16.msra.mxu0 0
      %1340 = vmatpush.bf16.msra.mxu0 %v1331
      %1341 = vmatmul.bf16.gmra.mxu0 %v1307
      %v1342 = vpop.f32.mrf.mxu0
      %v1343 = vadd.f32 %v722, %v1342
      %v1344 = vpop.f32.mrf.mxu0
      %v1345 = vadd.f32 %v723, %v1344
      %1346 = vmatmul.bf16.gmra.mxu0 %v1310
      %v1347 = vpop.f32.mrf.mxu0
      %v1348 = vadd.f32 %v724, %v1347
      %v1349 = vpop.f32.mrf.mxu0
      %v1350 = vadd.f32 %v725, %v1349
      %1351 = vmatmul.bf16.gmra.mxu0 %v1313
      %v1352 = vpop.f32.mrf.mxu0
      %v1353 = vadd.f32 %v726, %v1352
      %v1354 = vpop.f32.mrf.mxu0
      %v1355 = vadd.f32 %v727, %v1354
      %1356 = vmatmul.bf16.gmra.mxu0 %v1316
      %v1357 = vpop.f32.mrf.mxu0
      %v1358 = vadd.f32 %v728, %v1357
      %v1359 = vpop.f32.mrf.mxu0
      %v1360 = vadd.f32 %v729, %v1359
      %1361 = vmatmul.bf16.gmra.mxu0 %v1319
      %v1362 = vpop.f32.mrf.mxu0
      %v1363 = vadd.f32 %v730, %v1362
      %v1364 = vpop.f32.mrf.mxu0
      %v1365 = vadd.f32 %v731, %v1364
      %1366 = vmatmul.bf16.gmra.mxu0 %v1322
      %v1367 = vpop.f32.mrf.mxu0
      %v1368 = vadd.f32 %v732, %v1367
      %v1369 = vpop.f32.mrf.mxu0
      %v1370 = vadd.f32 %v733, %v1369
      %1371 = vmatmul.bf16.gmra.mxu0 %v1325
      %v1372 = vpop.f32.mrf.mxu0
      %v1373 = vadd.f32 %v734, %v1372
      %v1374 = vpop.f32.mrf.mxu0
      %v1375 = vadd.f32 %v735, %v1374
      %1376 = vmatmul.bf16.gmra.mxu0 %v1328
      %v1377 = vpop.f32.mrf.mxu0
      %v1378 = vadd.f32 %v736, %v1377
      %v1379 = vpop.f32.mrf.mxu0
      %v1380 = vadd.f32 %v737, %v1379
      %1381 = vdwg.mxu0
      %1382 = vxpose.xlu0.c.b16.start [1/8] %v681, 128
      %1383 = vxpose.xlu0.c.b16.cont [2/8] 0, 128
      %1384 = vxpose.xlu0.c.b16.cont [3/8] 0, 128
      %1385 = vxpose.xlu0.c.b16.cont [4/8] 0, 128
      %1386 = vxpose.xlu0.c.b16.cont [5/8] 0, 128
      %1387 = vxpose.xlu0.c.b16.cont [6/8] 0, 128
      %1388 = vxpose.xlu0.c.b16.cont [7/8] 0, 128
      %1389 = vxpose.xlu0.c.b16.end [8/8] 0, 128
      %v1390 = vpop.trf.xlu0
      %v1391 = vpop.trf.xlu0
      %v1392 = vpop.trf.xlu0
      %v1393 = vpop.trf.xlu0
      %v1394 = vpop.trf.xlu0
      %v1395 = vpop.trf.xlu0
      %v1396 = vpop.trf.xlu0
      %v1397 = vpop.trf.xlu0
      %v1399 = vsel %vm440, %v1390, 0
      %v1402 = vsel %vm440, %v1391, 0
      %v1405 = vsel %vm440, %v1392, 0
      %v1408 = vsel %vm440, %v1393, 0
      %v1411 = vsel %vm440, %v1394, 0
      %v1414 = vsel %vm440, %v1395, 0
      %v1417 = vsel %vm440, %v1396, 0
      %v1420 = vsel %vm440, %v1397, 0
      %v1423 = vsel %vm447, %v701, 0
      %1425 = vmatpush.bf16.msra.mxu0 0
      %1426 = vmatpush.bf16.msra.mxu0 0
      %1427 = vmatpush.bf16.msra.mxu0 0
      %1428 = vmatpush.bf16.msra.mxu0 0
      %1429 = vmatpush.bf16.msra.mxu0 0
      %1430 = vmatpush.bf16.msra.mxu0 0
      %1431 = vmatpush.bf16.msra.mxu0 0
      %1432 = vmatpush.bf16.msra.mxu0 %v1423
      %1433 = vmatmul.bf16.gmra.mxu0 %v1399
      %v1434 = vpop.f32.mrf.mxu0
      %v1435 = vadd.f32 %v722, %v1434
      %v1436 = vpop.f32.mrf.mxu0
      %v1437 = vadd.f32 %v723, %v1436
      %1438 = vmatmul.bf16.gmra.mxu0 %v1402
      %v1439 = vpop.f32.mrf.mxu0
      %v1440 = vadd.f32 %v724, %v1439
      %v1441 = vpop.f32.mrf.mxu0
      %v1442 = vadd.f32 %v725, %v1441
      %1443 = vmatmul.bf16.gmra.mxu0 %v1405
      %v1444 = vpop.f32.mrf.mxu0
      %v1445 = vadd.f32 %v726, %v1444
      %v1446 = vpop.f32.mrf.mxu0
      %v1447 = vadd.f32 %v727, %v1446
      %1448 = vmatmul.bf16.gmra.mxu0 %v1408
      %v1449 = vpop.f32.mrf.mxu0
      %v1450 = vadd.f32 %v728, %v1449
      %v1451 = vpop.f32.mrf.mxu0
      %v1452 = vadd.f32 %v729, %v1451
      %1453 = vmatmul.bf16.gmra.mxu0 %v1411
      %v1454 = vpop.f32.mrf.mxu0
      %v1455 = vadd.f32 %v730, %v1454
      %v1456 = vpop.f32.mrf.mxu0
      %v1457 = vadd.f32 %v731, %v1456
      %1458 = vmatmul.bf16.gmra.mxu0 %v1414
      %v1459 = vpop.f32.mrf.mxu0
      %v1460 = vadd.f32 %v732, %v1459
      %v1461 = vpop.f32.mrf.mxu0
      %v1462 = vadd.f32 %v733, %v1461
      %1463 = vmatmul.bf16.gmra.mxu0 %v1417
      %v1464 = vpop.f32.mrf.mxu0
      %v1465 = vadd.f32 %v734, %v1464
      %v1466 = vpop.f32.mrf.mxu0
      %v1467 = vadd.f32 %v735, %v1466
      %1468 = vmatmul.bf16.gmra.mxu0 %v1420
      %v1469 = vpop.f32.mrf.mxu0
      %v1470 = vadd.f32 %v736, %v1469
      %v1471 = vpop.f32.mrf.mxu0
      %v1472 = vadd.f32 %v737, %v1471
      %1473 = vdwg.mxu0
      %1474 = vmax.xlane.f32.xlu0 %v791
      %v1475 = vpop.xlane.xlu0 %1474
      %1476 = vmax.xlane.f32.xlu0 %v793
      %v1477 = vpop.xlane.xlu0 %1476
      %1478 = vmax.xlane.f32.xlu0 %v796
      %v1479 = vpop.xlane.xlu0 %1478
      %1480 = vmax.xlane.f32.xlu0 %v798
      %v1481 = vpop.xlane.xlu0 %1480
      %1482 = vmax.xlane.f32.xlu0 %v801
      %v1483 = vpop.xlane.xlu0 %1482
      %1484 = vmax.xlane.f32.xlu0 %v803
      %v1485 = vpop.xlane.xlu0 %1484
      %1486 = vmax.xlane.f32.xlu0 %v806
      %v1487 = vpop.xlane.xlu0 %1486
      %1488 = vmax.xlane.f32.xlu0 %v808
      %v1489 = vpop.xlane.xlu0 %1488
      %1490 = vmax.xlane.f32.xlu0 %v811
      %v1491 = vpop.xlane.xlu0 %1490
      %1492 = vmax.xlane.f32.xlu0 %v813
      %v1493 = vpop.xlane.xlu0 %1492
      %1494 = vmax.xlane.f32.xlu0 %v816
      %v1495 = vpop.xlane.xlu0 %1494
      %1496 = vmax.xlane.f32.xlu0 %v818
      %v1497 = vpop.xlane.xlu0 %1496
      %1498 = vmax.xlane.f32.xlu0 %v821
      %v1499 = vpop.xlane.xlu0 %1498
      %1500 = vmax.xlane.f32.xlu0 %v823
      %v1501 = vpop.xlane.xlu0 %1500
      %1502 = vmax.xlane.f32.xlu0 %v826
      %v1503 = vpop.xlane.xlu0 %1502
      %1504 = vmax.xlane.f32.xlu0 %v828
      %v1505 = vpop.xlane.xlu0 %1504
      %1506 = vmax.xlane.f32.xlu0 %v883
      %v1507 = vpop.xlane.xlu0 %1506
      %1508 = vmax.xlane.f32.xlu0 %v885
      %v1509 = vpop.xlane.xlu0 %1508
      %1510 = vmax.xlane.f32.xlu0 %v888
      %v1511 = vpop.xlane.xlu0 %1510
      %1512 = vmax.xlane.f32.xlu0 %v890
      %v1513 = vpop.xlane.xlu0 %1512
      %1514 = vmax.xlane.f32.xlu0 %v893
      %v1515 = vpop.xlane.xlu0 %1514
      %1516 = vmax.xlane.f32.xlu0 %v895
      %v1517 = vpop.xlane.xlu0 %1516
      %1518 = vmax.xlane.f32.xlu0 %v898
      %v1519 = vpop.xlane.xlu0 %1518
      %1520 = vmax.xlane.f32.xlu0 %v900
      %v1521 = vpop.xlane.xlu0 %1520
      %1522 = vmax.xlane.f32.xlu0 %v903
      %v1523 = vpop.xlane.xlu0 %1522
      %1524 = vmax.xlane.f32.xlu0 %v905
      %v1525 = vpop.xlane.xlu0 %1524
      %1526 = vmax.xlane.f32.xlu0 %v908
      %v1527 = vpop.xlane.xlu0 %1526
      %1528 = vmax.xlane.f32.xlu0 %v910
      %v1529 = vpop.xlane.xlu0 %1528
      %1530 = vmax.xlane.f32.xlu0 %v913
      %v1531 = vpop.xlane.xlu0 %1530
      %1532 = vmax.xlane.f32.xlu0 %v915
      %v1533 = vpop.xlane.xlu0 %1532
      %1534 = vmax.xlane.f32.xlu0 %v918
      %v1535 = vpop.xlane.xlu0 %1534
      %1536 = vmax.xlane.f32.xlu0 %v920
      %v1537 = vpop.xlane.xlu0 %1536
      %1538 = vmax.xlane.f32.xlu0 %v975
      %v1539 = vpop.xlane.xlu0 %1538
      %1540 = vmax.xlane.f32.xlu0 %v977
      %v1541 = vpop.xlane.xlu0 %1540
      %1542 = vmax.xlane.f32.xlu0 %v980
      %v1543 = vpop.xlane.xlu0 %1542
      %1544 = vmax.xlane.f32.xlu0 %v982
      %v1545 = vpop.xlane.xlu0 %1544
      %1546 = vmax.xlane.f32.xlu0 %v985
      %v1547 = vpop.xlane.xlu0 %1546
      %1548 = vmax.xlane.f32.xlu0 %v987
      %v1549 = vpop.xlane.xlu0 %1548
      %1550 = vmax.xlane.f32.xlu0 %v990
      %v1551 = vpop.xlane.xlu0 %1550
      %1552 = vmax.xlane.f32.xlu0 %v992
      %v1553 = vpop.xlane.xlu0 %1552
      %1554 = vmax.xlane.f32.xlu0 %v995
      %v1555 = vpop.xlane.xlu0 %1554
      %1556 = vmax.xlane.f32.xlu0 %v997
      %v1557 = vpop.xlane.xlu0 %1556
      %1558 = vmax.xlane.f32.xlu0 %v1000
      %v1559 = vpop.xlane.xlu0 %1558
      %1560 = vmax.xlane.f32.xlu0 %v1002
      %v1561 = vpop.xlane.xlu0 %1560
      %1562 = vmax.xlane.f32.xlu0 %v1005
      %v1563 = vpop.xlane.xlu0 %1562
      %1564 = vmax.xlane.f32.xlu0 %v1007
      %v1565 = vpop.xlane.xlu0 %1564
      %1566 = vmax.xlane.f32.xlu0 %v1010
      %v1567 = vpop.xlane.xlu0 %1566
      %1568 = vmax.xlane.f32.xlu0 %v1012
      %v1569 = vpop.xlane.xlu0 %1568
      %1570 = vmax.xlane.f32.xlu0 %v1067
      %v1571 = vpop.xlane.xlu0 %1570
      %1572 = vmax.xlane.f32.xlu0 %v1069
      %v1573 = vpop.xlane.xlu0 %1572
      %1574 = vmax.xlane.f32.xlu0 %v1072
      %v1575 = vpop.xlane.xlu0 %1574
      %1576 = vmax.xlane.f32.xlu0 %v1074
      %v1577 = vpop.xlane.xlu0 %1576
      %1578 = vmax.xlane.f32.xlu0 %v1077
      %v1579 = vpop.xlane.xlu0 %1578
      %1580 = vmax.xlane.f32.xlu0 %v1079
      %v1581 = vpop.xlane.xlu0 %1580
      %1582 = vmax.xlane.f32.xlu0 %v1082
      %v1583 = vpop.xlane.xlu0 %1582
      %1584 = vmax.xlane.f32.xlu0 %v1084
      %v1585 = vpop.xlane.xlu0 %1584
      %1586 = vmax.xlane.f32.xlu0 %v1087
      %v1587 = vpop.xlane.xlu0 %1586
      %1588 = vmax.xlane.f32.xlu0 %v1089
      %v1589 = vpop.xlane.xlu0 %1588
      %1590 = vmax.xlane.f32.xlu0 %v1092
      %v1591 = vpop.xlane.xlu0 %1590
      %1592 = vmax.xlane.f32.xlu0 %v1094
      %v1593 = vpop.xlane.xlu0 %1592
      %1594 = vmax.xlane.f32.xlu0 %v1097
      %v1595 = vpop.xlane.xlu0 %1594
      %1596 = vmax.xlane.f32.xlu0 %v1099
      %v1597 = vpop.xlane.xlu0 %1596
      %1598 = vmax.xlane.f32.xlu0 %v1102
      %v1599 = vpop.xlane.xlu0 %1598
      %1600 = vmax.xlane.f32.xlu0 %v1104
      %v1601 = vpop.xlane.xlu0 %1600
      %1602 = vmax.xlane.f32.xlu0 %v1159
      %v1603 = vpop.xlane.xlu0 %1602
      %1604 = vmax.xlane.f32.xlu0 %v1161
      %v1605 = vpop.xlane.xlu0 %1604
      %1606 = vmax.xlane.f32.xlu0 %v1164
      %v1607 = vpop.xlane.xlu0 %1606
      %1608 = vmax.xlane.f32.xlu0 %v1166
      %v1609 = vpop.xlane.xlu0 %1608
      %1610 = vmax.xlane.f32.xlu0 %v1169
      %v1611 = vpop.xlane.xlu0 %1610
      %1612 = vmax.xlane.f32.xlu0 %v1171
      %v1613 = vpop.xlane.xlu0 %1612
      %1614 = vmax.xlane.f32.xlu0 %v1174
      %v1615 = vpop.xlane.xlu0 %1614
      %1616 = vmax.xlane.f32.xlu0 %v1176
      %v1617 = vpop.xlane.xlu0 %1616
      %1618 = vmax.xlane.f32.xlu0 %v1179
      %v1619 = vpop.xlane.xlu0 %1618
      %1620 = vmax.xlane.f32.xlu0 %v1181
      %v1621 = vpop.xlane.xlu0 %1620
      %1622 = vmax.xlane.f32.xlu0 %v1184
      %v1623 = vpop.xlane.xlu0 %1622
      %1624 = vmax.xlane.f32.xlu0 %v1186
      %v1625 = vpop.xlane.xlu0 %1624
      %1626 = vmax.xlane.f32.xlu0 %v1189
      %v1627 = vpop.xlane.xlu0 %1626
      %1628 = vmax.xlane.f32.xlu0 %v1191
      %v1629 = vpop.xlane.xlu0 %1628
      %1630 = vmax.xlane.f32.xlu0 %v1194
      %v1631 = vpop.xlane.xlu0 %1630
      %1632 = vmax.xlane.f32.xlu0 %v1196
      %v1633 = vpop.xlane.xlu0 %1632
      %1634 = vmax.xlane.f32.xlu0 %v1251
      %v1635 = vpop.xlane.xlu0 %1634
      %1636 = vmax.xlane.f32.xlu0 %v1253
      %v1637 = vpop.xlane.xlu0 %1636
      %1638 = vmax.xlane.f32.xlu0 %v1256
      %v1639 = vpop.xlane.xlu0 %1638
      %1640 = vmax.xlane.f32.xlu0 %v1258
      %v1641 = vpop.xlane.xlu0 %1640
      %1642 = vmax.xlane.f32.xlu0 %v1261
      %v1643 = vpop.xlane.xlu0 %1642
      %1644 = vmax.xlane.f32.xlu0 %v1263
      %v1645 = vpop.xlane.xlu0 %1644
      %1646 = vmax.xlane.f32.xlu0 %v1266
      %v1647 = vpop.xlane.xlu0 %1646
      %1648 = vmax.xlane.f32.xlu0 %v1268
      %v1649 = vpop.xlane.xlu0 %1648
      %1650 = vmax.xlane.f32.xlu0 %v1271
      %v1651 = vpop.xlane.xlu0 %1650
      %1652 = vmax.xlane.f32.xlu0 %v1273
      %v1653 = vpop.xlane.xlu0 %1652
      %1654 = vmax.xlane.f32.xlu0 %v1276
      %v1655 = vpop.xlane.xlu0 %1654
      %1656 = vmax.xlane.f32.xlu0 %v1278
      %v1657 = vpop.xlane.xlu0 %1656
      %1658 = vmax.xlane.f32.xlu0 %v1281
      %v1659 = vpop.xlane.xlu0 %1658
      %1660 = vmax.xlane.f32.xlu0 %v1283
      %v1661 = vpop.xlane.xlu0 %1660
      %1662 = vmax.xlane.f32.xlu0 %v1286
      %v1663 = vpop.xlane.xlu0 %1662
      %1664 = vmax.xlane.f32.xlu0 %v1288
      %v1665 = vpop.xlane.xlu0 %1664
      %1666 = vmax.xlane.f32.xlu0 %v1343
      %v1667 = vpop.xlane.xlu0 %1666
      %1668 = vmax.xlane.f32.xlu0 %v1345
      %v1669 = vpop.xlane.xlu0 %1668
      %1670 = vmax.xlane.f32.xlu0 %v1348
      %v1671 = vpop.xlane.xlu0 %1670
      %1672 = vmax.xlane.f32.xlu0 %v1350
      %v1673 = vpop.xlane.xlu0 %1672
      %1674 = vmax.xlane.f32.xlu0 %v1353
      %v1675 = vpop.xlane.xlu0 %1674
      %1676 = vmax.xlane.f32.xlu0 %v1355
      %v1677 = vpop.xlane.xlu0 %1676
      %1678 = vmax.xlane.f32.xlu0 %v1358
      %v1679 = vpop.xlane.xlu0 %1678
      %1680 = vmax.xlane.f32.xlu0 %v1360
      %v1681 = vpop.xlane.xlu0 %1680
      %1682 = vmax.xlane.f32.xlu0 %v1363
      %v1683 = vpop.xlane.xlu0 %1682
      %1684 = vmax.xlane.f32.xlu0 %v1365
      %v1685 = vpop.xlane.xlu0 %1684
      %1686 = vmax.xlane.f32.xlu0 %v1368
      %v1687 = vpop.xlane.xlu0 %1686
      %1688 = vmax.xlane.f32.xlu0 %v1370
      %v1689 = vpop.xlane.xlu0 %1688
      %1690 = vmax.xlane.f32.xlu0 %v1373
      %v1691 = vpop.xlane.xlu0 %1690
      %1692 = vmax.xlane.f32.xlu0 %v1375
      %v1693 = vpop.xlane.xlu0 %1692
      %1694 = vmax.xlane.f32.xlu0 %v1378
      %v1695 = vpop.xlane.xlu0 %1694
      %1696 = vmax.xlane.f32.xlu0 %v1380
      %v1697 = vpop.xlane.xlu0 %1696
      %1698 = vmax.xlane.f32.xlu0 %v1435
      %v1699 = vpop.xlane.xlu0 %1698
      %1700 = vmax.xlane.f32.xlu0 %v1437
      %v1701 = vpop.xlane.xlu0 %1700
      %1702 = vmax.xlane.f32.xlu0 %v1440
      %v1703 = vpop.xlane.xlu0 %1702
      %1704 = vmax.xlane.f32.xlu0 %v1442
      %v1705 = vpop.xlane.xlu0 %1704
      %1706 = vmax.xlane.f32.xlu0 %v1445
      %v1707 = vpop.xlane.xlu0 %1706
      %1708 = vmax.xlane.f32.xlu0 %v1447
      %v1709 = vpop.xlane.xlu0 %1708
      %1710 = vmax.xlane.f32.xlu0 %v1450
      %v1711 = vpop.xlane.xlu0 %1710
      %1712 = vmax.xlane.f32.xlu0 %v1452
      %v1713 = vpop.xlane.xlu0 %1712
      %1714 = vmax.xlane.f32.xlu0 %v1455
      %v1715 = vpop.xlane.xlu0 %1714
      %1716 = vmax.xlane.f32.xlu0 %v1457
      %v1717 = vpop.xlane.xlu0 %1716
      %1718 = vmax.xlane.f32.xlu0 %v1460
      %v1719 = vpop.xlane.xlu0 %1718
      %1720 = vmax.xlane.f32.xlu0 %v1462
      %v1721 = vpop.xlane.xlu0 %1720
      %1722 = vmax.xlane.f32.xlu0 %v1465
      %v1723 = vpop.xlane.xlu0 %1722
      %1724 = vmax.xlane.f32.xlu0 %v1467
      %v1725 = vpop.xlane.xlu0 %1724
      %1726 = vmax.xlane.f32.xlu0 %v1470
      %v1727 = vpop.xlane.xlu0 %1726
      %1728 = vmax.xlane.f32.xlu0 %v1472
      %v1729 = vpop.xlane.xlu0 %1728
      %v1730 = vsub.f32 %v791, %v1475
      %v1731 = vsub.f32 %v793, %v1477
      %v1732 = vsub.f32 %v796, %v1479
      %v1733 = vsub.f32 %v798, %v1481
      %v1734 = vsub.f32 %v801, %v1483
      %v1735 = vsub.f32 %v803, %v1485
      %v1736 = vsub.f32 %v806, %v1487
      %v1737 = vsub.f32 %v808, %v1489
      %v1738 = vsub.f32 %v811, %v1491
      %v1739 = vsub.f32 %v813, %v1493
      %v1740 = vsub.f32 %v816, %v1495
      %v1741 = vsub.f32 %v818, %v1497
      %v1742 = vsub.f32 %v821, %v1499
      %v1743 = vsub.f32 %v823, %v1501
      %v1744 = vsub.f32 %v826, %v1503
      %v1745 = vsub.f32 %v828, %v1505
      %v1746 = vsub.f32 %v883, %v1507
      %v1747 = vsub.f32 %v885, %v1509
      %v1748 = vsub.f32 %v888, %v1511
      %v1749 = vsub.f32 %v890, %v1513
      %v1750 = vsub.f32 %v893, %v1515
      %v1751 = vsub.f32 %v895, %v1517
      %v1752 = vsub.f32 %v898, %v1519
      %v1753 = vsub.f32 %v900, %v1521
      %v1754 = vsub.f32 %v903, %v1523
      %v1755 = vsub.f32 %v905, %v1525
      %v1756 = vsub.f32 %v908, %v1527
      %v1757 = vsub.f32 %v910, %v1529
      %v1758 = vsub.f32 %v913, %v1531
      %v1759 = vsub.f32 %v915, %v1533
      %v1760 = vsub.f32 %v918, %v1535
      %v1761 = vsub.f32 %v920, %v1537
      %v1762 = vsub.f32 %v975, %v1539
      %v1763 = vsub.f32 %v977, %v1541
      %v1764 = vsub.f32 %v980, %v1543
      %v1765 = vsub.f32 %v982, %v1545
      %v1766 = vsub.f32 %v985, %v1547
      %v1767 = vsub.f32 %v987, %v1549
      %v1768 = vsub.f32 %v990, %v1551
      %v1769 = vsub.f32 %v992, %v1553
      %v1770 = vsub.f32 %v995, %v1555
      %v1771 = vsub.f32 %v997, %v1557
      %v1772 = vsub.f32 %v1000, %v1559
      %v1773 = vsub.f32 %v1002, %v1561
      %v1774 = vsub.f32 %v1005, %v1563
      %v1775 = vsub.f32 %v1007, %v1565
      %v1776 = vsub.f32 %v1010, %v1567
      %v1777 = vsub.f32 %v1012, %v1569
      %v1778 = vsub.f32 %v1067, %v1571
      %v1779 = vsub.f32 %v1069, %v1573
      %v1780 = vsub.f32 %v1072, %v1575
      %v1781 = vsub.f32 %v1074, %v1577
      %v1782 = vsub.f32 %v1077, %v1579
      %v1783 = vsub.f32 %v1079, %v1581
      %v1784 = vsub.f32 %v1082, %v1583
      %v1785 = vsub.f32 %v1084, %v1585
      %v1786 = vsub.f32 %v1087, %v1587
      %v1787 = vsub.f32 %v1089, %v1589
      %v1788 = vsub.f32 %v1092, %v1591
      %v1789 = vsub.f32 %v1094, %v1593
      %v1790 = vsub.f32 %v1097, %v1595
      %v1791 = vsub.f32 %v1099, %v1597
      %v1792 = vsub.f32 %v1102, %v1599
      %v1793 = vsub.f32 %v1104, %v1601
      %v1794 = vsub.f32 %v1159, %v1603
      %v1795 = vsub.f32 %v1161, %v1605
      %v1796 = vsub.f32 %v1164, %v1607
      %v1797 = vsub.f32 %v1166, %v1609
      %v1798 = vsub.f32 %v1169, %v1611
      %v1799 = vsub.f32 %v1171, %v1613
      %v1800 = vsub.f32 %v1174, %v1615
      %v1801 = vsub.f32 %v1176, %v1617
      %v1802 = vsub.f32 %v1179, %v1619
      %v1803 = vsub.f32 %v1181, %v1621
      %v1804 = vsub.f32 %v1184, %v1623
      %v1805 = vsub.f32 %v1186, %v1625
      %v1806 = vsub.f32 %v1189, %v1627
      %v1807 = vsub.f32 %v1191, %v1629
      %v1808 = vsub.f32 %v1194, %v1631
      %v1809 = vsub.f32 %v1196, %v1633
      %v1810 = vsub.f32 %v1251, %v1635
      %v1811 = vsub.f32 %v1253, %v1637
      %v1812 = vsub.f32 %v1256, %v1639
      %v1813 = vsub.f32 %v1258, %v1641
      %v1814 = vsub.f32 %v1261, %v1643
      %v1815 = vsub.f32 %v1263, %v1645
      %v1816 = vsub.f32 %v1266, %v1647
      %v1817 = vsub.f32 %v1268, %v1649
      %v1818 = vsub.f32 %v1271, %v1651
      %v1819 = vsub.f32 %v1273, %v1653
      %v1820 = vsub.f32 %v1276, %v1655
      %v1821 = vsub.f32 %v1278, %v1657
      %v1822 = vsub.f32 %v1281, %v1659
      %v1823 = vsub.f32 %v1283, %v1661
      %v1824 = vsub.f32 %v1286, %v1663
      %v1825 = vsub.f32 %v1288, %v1665
      %v1826 = vsub.f32 %v1343, %v1667
      %v1827 = vsub.f32 %v1345, %v1669
      %v1828 = vsub.f32 %v1348, %v1671
      %v1829 = vsub.f32 %v1350, %v1673
      %v1830 = vsub.f32 %v1353, %v1675
      %v1831 = vsub.f32 %v1355, %v1677
      %v1832 = vsub.f32 %v1358, %v1679
      %v1833 = vsub.f32 %v1360, %v1681
      %v1834 = vsub.f32 %v1363, %v1683
      %v1835 = vsub.f32 %v1365, %v1685
      %v1836 = vsub.f32 %v1368, %v1687
      %v1837 = vsub.f32 %v1370, %v1689
      %v1838 = vsub.f32 %v1373, %v1691
      %v1839 = vsub.f32 %v1375, %v1693
      %v1840 = vsub.f32 %v1378, %v1695
      %v1841 = vsub.f32 %v1380, %v1697
      %v1842 = vsub.f32 %v1435, %v1699
      %v1843 = vsub.f32 %v1437, %v1701
      %v1844 = vsub.f32 %v1440, %v1703
      %v1845 = vsub.f32 %v1442, %v1705
      %v1846 = vsub.f32 %v1445, %v1707
      %v1847 = vsub.f32 %v1447, %v1709
      %v1848 = vsub.f32 %v1450, %v1711
      %v1849 = vsub.f32 %v1452, %v1713
      %v1850 = vsub.f32 %v1455, %v1715
      %v1851 = vsub.f32 %v1457, %v1717
      %v1852 = vsub.f32 %v1460, %v1719
      %v1853 = vsub.f32 %v1462, %v1721
      %v1854 = vsub.f32 %v1465, %v1723
      %v1855 = vsub.f32 %v1467, %v1725
      %v1856 = vsub.f32 %v1470, %v1727
      %v1857 = vsub.f32 %v1472, %v1729
      %v1858 = vmul.f32 %v1730, 1.442695
      %v1859 = vpow.pop %v1858
      %v1860 = vmul.f32 %v1731, 1.442695
      %v1861 = vpow.pop %v1860
      %v1862 = vmul.f32 %v1732, 1.442695
      %v1863 = vpow.pop %v1862
      %v1864 = vmul.f32 %v1733, 1.442695
      %v1865 = vpow.pop %v1864
      %v1866 = vmul.f32 %v1734, 1.442695
      %v1867 = vpow.pop %v1866
      %v1868 = vmul.f32 %v1735, 1.442695
      %v1869 = vpow.pop %v1868
      %v1870 = vmul.f32 %v1736, 1.442695
      %v1871 = vpow.pop %v1870
      %v1872 = vmul.f32 %v1737, 1.442695
      %v1873 = vpow.pop %v1872
      %v1874 = vmul.f32 %v1738, 1.442695
      %v1875 = vpow.pop %v1874
      %v1876 = vmul.f32 %v1739, 1.442695
      %v1877 = vpow.pop %v1876
      %v1878 = vmul.f32 %v1740, 1.442695
      %v1879 = vpow.pop %v1878
      %v1880 = vmul.f32 %v1741, 1.442695
      %v1881 = vpow.pop %v1880
      %v1882 = vmul.f32 %v1742, 1.442695
      %v1883 = vpow.pop %v1882
      %v1884 = vmul.f32 %v1743, 1.442695
      %v1885 = vpow.pop %v1884
      %v1886 = vmul.f32 %v1744, 1.442695
      %v1887 = vpow.pop %v1886
      %v1888 = vmul.f32 %v1745, 1.442695
      %v1889 = vpow.pop %v1888
      %v1890 = vmul.f32 %v1746, 1.442695
      %v1891 = vpow.pop %v1890
      %v1892 = vmul.f32 %v1747, 1.442695
      %v1893 = vpow.pop %v1892
      %v1894 = vmul.f32 %v1748, 1.442695
      %v1895 = vpow.pop %v1894
      %v1896 = vmul.f32 %v1749, 1.442695
      %v1897 = vpow.pop %v1896
      %v1898 = vmul.f32 %v1750, 1.442695
      %v1899 = vpow.pop %v1898
      %v1900 = vmul.f32 %v1751, 1.442695
      %v1901 = vpow.pop %v1900
      %v1902 = vmul.f32 %v1752, 1.442695
      %v1903 = vpow.pop %v1902
      %v1904 = vmul.f32 %v1753, 1.442695
      %v1905 = vpow.pop %v1904
      %v1906 = vmul.f32 %v1754, 1.442695
      %v1907 = vpow.pop %v1906
      %v1908 = vmul.f32 %v1755, 1.442695
      %v1909 = vpow.pop %v1908
      %v1910 = vmul.f32 %v1756, 1.442695
      %v1911 = vpow.pop %v1910
      %v1912 = vmul.f32 %v1757, 1.442695
      %v1913 = vpow.pop %v1912
      %v1914 = vmul.f32 %v1758, 1.442695
      %v1915 = vpow.pop %v1914
      %v1916 = vmul.f32 %v1759, 1.442695
      %v1917 = vpow.pop %v1916
      %v1918 = vmul.f32 %v1760, 1.442695
      %v1919 = vpow.pop %v1918
      %v1920 = vmul.f32 %v1761, 1.442695
      %v1921 = vpow.pop %v1920
      %v1922 = vmul.f32 %v1762, 1.442695
      %v1923 = vpow.pop %v1922
      %v1924 = vmul.f32 %v1763, 1.442695
      %v1925 = vpow.pop %v1924
      %v1926 = vmul.f32 %v1764, 1.442695
      %v1927 = vpow.pop %v1926
      %v1928 = vmul.f32 %v1765, 1.442695
      %v1929 = vpow.pop %v1928
      %v1930 = vmul.f32 %v1766, 1.442695
      %v1931 = vpow.pop %v1930
      %v1932 = vmul.f32 %v1767, 1.442695
      %v1933 = vpow.pop %v1932
      %v1934 = vmul.f32 %v1768, 1.442695
      %v1935 = vpow.pop %v1934
      %v1936 = vmul.f32 %v1769, 1.442695
      %v1937 = vpow.pop %v1936
      %v1938 = vmul.f32 %v1770, 1.442695
      %v1939 = vpow.pop %v1938
      %v1940 = vmul.f32 %v1771, 1.442695
      %v1941 = vpow.pop %v1940
      %v1942 = vmul.f32 %v1772, 1.442695
      %v1943 = vpow.pop %v1942
      %v1944 = vmul.f32 %v1773, 1.442695
      %v1945 = vpow.pop %v1944
      %v1946 = vmul.f32 %v1774, 1.442695
      %v1947 = vpow.pop %v1946
      %v1948 = vmul.f32 %v1775, 1.442695
      %v1949 = vpow.pop %v1948
      %v1950 = vmul.f32 %v1776, 1.442695
      %v1951 = vpow.pop %v1950
      %v1952 = vmul.f32 %v1777, 1.442695
      %v1953 = vpow.pop %v1952
      %v1954 = vmul.f32 %v1778, 1.442695
      %v1955 = vpow.pop %v1954
      %v1956 = vmul.f32 %v1779, 1.442695
      %v1957 = vpow.pop %v1956
      %v1958 = vmul.f32 %v1780, 1.442695
      %v1959 = vpow.pop %v1958
      %v1960 = vmul.f32 %v1781, 1.442695
      %v1961 = vpow.pop %v1960
      %v1962 = vmul.f32 %v1782, 1.442695
      %v1963 = vpow.pop %v1962
      %v1964 = vmul.f32 %v1783, 1.442695
      %v1965 = vpow.pop %v1964
      %v1966 = vmul.f32 %v1784, 1.442695
      %v1967 = vpow.pop %v1966
      %v1968 = vmul.f32 %v1785, 1.442695
      %v1969 = vpow.pop %v1968
      %v1970 = vmul.f32 %v1786, 1.442695
      %v1971 = vpow.pop %v1970
      %v1972 = vmul.f32 %v1787, 1.442695
      %v1973 = vpow.pop %v1972
      %v1974 = vmul.f32 %v1788, 1.442695
      %v1975 = vpow.pop %v1974
      %v1976 = vmul.f32 %v1789, 1.442695
      %v1977 = vpow.pop %v1976
      %v1978 = vmul.f32 %v1790, 1.442695
      %v1979 = vpow.pop %v1978
      %v1980 = vmul.f32 %v1791, 1.442695
      %v1981 = vpow.pop %v1980
      %v1982 = vmul.f32 %v1792, 1.442695
      %v1983 = vpow.pop %v1982
      %v1984 = vmul.f32 %v1793, 1.442695
      %v1985 = vpow.pop %v1984
      %v1986 = vmul.f32 %v1794, 1.442695
      %v1987 = vpow.pop %v1986
      %v1988 = vmul.f32 %v1795, 1.442695
      %v1989 = vpow.pop %v1988
      %v1990 = vmul.f32 %v1796, 1.442695
      %v1991 = vpow.pop %v1990
      %v1992 = vmul.f32 %v1797, 1.442695
      %v1993 = vpow.pop %v1992
      %v1994 = vmul.f32 %v1798, 1.442695
      %v1995 = vpow.pop %v1994
      %v1996 = vmul.f32 %v1799, 1.442695
      %v1997 = vpow.pop %v1996
      %v1998 = vmul.f32 %v1800, 1.442695
      %v1999 = vpow.pop %v1998
      %v2000 = vmul.f32 %v1801, 1.442695
      %v2001 = vpow.pop %v2000
      %v2002 = vmul.f32 %v1802, 1.442695
      %v2003 = vpow.pop %v2002
      %v2004 = vmul.f32 %v1803, 1.442695
      %v2005 = vpow.pop %v2004
      %v2006 = vmul.f32 %v1804, 1.442695
      %v2007 = vpow.pop %v2006
      %v2008 = vmul.f32 %v1805, 1.442695
      %v2009 = vpow.pop %v2008
      %v2010 = vmul.f32 %v1806, 1.442695
      %v2011 = vpow.pop %v2010
      %v2012 = vmul.f32 %v1807, 1.442695
      %v2013 = vpow.pop %v2012
      %v2014 = vmul.f32 %v1808, 1.442695
      %v2015 = vpow.pop %v2014
      %v2016 = vmul.f32 %v1809, 1.442695
      %v2017 = vpow.pop %v2016
      %v2018 = vmul.f32 %v1810, 1.442695
      %v2019 = vpow.pop %v2018
      %v2020 = vmul.f32 %v1811, 1.442695
      %v2021 = vpow.pop %v2020
      %v2022 = vmul.f32 %v1812, 1.442695
      %v2023 = vpow.pop %v2022
      %v2024 = vmul.f32 %v1813, 1.442695
      %v2025 = vpow.pop %v2024
      %v2026 = vmul.f32 %v1814, 1.442695
      %v2027 = vpow.pop %v2026
      %v2028 = vmul.f32 %v1815, 1.442695
      %v2029 = vpow.pop %v2028
      %v2030 = vmul.f32 %v1816, 1.442695
      %v2031 = vpow.pop %v2030
      %v2032 = vmul.f32 %v1817, 1.442695
      %v2033 = vpow.pop %v2032
      %v2034 = vmul.f32 %v1818, 1.442695
      %v2035 = vpow.pop %v2034
      %v2036 = vmul.f32 %v1819, 1.442695
      %v2037 = vpow.pop %v2036
      %v2038 = vmul.f32 %v1820, 1.442695
      %v2039 = vpow.pop %v2038
      %v2040 = vmul.f32 %v1821, 1.442695
      %v2041 = vpow.pop %v2040
      %v2042 = vmul.f32 %v1822, 1.442695
      %v2043 = vpow.pop %v2042
      %v2044 = vmul.f32 %v1823, 1.442695
      %v2045 = vpow.pop %v2044
      %v2046 = vmul.f32 %v1824, 1.442695
      %v2047 = vpow.pop %v2046
      %v2048 = vmul.f32 %v1825, 1.442695
      %v2049 = vpow.pop %v2048
      %v2050 = vmul.f32 %v1826, 1.442695
      %v2051 = vpow.pop %v2050
      %v2052 = vmul.f32 %v1827, 1.442695
      %v2053 = vpow.pop %v2052
      %v2054 = vmul.f32 %v1828, 1.442695
      %v2055 = vpow.pop %v2054
      %v2056 = vmul.f32 %v1829, 1.442695
      %v2057 = vpow.pop %v2056
      %v2058 = vmul.f32 %v1830, 1.442695
      %v2059 = vpow.pop %v2058
      %v2060 = vmul.f32 %v1831, 1.442695
      %v2061 = vpow.pop %v2060
      %v2062 = vmul.f32 %v1832, 1.442695
      %v2063 = vpow.pop %v2062
      %v2064 = vmul.f32 %v1833, 1.442695
      %v2065 = vpow.pop %v2064
      %v2066 = vmul.f32 %v1834, 1.442695
      %v2067 = vpow.pop %v2066
      %v2068 = vmul.f32 %v1835, 1.442695
      %v2069 = vpow.pop %v2068
      %v2070 = vmul.f32 %v1836, 1.442695
      %v2071 = vpow.pop %v2070
      %v2072 = vmul.f32 %v1837, 1.442695
      %v2073 = vpow.pop %v2072
      %v2074 = vmul.f32 %v1838, 1.442695
      %v2075 = vpow.pop %v2074
      %v2076 = vmul.f32 %v1839, 1.442695
      %v2077 = vpow.pop %v2076
      %v2078 = vmul.f32 %v1840, 1.442695
      %v2079 = vpow.pop %v2078
      %v2080 = vmul.f32 %v1841, 1.442695
      %v2081 = vpow.pop %v2080
      %v2082 = vmul.f32 %v1842, 1.442695
      %v2083 = vpow.pop %v2082
      %v2084 = vmul.f32 %v1843, 1.442695
      %v2085 = vpow.pop %v2084
      %v2086 = vmul.f32 %v1844, 1.442695
      %v2087 = vpow.pop %v2086
      %v2088 = vmul.f32 %v1845, 1.442695
      %v2089 = vpow.pop %v2088
      %v2090 = vmul.f32 %v1846, 1.442695
      %v2091 = vpow.pop %v2090
      %v2092 = vmul.f32 %v1847, 1.442695
      %v2093 = vpow.pop %v2092
      %v2094 = vmul.f32 %v1848, 1.442695
      %v2095 = vpow.pop %v2094
      %v2096 = vmul.f32 %v1849, 1.442695
      %v2097 = vpow.pop %v2096
      %v2098 = vmul.f32 %v1850, 1.442695
      %v2099 = vpow.pop %v2098
      %v2100 = vmul.f32 %v1851, 1.442695
      %v2101 = vpow.pop %v2100
      %v2102 = vmul.f32 %v1852, 1.442695
      %v2103 = vpow.pop %v2102
      %v2104 = vmul.f32 %v1853, 1.442695
      %v2105 = vpow.pop %v2104
      %v2106 = vmul.f32 %v1854, 1.442695
      %v2107 = vpow.pop %v2106
      %v2108 = vmul.f32 %v1855, 1.442695
      %v2109 = vpow.pop %v2108
      %v2110 = vmul.f32 %v1856, 1.442695
      %v2111 = vpow.pop %v2110
      %v2112 = vmul.f32 %v1857, 1.442695
      %v2113 = vpow.pop %v2112
      %2114 = vadd.xlane.f32.xlu0 %v1859
      %v2115 = vpop.xlane.xlu0 %2114
      %2116 = vadd.xlane.f32.xlu0 %v1861
      %v2117 = vpop.xlane.xlu0 %2116
      %2118 = vadd.xlane.f32.xlu0 %v1863
      %v2119 = vpop.xlane.xlu0 %2118
      %2120 = vadd.xlane.f32.xlu0 %v1865
      %v2121 = vpop.xlane.xlu0 %2120
      %2122 = vadd.xlane.f32.xlu0 %v1867
      %v2123 = vpop.xlane.xlu0 %2122
      %2124 = vadd.xlane.f32.xlu0 %v1869
      %v2125 = vpop.xlane.xlu0 %2124
      %2126 = vadd.xlane.f32.xlu0 %v1871
      %v2127 = vpop.xlane.xlu0 %2126
      %2128 = vadd.xlane.f32.xlu0 %v1873
      %v2129 = vpop.xlane.xlu0 %2128
      %2130 = vadd.xlane.f32.xlu0 %v1875
      %v2131 = vpop.xlane.xlu0 %2130
      %2132 = vadd.xlane.f32.xlu0 %v1877
      %v2133 = vpop.xlane.xlu0 %2132
      %2134 = vadd.xlane.f32.xlu0 %v1879
      %v2135 = vpop.xlane.xlu0 %2134
      %2136 = vadd.xlane.f32.xlu0 %v1881
      %v2137 = vpop.xlane.xlu0 %2136
      %2138 = vadd.xlane.f32.xlu0 %v1883
      %v2139 = vpop.xlane.xlu0 %2138
      %2140 = vadd.xlane.f32.xlu0 %v1885
      %v2141 = vpop.xlane.xlu0 %2140
      %2142 = vadd.xlane.f32.xlu0 %v1887
      %v2143 = vpop.xlane.xlu0 %2142
      %2144 = vadd.xlane.f32.xlu0 %v1889
      %v2145 = vpop.xlane.xlu0 %2144
      %2146 = vadd.xlane.f32.xlu0 %v1891
      %v2147 = vpop.xlane.xlu0 %2146
      %2148 = vadd.xlane.f32.xlu0 %v1893
      %v2149 = vpop.xlane.xlu0 %2148
      %2150 = vadd.xlane.f32.xlu0 %v1895
      %v2151 = vpop.xlane.xlu0 %2150
      %2152 = vadd.xlane.f32.xlu0 %v1897
      %v2153 = vpop.xlane.xlu0 %2152
      %2154 = vadd.xlane.f32.xlu0 %v1899
      %v2155 = vpop.xlane.xlu0 %2154
      %2156 = vadd.xlane.f32.xlu0 %v1901
      %v2157 = vpop.xlane.xlu0 %2156
      %2158 = vadd.xlane.f32.xlu0 %v1903
      %v2159 = vpop.xlane.xlu0 %2158
      %2160 = vadd.xlane.f32.xlu0 %v1905
      %v2161 = vpop.xlane.xlu0 %2160
      %2162 = vadd.xlane.f32.xlu0 %v1907
      %v2163 = vpop.xlane.xlu0 %2162
      %2164 = vadd.xlane.f32.xlu0 %v1909
      %v2165 = vpop.xlane.xlu0 %2164
      %2166 = vadd.xlane.f32.xlu0 %v1911
      %v2167 = vpop.xlane.xlu0 %2166
      %2168 = vadd.xlane.f32.xlu0 %v1913
      %v2169 = vpop.xlane.xlu0 %2168
      %2170 = vadd.xlane.f32.xlu0 %v1915
      %v2171 = vpop.xlane.xlu0 %2170
      %2172 = vadd.xlane.f32.xlu0 %v1917
      %v2173 = vpop.xlane.xlu0 %2172
      %2174 = vadd.xlane.f32.xlu0 %v1919
      %v2175 = vpop.xlane.xlu0 %2174
      %2176 = vadd.xlane.f32.xlu0 %v1921
      %v2177 = vpop.xlane.xlu0 %2176
      %2178 = vadd.xlane.f32.xlu0 %v1923
      %v2179 = vpop.xlane.xlu0 %2178
      %2180 = vadd.xlane.f32.xlu0 %v1925
      %v2181 = vpop.xlane.xlu0 %2180
      %2182 = vadd.xlane.f32.xlu0 %v1927
      %v2183 = vpop.xlane.xlu0 %2182
      %2184 = vadd.xlane.f32.xlu0 %v1929
      %v2185 = vpop.xlane.xlu0 %2184
      %2186 = vadd.xlane.f32.xlu0 %v1931
      %v2187 = vpop.xlane.xlu0 %2186
      %2188 = vadd.xlane.f32.xlu0 %v1933
      %v2189 = vpop.xlane.xlu0 %2188
      %2190 = vadd.xlane.f32.xlu0 %v1935
      %v2191 = vpop.xlane.xlu0 %2190
      %2192 = vadd.xlane.f32.xlu0 %v1937
      %v2193 = vpop.xlane.xlu0 %2192
      %2194 = vadd.xlane.f32.xlu0 %v1939
      %v2195 = vpop.xlane.xlu0 %2194
      %2196 = vadd.xlane.f32.xlu0 %v1941
      %v2197 = vpop.xlane.xlu0 %2196
      %2198 = vadd.xlane.f32.xlu0 %v1943
      %v2199 = vpop.xlane.xlu0 %2198
      %2200 = vadd.xlane.f32.xlu0 %v1945
      %v2201 = vpop.xlane.xlu0 %2200
      %2202 = vadd.xlane.f32.xlu0 %v1947
      %v2203 = vpop.xlane.xlu0 %2202
      %2204 = vadd.xlane.f32.xlu0 %v1949
      %v2205 = vpop.xlane.xlu0 %2204
      %2206 = vadd.xlane.f32.xlu0 %v1951
      %v2207 = vpop.xlane.xlu0 %2206
      %2208 = vadd.xlane.f32.xlu0 %v1953
      %v2209 = vpop.xlane.xlu0 %2208
      %2210 = vadd.xlane.f32.xlu0 %v1955
      %v2211 = vpop.xlane.xlu0 %2210
      %2212 = vadd.xlane.f32.xlu0 %v1957
      %v2213 = vpop.xlane.xlu0 %2212
      %2214 = vadd.xlane.f32.xlu0 %v1959
      %v2215 = vpop.xlane.xlu0 %2214
      %2216 = vadd.xlane.f32.xlu0 %v1961
      %v2217 = vpop.xlane.xlu0 %2216
      %2218 = vadd.xlane.f32.xlu0 %v1963
      %v2219 = vpop.xlane.xlu0 %2218
      %2220 = vadd.xlane.f32.xlu0 %v1965
      %v2221 = vpop.xlane.xlu0 %2220
      %2222 = vadd.xlane.f32.xlu0 %v1967
      %v2223 = vpop.xlane.xlu0 %2222
      %2224 = vadd.xlane.f32.xlu0 %v1969
      %v2225 = vpop.xlane.xlu0 %2224
      %2226 = vadd.xlane.f32.xlu0 %v1971
      %v2227 = vpop.xlane.xlu0 %2226
      %2228 = vadd.xlane.f32.xlu0 %v1973
      %v2229 = vpop.xlane.xlu0 %2228
      %2230 = vadd.xlane.f32.xlu0 %v1975
      %v2231 = vpop.xlane.xlu0 %2230
      %2232 = vadd.xlane.f32.xlu0 %v1977
      %v2233 = vpop.xlane.xlu0 %2232
      %2234 = vadd.xlane.f32.xlu0 %v1979
      %v2235 = vpop.xlane.xlu0 %2234
      %2236 = vadd.xlane.f32.xlu0 %v1981
      %v2237 = vpop.xlane.xlu0 %2236
      %2238 = vadd.xlane.f32.xlu0 %v1983
      %v2239 = vpop.xlane.xlu0 %2238
      %2240 = vadd.xlane.f32.xlu0 %v1985
      %v2241 = vpop.xlane.xlu0 %2240
      %2242 = vadd.xlane.f32.xlu0 %v1987
      %v2243 = vpop.xlane.xlu0 %2242
      %2244 = vadd.xlane.f32.xlu0 %v1989
      %v2245 = vpop.xlane.xlu0 %2244
      %2246 = vadd.xlane.f32.xlu0 %v1991
      %v2247 = vpop.xlane.xlu0 %2246
      %2248 = vadd.xlane.f32.xlu0 %v1993
      %v2249 = vpop.xlane.xlu0 %2248
      %2250 = vadd.xlane.f32.xlu0 %v1995
      %v2251 = vpop.xlane.xlu0 %2250
      %2252 = vadd.xlane.f32.xlu0 %v1997
      %v2253 = vpop.xlane.xlu0 %2252
      %2254 = vadd.xlane.f32.xlu0 %v1999
      %v2255 = vpop.xlane.xlu0 %2254
      %2256 = vadd.xlane.f32.xlu0 %v2001
      %v2257 = vpop.xlane.xlu0 %2256
      %2258 = vadd.xlane.f32.xlu0 %v2003
      %v2259 = vpop.xlane.xlu0 %2258
      %2260 = vadd.xlane.f32.xlu0 %v2005
      %v2261 = vpop.xlane.xlu0 %2260
      %2262 = vadd.xlane.f32.xlu0 %v2007
      %v2263 = vpop.xlane.xlu0 %2262
      %2264 = vadd.xlane.f32.xlu0 %v2009
      %v2265 = vpop.xlane.xlu0 %2264
      %2266 = vadd.xlane.f32.xlu0 %v2011
      %v2267 = vpop.xlane.xlu0 %2266
      %2268 = vadd.xlane.f32.xlu0 %v2013
      %v2269 = vpop.xlane.xlu0 %2268
      %2270 = vadd.xlane.f32.xlu0 %v2015
      %v2271 = vpop.xlane.xlu0 %2270
      %2272 = vadd.xlane.f32.xlu0 %v2017
      %v2273 = vpop.xlane.xlu0 %2272
      %2274 = vadd.xlane.f32.xlu0 %v2019
      %v2275 = vpop.xlane.xlu0 %2274
      %2276 = vadd.xlane.f32.xlu0 %v2021
      %v2277 = vpop.xlane.xlu0 %2276
      %2278 = vadd.xlane.f32.xlu0 %v2023
      %v2279 = vpop.xlane.xlu0 %2278
      %2280 = vadd.xlane.f32.xlu0 %v2025
      %v2281 = vpop.xlane.xlu0 %2280
      %2282 = vadd.xlane.f32.xlu0 %v2027
      %v2283 = vpop.xlane.xlu0 %2282
      %2284 = vadd.xlane.f32.xlu0 %v2029
      %v2285 = vpop.xlane.xlu0 %2284
      %2286 = vadd.xlane.f32.xlu0 %v2031
      %v2287 = vpop.xlane.xlu0 %2286
      %2288 = vadd.xlane.f32.xlu0 %v2033
      %v2289 = vpop.xlane.xlu0 %2288
      %2290 = vadd.xlane.f32.xlu0 %v2035
      %v2291 = vpop.xlane.xlu0 %2290
      %2292 = vadd.xlane.f32.xlu0 %v2037
      %v2293 = vpop.xlane.xlu0 %2292
      %2294 = vadd.xlane.f32.xlu0 %v2039
      %v2295 = vpop.xlane.xlu0 %2294
      %2296 = vadd.xlane.f32.xlu0 %v2041
      %v2297 = vpop.xlane.xlu0 %2296
      %2298 = vadd.xlane.f32.xlu0 %v2043
      %v2299 = vpop.xlane.xlu0 %2298
      %2300 = vadd.xlane.f32.xlu0 %v2045
      %v2301 = vpop.xlane.xlu0 %2300
      %2302 = vadd.xlane.f32.xlu0 %v2047
      %v2303 = vpop.xlane.xlu0 %2302
      %2304 = vadd.xlane.f32.xlu0 %v2049
      %v2305 = vpop.xlane.xlu0 %2304
      %2306 = vadd.xlane.f32.xlu0 %v2051
      %v2307 = vpop.xlane.xlu0 %2306
      %2308 = vadd.xlane.f32.xlu0 %v2053
      %v2309 = vpop.xlane.xlu0 %2308
      %2310 = vadd.xlane.f32.xlu0 %v2055
      %v2311 = vpop.xlane.xlu0 %2310
      %2312 = vadd.xlane.f32.xlu0 %v2057
      %v2313 = vpop.xlane.xlu0 %2312
      %2314 = vadd.xlane.f32.xlu0 %v2059
      %v2315 = vpop.xlane.xlu0 %2314
      %2316 = vadd.xlane.f32.xlu0 %v2061
      %v2317 = vpop.xlane.xlu0 %2316
      %2318 = vadd.xlane.f32.xlu0 %v2063
      %v2319 = vpop.xlane.xlu0 %2318
      %2320 = vadd.xlane.f32.xlu0 %v2065
      %v2321 = vpop.xlane.xlu0 %2320
      %2322 = vadd.xlane.f32.xlu0 %v2067
      %v2323 = vpop.xlane.xlu0 %2322
      %2324 = vadd.xlane.f32.xlu0 %v2069
      %v2325 = vpop.xlane.xlu0 %2324
      %2326 = vadd.xlane.f32.xlu0 %v2071
      %v2327 = vpop.xlane.xlu0 %2326
      %2328 = vadd.xlane.f32.xlu0 %v2073
      %v2329 = vpop.xlane.xlu0 %2328
      %2330 = vadd.xlane.f32.xlu0 %v2075
      %v2331 = vpop.xlane.xlu0 %2330
      %2332 = vadd.xlane.f32.xlu0 %v2077
      %v2333 = vpop.xlane.xlu0 %2332
      %2334 = vadd.xlane.f32.xlu0 %v2079
      %v2335 = vpop.xlane.xlu0 %2334
      %2336 = vadd.xlane.f32.xlu0 %v2081
      %v2337 = vpop.xlane.xlu0 %2336
      %2338 = vadd.xlane.f32.xlu0 %v2083
      %v2339 = vpop.xlane.xlu0 %2338
      %2340 = vadd.xlane.f32.xlu0 %v2085
      %v2341 = vpop.xlane.xlu0 %2340
      %2342 = vadd.xlane.f32.xlu0 %v2087
      %v2343 = vpop.xlane.xlu0 %2342
      %2344 = vadd.xlane.f32.xlu0 %v2089
      %v2345 = vpop.xlane.xlu0 %2344
      %2346 = vadd.xlane.f32.xlu0 %v2091
      %v2347 = vpop.xlane.xlu0 %2346
      %2348 = vadd.xlane.f32.xlu0 %v2093
      %v2349 = vpop.xlane.xlu0 %2348
      %2350 = vadd.xlane.f32.xlu0 %v2095
      %v2351 = vpop.xlane.xlu0 %2350
      %2352 = vadd.xlane.f32.xlu0 %v2097
      %v2353 = vpop.xlane.xlu0 %2352
      %2354 = vadd.xlane.f32.xlu0 %v2099
      %v2355 = vpop.xlane.xlu0 %2354
      %2356 = vadd.xlane.f32.xlu0 %v2101
      %v2357 = vpop.xlane.xlu0 %2356
      %2358 = vadd.xlane.f32.xlu0 %v2103
      %v2359 = vpop.xlane.xlu0 %2358
      %2360 = vadd.xlane.f32.xlu0 %v2105
      %v2361 = vpop.xlane.xlu0 %2360
      %2362 = vadd.xlane.f32.xlu0 %v2107
      %v2363 = vpop.xlane.xlu0 %2362
      %2364 = vadd.xlane.f32.xlu0 %v2109
      %v2365 = vpop.xlane.xlu0 %2364
      %2366 = vadd.xlane.f32.xlu0 %v2111
      %v2367 = vpop.xlane.xlu0 %2366
      %2368 = vadd.xlane.f32.xlu0 %v2113
      %v2369 = vpop.xlane.xlu0 %2368
      %v2370 = vrcp.pop %v2115
      %v2371 = vrcp.pop %v2117
      %v2372 = vrcp.pop %v2119
      %v2373 = vrcp.pop %v2121
      %v2374 = vrcp.pop %v2123
      %v2375 = vrcp.pop %v2125
      %v2376 = vrcp.pop %v2127
      %v2377 = vrcp.pop %v2129
      %v2378 = vrcp.pop %v2131
      %v2379 = vrcp.pop %v2133
      %v2380 = vrcp.pop %v2135
      %v2381 = vrcp.pop %v2137
      %v2382 = vrcp.pop %v2139
      %v2383 = vrcp.pop %v2141
      %v2384 = vrcp.pop %v2143
      %v2385 = vrcp.pop %v2145
      %v2386 = vrcp.pop %v2147
      %v2387 = vrcp.pop %v2149
      %v2388 = vrcp.pop %v2151
      %v2389 = vrcp.pop %v2153
      %v2390 = vrcp.pop %v2155
      %v2391 = vrcp.pop %v2157
      %v2392 = vrcp.pop %v2159
      %v2393 = vrcp.pop %v2161
      %v2394 = vrcp.pop %v2163
      %v2395 = vrcp.pop %v2165
      %v2396 = vrcp.pop %v2167
      %v2397 = vrcp.pop %v2169
      %v2398 = vrcp.pop %v2171
      %v2399 = vrcp.pop %v2173
      %v2400 = vrcp.pop %v2175
      %v2401 = vrcp.pop %v2177
      %v2402 = vrcp.pop %v2179
      %v2403 = vrcp.pop %v2181
      %v2404 = vrcp.pop %v2183
      %v2405 = vrcp.pop %v2185
      %v2406 = vrcp.pop %v2187
      %v2407 = vrcp.pop %v2189
      %v2408 = vrcp.pop %v2191
      %v2409 = vrcp.pop %v2193
      %v2410 = vrcp.pop %v2195
      %v2411 = vrcp.pop %v2197
      %v2412 = vrcp.pop %v2199
      %v2413 = vrcp.pop %v2201
      %v2414 = vrcp.pop %v2203
      %v2415 = vrcp.pop %v2205
      %v2416 = vrcp.pop %v2207
      %v2417 = vrcp.pop %v2209
      %v2418 = vrcp.pop %v2211
      %v2419 = vrcp.pop %v2213
      %v2420 = vrcp.pop %v2215
      %v2421 = vrcp.pop %v2217
      %v2422 = vrcp.pop %v2219
      %v2423 = vrcp.pop %v2221
      %v2424 = vrcp.pop %v2223
      %v2425 = vrcp.pop %v2225
      %v2426 = vrcp.pop %v2227
      %v2427 = vrcp.pop %v2229
      %v2428 = vrcp.pop %v2231
      %v2429 = vrcp.pop %v2233
      %v2430 = vrcp.pop %v2235
      %v2431 = vrcp.pop %v2237
      %v2432 = vrcp.pop %v2239
      %v2433 = vrcp.pop %v2241
      %v2434 = vrcp.pop %v2243
      %v2435 = vrcp.pop %v2245
      %v2436 = vrcp.pop %v2247
      %v2437 = vrcp.pop %v2249
      %v2438 = vrcp.pop %v2251
      %v2439 = vrcp.pop %v2253
      %v2440 = vrcp.pop %v2255
      %v2441 = vrcp.pop %v2257
      %v2442 = vrcp.pop %v2259
      %v2443 = vrcp.pop %v2261
      %v2444 = vrcp.pop %v2263
      %v2445 = vrcp.pop %v2265
      %v2446 = vrcp.pop %v2267
      %v2447 = vrcp.pop %v2269
      %v2448 = vrcp.pop %v2271
      %v2449 = vrcp.pop %v2273
      %v2450 = vrcp.pop %v2275
      %v2451 = vrcp.pop %v2277
      %v2452 = vrcp.pop %v2279
      %v2453 = vrcp.pop %v2281
      %v2454 = vrcp.pop %v2283
      %v2455 = vrcp.pop %v2285
      %v2456 = vrcp.pop %v2287
      %v2457 = vrcp.pop %v2289
      %v2458 = vrcp.pop %v2291
      %v2459 = vrcp.pop %v2293
      %v2460 = vrcp.pop %v2295
      %v2461 = vrcp.pop %v2297
      %v2462 = vrcp.pop %v2299
      %v2463 = vrcp.pop %v2301
      %v2464 = vrcp.pop %v2303
      %v2465 = vrcp.pop %v2305
      %v2466 = vrcp.pop %v2307
      %v2467 = vrcp.pop %v2309
      %v2468 = vrcp.pop %v2311
      %v2469 = vrcp.pop %v2313
      %v2470 = vrcp.pop %v2315
      %v2471 = vrcp.pop %v2317
      %v2472 = vrcp.pop %v2319
      %v2473 = vrcp.pop %v2321
      %v2474 = vrcp.pop %v2323
      %v2475 = vrcp.pop %v2325
      %v2476 = vrcp.pop %v2327
      %v2477 = vrcp.pop %v2329
      %v2478 = vrcp.pop %v2331
      %v2479 = vrcp.pop %v2333
      %v2480 = vrcp.pop %v2335
      %v2481 = vrcp.pop %v2337
      %v2482 = vrcp.pop %v2339
      %v2483 = vrcp.pop %v2341
      %v2484 = vrcp.pop %v2343
      %v2485 = vrcp.pop %v2345
      %v2486 = vrcp.pop %v2347
      %v2487 = vrcp.pop %v2349
      %v2488 = vrcp.pop %v2351
      %v2489 = vrcp.pop %v2353
      %v2490 = vrcp.pop %v2355
      %v2491 = vrcp.pop %v2357
      %v2492 = vrcp.pop %v2359
      %v2493 = vrcp.pop %v2361
      %v2494 = vrcp.pop %v2363
      %v2495 = vrcp.pop %v2365
      %v2496 = vrcp.pop %v2367
      %v2497 = vrcp.pop %v2369
      %v2498 = vmul.f32 %v1859, %v2370
      %v2499 = vmul.f32 %v1861, %v2371
      %v2500 = vmul.f32 %v1863, %v2372
      %v2501 = vmul.f32 %v1865, %v2373
      %v2502 = vmul.f32 %v1867, %v2374
      %v2503 = vmul.f32 %v1869, %v2375
      %v2504 = vmul.f32 %v1871, %v2376
      %v2505 = vmul.f32 %v1873, %v2377
      %v2506 = vmul.f32 %v1875, %v2378
      %v2507 = vmul.f32 %v1877, %v2379
      %v2508 = vmul.f32 %v1879, %v2380
      %v2509 = vmul.f32 %v1881, %v2381
      %v2510 = vmul.f32 %v1883, %v2382
      %v2511 = vmul.f32 %v1885, %v2383
      %v2512 = vmul.f32 %v1887, %v2384
      %v2513 = vmul.f32 %v1889, %v2385
      %v2514 = vmul.f32 %v1891, %v2386
      %v2515 = vmul.f32 %v1893, %v2387
      %v2516 = vmul.f32 %v1895, %v2388
      %v2517 = vmul.f32 %v1897, %v2389
      %v2518 = vmul.f32 %v1899, %v2390
      %v2519 = vmul.f32 %v1901, %v2391
      %v2520 = vmul.f32 %v1903, %v2392
      %v2521 = vmul.f32 %v1905, %v2393
      %v2522 = vmul.f32 %v1907, %v2394
      %v2523 = vmul.f32 %v1909, %v2395
      %v2524 = vmul.f32 %v1911, %v2396
      %v2525 = vmul.f32 %v1913, %v2397
      %v2526 = vmul.f32 %v1915, %v2398
      %v2527 = vmul.f32 %v1917, %v2399
      %v2528 = vmul.f32 %v1919, %v2400
      %v2529 = vmul.f32 %v1921, %v2401
      %v2530 = vmul.f32 %v1923, %v2402
      %v2531 = vmul.f32 %v1925, %v2403
      %v2532 = vmul.f32 %v1927, %v2404
      %v2533 = vmul.f32 %v1929, %v2405
      %v2534 = vmul.f32 %v1931, %v2406
      %v2535 = vmul.f32 %v1933, %v2407
      %v2536 = vmul.f32 %v1935, %v2408
      %v2537 = vmul.f32 %v1937, %v2409
      %v2538 = vmul.f32 %v1939, %v2410
      %v2539 = vmul.f32 %v1941, %v2411
      %v2540 = vmul.f32 %v1943, %v2412
      %v2541 = vmul.f32 %v1945, %v2413
      %v2542 = vmul.f32 %v1947, %v2414
      %v2543 = vmul.f32 %v1949, %v2415
      %v2544 = vmul.f32 %v1951, %v2416
      %v2545 = vmul.f32 %v1953, %v2417
      %v2546 = vmul.f32 %v1955, %v2418
      %v2547 = vmul.f32 %v1957, %v2419
      %v2548 = vmul.f32 %v1959, %v2420
      %v2549 = vmul.f32 %v1961, %v2421
      %v2550 = vmul.f32 %v1963, %v2422
      %v2551 = vmul.f32 %v1965, %v2423
      %v2552 = vmul.f32 %v1967, %v2424
      %v2553 = vmul.f32 %v1969, %v2425
      %v2554 = vmul.f32 %v1971, %v2426
      %v2555 = vmul.f32 %v1973, %v2427
      %v2556 = vmul.f32 %v1975, %v2428
      %v2557 = vmul.f32 %v1977, %v2429
      %v2558 = vmul.f32 %v1979, %v2430
      %v2559 = vmul.f32 %v1981, %v2431
      %v2560 = vmul.f32 %v1983, %v2432
      %v2561 = vmul.f32 %v1985, %v2433
      %v2562 = vmul.f32 %v1987, %v2434
      %v2563 = vmul.f32 %v1989, %v2435
      %v2564 = vmul.f32 %v1991, %v2436
      %v2565 = vmul.f32 %v1993, %v2437
      %v2566 = vmul.f32 %v1995, %v2438
      %v2567 = vmul.f32 %v1997, %v2439
      %v2568 = vmul.f32 %v1999, %v2440
      %v2569 = vmul.f32 %v2001, %v2441
      %v2570 = vmul.f32 %v2003, %v2442
      %v2571 = vmul.f32 %v2005, %v2443
      %v2572 = vmul.f32 %v2007, %v2444
      %v2573 = vmul.f32 %v2009, %v2445
      %v2574 = vmul.f32 %v2011, %v2446
      %v2575 = vmul.f32 %v2013, %v2447
      %v2576 = vmul.f32 %v2015, %v2448
      %v2577 = vmul.f32 %v2017, %v2449
      %v2578 = vmul.f32 %v2019, %v2450
      %v2579 = vmul.f32 %v2021, %v2451
      %v2580 = vmul.f32 %v2023, %v2452
      %v2581 = vmul.f32 %v2025, %v2453
      %v2582 = vmul.f32 %v2027, %v2454
      %v2583 = vmul.f32 %v2029, %v2455
      %v2584 = vmul.f32 %v2031, %v2456
      %v2585 = vmul.f32 %v2033, %v2457
      %v2586 = vmul.f32 %v2035, %v2458
      %v2587 = vmul.f32 %v2037, %v2459
      %v2588 = vmul.f32 %v2039, %v2460
      %v2589 = vmul.f32 %v2041, %v2461
      %v2590 = vmul.f32 %v2043, %v2462
      %v2591 = vmul.f32 %v2045, %v2463
      %v2592 = vmul.f32 %v2047, %v2464
      %v2593 = vmul.f32 %v2049, %v2465
      %v2594 = vmul.f32 %v2051, %v2466
      %v2595 = vmul.f32 %v2053, %v2467
      %v2596 = vmul.f32 %v2055, %v2468
      %v2597 = vmul.f32 %v2057, %v2469
      %v2598 = vmul.f32 %v2059, %v2470
      %v2599 = vmul.f32 %v2061, %v2471
      %v2600 = vmul.f32 %v2063, %v2472
      %v2601 = vmul.f32 %v2065, %v2473
      %v2602 = vmul.f32 %v2067, %v2474
      %v2603 = vmul.f32 %v2069, %v2475
      %v2604 = vmul.f32 %v2071, %v2476
      %v2605 = vmul.f32 %v2073, %v2477
      %v2606 = vmul.f32 %v2075, %v2478
      %v2607 = vmul.f32 %v2077, %v2479
      %v2608 = vmul.f32 %v2079, %v2480
      %v2609 = vmul.f32 %v2081, %v2481
      %v2610 = vmul.f32 %v2083, %v2482
      %v2611 = vmul.f32 %v2085, %v2483
      %v2612 = vmul.f32 %v2087, %v2484
      %v2613 = vmul.f32 %v2089, %v2485
      %v2614 = vmul.f32 %v2091, %v2486
      %v2615 = vmul.f32 %v2093, %v2487
      %v2616 = vmul.f32 %v2095, %v2488
      %v2617 = vmul.f32 %v2097, %v2489
      %v2618 = vmul.f32 %v2099, %v2490
      %v2619 = vmul.f32 %v2101, %v2491
      %v2620 = vmul.f32 %v2103, %v2492
      %v2621 = vmul.f32 %v2105, %v2493
      %v2622 = vmul.f32 %v2107, %v2494
      %v2623 = vmul.f32 %v2109, %v2495
      %v2624 = vmul.f32 %v2111, %v2496
      %v2625 = vmul.f32 %v2113, %v2497
      %v2626 = vpack.c.bf16 %v2498, %v2498
      %v2627 = vpack.c.bf16 %v2499, %v2499
      %v2628 = vpack.c.bf16 %v2500, %v2500
      %v2629 = vpack.c.bf16 %v2501, %v2501
      %v2630 = vpack.c.bf16 %v2502, %v2502
      %v2631 = vpack.c.bf16 %v2503, %v2503
      %v2632 = vpack.c.bf16 %v2504, %v2504
      %v2633 = vpack.c.bf16 %v2505, %v2505
      %v2634 = vpack.c.bf16 %v2506, %v2506
      %v2635 = vpack.c.bf16 %v2507, %v2507
      %v2636 = vpack.c.bf16 %v2508, %v2508
      %v2637 = vpack.c.bf16 %v2509, %v2509
      %v2638 = vpack.c.bf16 %v2510, %v2510
      %v2639 = vpack.c.bf16 %v2511, %v2511
      %v2640 = vpack.c.bf16 %v2512, %v2512
      %v2641 = vpack.c.bf16 %v2513, %v2513
      %v2642 = vpack.c.bf16 %v2514, %v2514
      %v2643 = vpack.c.bf16 %v2515, %v2515
      %v2644 = vpack.c.bf16 %v2516, %v2516
      %v2645 = vpack.c.bf16 %v2517, %v2517
      %v2646 = vpack.c.bf16 %v2518, %v2518
      %v2647 = vpack.c.bf16 %v2519, %v2519
      %v2648 = vpack.c.bf16 %v2520, %v2520
      %v2649 = vpack.c.bf16 %v2521, %v2521
      %v2650 = vpack.c.bf16 %v2522, %v2522
      %v2651 = vpack.c.bf16 %v2523, %v2523
      %v2652 = vpack.c.bf16 %v2524, %v2524
      %v2653 = vpack.c.bf16 %v2525, %v2525
      %v2654 = vpack.c.bf16 %v2526, %v2526
      %v2655 = vpack.c.bf16 %v2527, %v2527
      %v2656 = vpack.c.bf16 %v2528, %v2528
      %v2657 = vpack.c.bf16 %v2529, %v2529
      %v2658 = vpack.c.bf16 %v2530, %v2530
      %v2659 = vpack.c.bf16 %v2531, %v2531
      %v2660 = vpack.c.bf16 %v2532, %v2532
      %v2661 = vpack.c.bf16 %v2533, %v2533
      %v2662 = vpack.c.bf16 %v2534, %v2534
      %v2663 = vpack.c.bf16 %v2535, %v2535
      %v2664 = vpack.c.bf16 %v2536, %v2536
      %v2665 = vpack.c.bf16 %v2537, %v2537
      %v2666 = vpack.c.bf16 %v2538, %v2538
      %v2667 = vpack.c.bf16 %v2539, %v2539
      %v2668 = vpack.c.bf16 %v2540, %v2540
      %v2669 = vpack.c.bf16 %v2541, %v2541
      %v2670 = vpack.c.bf16 %v2542, %v2542
      %v2671 = vpack.c.bf16 %v2543, %v2543
      %v2672 = vpack.c.bf16 %v2544, %v2544
      %v2673 = vpack.c.bf16 %v2545, %v2545
      %v2674 = vpack.c.bf16 %v2546, %v2546
      %v2675 = vpack.c.bf16 %v2547, %v2547
      %v2676 = vpack.c.bf16 %v2548, %v2548
      %v2677 = vpack.c.bf16 %v2549, %v2549
      %v2678 = vpack.c.bf16 %v2550, %v2550
      %v2679 = vpack.c.bf16 %v2551, %v2551
      %v2680 = vpack.c.bf16 %v2552, %v2552
      %v2681 = vpack.c.bf16 %v2553, %v2553
      %v2682 = vpack.c.bf16 %v2554, %v2554
      %v2683 = vpack.c.bf16 %v2555, %v2555
      %v2684 = vpack.c.bf16 %v2556, %v2556
      %v2685 = vpack.c.bf16 %v2557, %v2557
      %v2686 = vpack.c.bf16 %v2558, %v2558
      %v2687 = vpack.c.bf16 %v2559, %v2559
      %v2688 = vpack.c.bf16 %v2560, %v2560
      %v2689 = vpack.c.bf16 %v2561, %v2561
      %v2690 = vpack.c.bf16 %v2562, %v2562
      %v2691 = vpack.c.bf16 %v2563, %v2563
      %v2692 = vpack.c.bf16 %v2564, %v2564
      %v2693 = vpack.c.bf16 %v2565, %v2565
      %v2694 = vpack.c.bf16 %v2566, %v2566
      %v2695 = vpack.c.bf16 %v2567, %v2567
      %v2696 = vpack.c.bf16 %v2568, %v2568
      %v2697 = vpack.c.bf16 %v2569, %v2569
      %v2698 = vpack.c.bf16 %v2570, %v2570
      %v2699 = vpack.c.bf16 %v2571, %v2571
      %v2700 = vpack.c.bf16 %v2572, %v2572
      %v2701 = vpack.c.bf16 %v2573, %v2573
      %v2702 = vpack.c.bf16 %v2574, %v2574
      %v2703 = vpack.c.bf16 %v2575, %v2575
      %v2704 = vpack.c.bf16 %v2576, %v2576
      %v2705 = vpack.c.bf16 %v2577, %v2577
      %v2706 = vpack.c.bf16 %v2578, %v2578
      %v2707 = vpack.c.bf16 %v2579, %v2579
      %v2708 = vpack.c.bf16 %v2580, %v2580
      %v2709 = vpack.c.bf16 %v2581, %v2581
      %v2710 = vpack.c.bf16 %v2582, %v2582
      %v2711 = vpack.c.bf16 %v2583, %v2583
      %v2712 = vpack.c.bf16 %v2584, %v2584
      %v2713 = vpack.c.bf16 %v2585, %v2585
      %v2714 = vpack.c.bf16 %v2586, %v2586
      %v2715 = vpack.c.bf16 %v2587, %v2587
      %v2716 = vpack.c.bf16 %v2588, %v2588
      %v2717 = vpack.c.bf16 %v2589, %v2589
      %v2718 = vpack.c.bf16 %v2590, %v2590
      %v2719 = vpack.c.bf16 %v2591, %v2591
      %v2720 = vpack.c.bf16 %v2592, %v2592
      %v2721 = vpack.c.bf16 %v2593, %v2593
      %v2722 = vpack.c.bf16 %v2594, %v2594
      %v2723 = vpack.c.bf16 %v2595, %v2595
      %v2724 = vpack.c.bf16 %v2596, %v2596
      %v2725 = vpack.c.bf16 %v2597, %v2597
      %v2726 = vpack.c.bf16 %v2598, %v2598
      %v2727 = vpack.c.bf16 %v2599, %v2599
      %v2728 = vpack.c.bf16 %v2600, %v2600
      %v2729 = vpack.c.bf16 %v2601, %v2601
      %v2730 = vpack.c.bf16 %v2602, %v2602
      %v2731 = vpack.c.bf16 %v2603, %v2603
      %v2732 = vpack.c.bf16 %v2604, %v2604
      %v2733 = vpack.c.bf16 %v2605, %v2605
      %v2734 = vpack.c.bf16 %v2606, %v2606
      %v2735 = vpack.c.bf16 %v2607, %v2607
      %v2736 = vpack.c.bf16 %v2608, %v2608
      %v2737 = vpack.c.bf16 %v2609, %v2609
      %v2738 = vpack.c.bf16 %v2610, %v2610
      %v2739 = vpack.c.bf16 %v2611, %v2611
      %v2740 = vpack.c.bf16 %v2612, %v2612
      %v2741 = vpack.c.bf16 %v2613, %v2613
      %v2742 = vpack.c.bf16 %v2614, %v2614
      %v2743 = vpack.c.bf16 %v2615, %v2615
      %v2744 = vpack.c.bf16 %v2616, %v2616
      %v2745 = vpack.c.bf16 %v2617, %v2617
      %v2746 = vpack.c.bf16 %v2618, %v2618
      %v2747 = vpack.c.bf16 %v2619, %v2619
      %v2748 = vpack.c.bf16 %v2620, %v2620
      %v2749 = vpack.c.bf16 %v2621, %v2621
      %v2750 = vpack.c.bf16 %v2622, %v2622
      %v2751 = vpack.c.bf16 %v2623, %v2623
      %v2752 = vpack.c.bf16 %v2624, %v2624
      %v2753 = vpack.c.bf16 %v2625, %v2625
      %v2770 = vunpack.c.l.b16 %v2626
      %v2771 = vunpack.c.l.b16 %v2627
      %v2772 = vunpack.c.l.b16 %v2628
      %v2773 = vunpack.c.l.b16 %v2629
      %v2774 = vunpack.c.l.b16 %v2630
      %v2775 = vunpack.c.l.b16 %v2631
      %v2776 = vunpack.c.l.b16 %v2632
      %v2777 = vunpack.c.l.b16 %v2633
      %v2778 = vunpack.c.l.b16 %v2634
      %v2779 = vunpack.c.l.b16 %v2635
      %v2780 = vunpack.c.l.b16 %v2636
      %v2781 = vunpack.c.l.b16 %v2637
      %v2782 = vunpack.c.l.b16 %v2638
      %v2783 = vunpack.c.l.b16 %v2639
      %v2784 = vunpack.c.l.b16 %v2640
      %v2785 = vunpack.c.l.b16 %v2641
      %v2786 = vpack.c.b16 %v2771, %v2770
      %v2787 = vpack.c.b16 %v2773, %v2772
      %v2788 = vpack.c.b16 %v2775, %v2774
      %v2789 = vpack.c.b16 %v2777, %v2776
      %v2790 = vpack.c.b16 %v2779, %v2778
      %v2791 = vpack.c.b16 %v2781, %v2780
      %v2792 = vpack.c.b16 %v2783, %v2782
      %v2793 = vpack.c.b16 %v2785, %v2784
      %2802 = vmatpush.bf16.xpose.msra.mxu0 %v2793
      %2803 = vmatpush.bf16.xpose.msra.mxu0 %v2792
      %2804 = vmatpush.bf16.xpose.msra.mxu0 %v2791
      %2805 = vmatpush.bf16.xpose.msra.mxu0 %v2790
      %2806 = vmatpush.bf16.xpose.msra.mxu0 %v2789
      %2807 = vmatpush.bf16.xpose.msra.mxu0 %v2788
      %2808 = vmatpush.bf16.xpose.msra.mxu0 %v2787
      %2809 = vmatpush.bf16.xpose.msra.mxu0 %v2786
      %2810 = vmatmul.bf16.gmra.mxu0 %v714
      %v2811 = vpop.f32.mrf.mxu0
      %v2812 = vadd.f32 0.0, %v2811
      %v2813 = vpop.f32.mrf.mxu0
      %2814 = vdwg.mxu0
      %v2831 = vunpack.c.l.b16 %v2642
      %v2832 = vunpack.c.l.b16 %v2643
      %v2833 = vunpack.c.l.b16 %v2644
      %v2834 = vunpack.c.l.b16 %v2645
      %v2835 = vunpack.c.l.b16 %v2646
      %v2836 = vunpack.c.l.b16 %v2647
      %v2837 = vunpack.c.l.b16 %v2648
      %v2838 = vunpack.c.l.b16 %v2649
      %v2839 = vunpack.c.l.b16 %v2650
      %v2840 = vunpack.c.l.b16 %v2651
      %v2841 = vunpack.c.l.b16 %v2652
      %v2842 = vunpack.c.l.b16 %v2653
      %v2843 = vunpack.c.l.b16 %v2654
      %v2844 = vunpack.c.l.b16 %v2655
      %v2845 = vunpack.c.l.b16 %v2656
      %v2846 = vunpack.c.l.b16 %v2657
      %v2847 = vpack.c.b16 %v2832, %v2831
      %v2848 = vpack.c.b16 %v2834, %v2833
      %v2849 = vpack.c.b16 %v2836, %v2835
      %v2850 = vpack.c.b16 %v2838, %v2837
      %v2851 = vpack.c.b16 %v2840, %v2839
      %v2852 = vpack.c.b16 %v2842, %v2841
      %v2853 = vpack.c.b16 %v2844, %v2843
      %v2854 = vpack.c.b16 %v2846, %v2845
      %2863 = vmatpush.bf16.xpose.msra.mxu0 %v2854
      %2864 = vmatpush.bf16.xpose.msra.mxu0 %v2853
      %2865 = vmatpush.bf16.xpose.msra.mxu0 %v2852
      %2866 = vmatpush.bf16.xpose.msra.mxu0 %v2851
      %2867 = vmatpush.bf16.xpose.msra.mxu0 %v2850
      %2868 = vmatpush.bf16.xpose.msra.mxu0 %v2849
      %2869 = vmatpush.bf16.xpose.msra.mxu0 %v2848
      %2870 = vmatpush.bf16.xpose.msra.mxu0 %v2847
      %2871 = vmatmul.bf16.gmra.mxu0 %v715
      %v2872 = vpop.f32.mrf.mxu0
      %v2873 = vadd.f32 0.0, %v2872
      %v2874 = vpop.f32.mrf.mxu0
      %2875 = vdwg.mxu0
      %v2892 = vunpack.c.l.b16 %v2658
      %v2893 = vunpack.c.l.b16 %v2659
      %v2894 = vunpack.c.l.b16 %v2660
      %v2895 = vunpack.c.l.b16 %v2661
      %v2896 = vunpack.c.l.b16 %v2662
      %v2897 = vunpack.c.l.b16 %v2663
      %v2898 = vunpack.c.l.b16 %v2664
      %v2899 = vunpack.c.l.b16 %v2665
      %v2900 = vunpack.c.l.b16 %v2666
      %v2901 = vunpack.c.l.b16 %v2667
      %v2902 = vunpack.c.l.b16 %v2668
      %v2903 = vunpack.c.l.b16 %v2669
      %v2904 = vunpack.c.l.b16 %v2670
      %v2905 = vunpack.c.l.b16 %v2671
      %v2906 = vunpack.c.l.b16 %v2672
      %v2907 = vunpack.c.l.b16 %v2673
      %v2908 = vpack.c.b16 %v2893, %v2892
      %v2909 = vpack.c.b16 %v2895, %v2894
      %v2910 = vpack.c.b16 %v2897, %v2896
      %v2911 = vpack.c.b16 %v2899, %v2898
      %v2912 = vpack.c.b16 %v2901, %v2900
      %v2913 = vpack.c.b16 %v2903, %v2902
      %v2914 = vpack.c.b16 %v2905, %v2904
      %v2915 = vpack.c.b16 %v2907, %v2906
      %2924 = vmatpush.bf16.xpose.msra.mxu0 %v2915
      %2925 = vmatpush.bf16.xpose.msra.mxu0 %v2914
      %2926 = vmatpush.bf16.xpose.msra.mxu0 %v2913
      %2927 = vmatpush.bf16.xpose.msra.mxu0 %v2912
      %2928 = vmatpush.bf16.xpose.msra.mxu0 %v2911
      %2929 = vmatpush.bf16.xpose.msra.mxu0 %v2910
      %2930 = vmatpush.bf16.xpose.msra.mxu0 %v2909
      %2931 = vmatpush.bf16.xpose.msra.mxu0 %v2908
      %2932 = vmatmul.bf16.gmra.mxu0 %v716
      %v2933 = vpop.f32.mrf.mxu0
      %v2934 = vadd.f32 0.0, %v2933
      %v2935 = vpop.f32.mrf.mxu0
      %2936 = vdwg.mxu0
      %v2953 = vunpack.c.l.b16 %v2674
      %v2954 = vunpack.c.l.b16 %v2675
      %v2955 = vunpack.c.l.b16 %v2676
      %v2956 = vunpack.c.l.b16 %v2677
      %v2957 = vunpack.c.l.b16 %v2678
      %v2958 = vunpack.c.l.b16 %v2679
      %v2959 = vunpack.c.l.b16 %v2680
      %v2960 = vunpack.c.l.b16 %v2681
      %v2961 = vunpack.c.l.b16 %v2682
      %v2962 = vunpack.c.l.b16 %v2683
      %v2963 = vunpack.c.l.b16 %v2684
      %v2964 = vunpack.c.l.b16 %v2685
      %v2965 = vunpack.c.l.b16 %v2686
      %v2966 = vunpack.c.l.b16 %v2687
      %v2967 = vunpack.c.l.b16 %v2688
      %v2968 = vunpack.c.l.b16 %v2689
      %v2969 = vpack.c.b16 %v2954, %v2953
      %v2970 = vpack.c.b16 %v2956, %v2955
      %v2971 = vpack.c.b16 %v2958, %v2957
      %v2972 = vpack.c.b16 %v2960, %v2959
      %v2973 = vpack.c.b16 %v2962, %v2961
      %v2974 = vpack.c.b16 %v2964, %v2963
      %v2975 = vpack.c.b16 %v2966, %v2965
      %v2976 = vpack.c.b16 %v2968, %v2967
      %2985 = vmatpush.bf16.xpose.msra.mxu0 %v2976
      %2986 = vmatpush.bf16.xpose.msra.mxu0 %v2975
      %2987 = vmatpush.bf16.xpose.msra.mxu0 %v2974
      %2988 = vmatpush.bf16.xpose.msra.mxu0 %v2973
      %2989 = vmatpush.bf16.xpose.msra.mxu0 %v2972
      %2990 = vmatpush.bf16.xpose.msra.mxu0 %v2971
      %2991 = vmatpush.bf16.xpose.msra.mxu0 %v2970
      %2992 = vmatpush.bf16.xpose.msra.mxu0 %v2969
      %2993 = vmatmul.bf16.gmra.mxu0 %v717
      %v2994 = vpop.f32.mrf.mxu0
      %v2995 = vadd.f32 0.0, %v2994
      %v2996 = vpop.f32.mrf.mxu0
      %2997 = vdwg.mxu0
      %v3014 = vunpack.c.l.b16 %v2690
      %v3015 = vunpack.c.l.b16 %v2691
      %v3016 = vunpack.c.l.b16 %v2692
      %v3017 = vunpack.c.l.b16 %v2693
      %v3018 = vunpack.c.l.b16 %v2694
      %v3019 = vunpack.c.l.b16 %v2695
      %v3020 = vunpack.c.l.b16 %v2696
      %v3021 = vunpack.c.l.b16 %v2697
      %v3022 = vunpack.c.l.b16 %v2698
      %v3023 = vunpack.c.l.b16 %v2699
      %v3024 = vunpack.c.l.b16 %v2700
      %v3025 = vunpack.c.l.b16 %v2701
      %v3026 = vunpack.c.l.b16 %v2702
      %v3027 = vunpack.c.l.b16 %v2703
      %v3028 = vunpack.c.l.b16 %v2704
      %v3029 = vunpack.c.l.b16 %v2705
      %v3030 = vpack.c.b16 %v3015, %v3014
      %v3031 = vpack.c.b16 %v3017, %v3016
      %v3032 = vpack.c.b16 %v3019, %v3018
      %v3033 = vpack.c.b16 %v3021, %v3020
      %v3034 = vpack.c.b16 %v3023, %v3022
      %v3035 = vpack.c.b16 %v3025, %v3024
      %v3036 = vpack.c.b16 %v3027, %v3026
      %v3037 = vpack.c.b16 %v3029, %v3028
      %3046 = vmatpush.bf16.xpose.msra.mxu0 %v3037
      %3047 = vmatpush.bf16.xpose.msra.mxu0 %v3036
      %3048 = vmatpush.bf16.xpose.msra.mxu0 %v3035
      %3049 = vmatpush.bf16.xpose.msra.mxu0 %v3034
      %3050 = vmatpush.bf16.xpose.msra.mxu0 %v3033
      %3051 = vmatpush.bf16.xpose.msra.mxu0 %v3032
      %3052 = vmatpush.bf16.xpose.msra.mxu0 %v3031
      %3053 = vmatpush.bf16.xpose.msra.mxu0 %v3030
      %3054 = vmatmul.bf16.gmra.mxu0 %v718
      %v3055 = vpop.f32.mrf.mxu0
      %v3056 = vadd.f32 0.0, %v3055
      %v3057 = vpop.f32.mrf.mxu0
      %3058 = vdwg.mxu0
      %v3075 = vunpack.c.l.b16 %v2706
      %v3076 = vunpack.c.l.b16 %v2707
      %v3077 = vunpack.c.l.b16 %v2708
      %v3078 = vunpack.c.l.b16 %v2709
      %v3079 = vunpack.c.l.b16 %v2710
      %v3080 = vunpack.c.l.b16 %v2711
      %v3081 = vunpack.c.l.b16 %v2712
      %v3082 = vunpack.c.l.b16 %v2713
      %v3083 = vunpack.c.l.b16 %v2714
      %v3084 = vunpack.c.l.b16 %v2715
      %v3085 = vunpack.c.l.b16 %v2716
      %v3086 = vunpack.c.l.b16 %v2717
      %v3087 = vunpack.c.l.b16 %v2718
      %v3088 = vunpack.c.l.b16 %v2719
      %v3089 = vunpack.c.l.b16 %v2720
      %v3090 = vunpack.c.l.b16 %v2721
      %v3091 = vpack.c.b16 %v3076, %v3075
      %v3092 = vpack.c.b16 %v3078, %v3077
      %v3093 = vpack.c.b16 %v3080, %v3079
      %v3094 = vpack.c.b16 %v3082, %v3081
      %v3095 = vpack.c.b16 %v3084, %v3083
      %v3096 = vpack.c.b16 %v3086, %v3085
      %v3097 = vpack.c.b16 %v3088, %v3087
      %v3098 = vpack.c.b16 %v3090, %v3089
      %3107 = vmatpush.bf16.xpose.msra.mxu0 %v3098
      %3108 = vmatpush.bf16.xpose.msra.mxu0 %v3097
      %3109 = vmatpush.bf16.xpose.msra.mxu0 %v3096
      %3110 = vmatpush.bf16.xpose.msra.mxu0 %v3095
      %3111 = vmatpush.bf16.xpose.msra.mxu0 %v3094
      %3112 = vmatpush.bf16.xpose.msra.mxu0 %v3093
      %3113 = vmatpush.bf16.xpose.msra.mxu0 %v3092
      %3114 = vmatpush.bf16.xpose.msra.mxu0 %v3091
      %3115 = vmatmul.bf16.gmra.mxu0 %v719
      %v3116 = vpop.f32.mrf.mxu0
      %v3117 = vadd.f32 0.0, %v3116
      %v3118 = vpop.f32.mrf.mxu0
      %3119 = vdwg.mxu0
      %v3136 = vunpack.c.l.b16 %v2722
      %v3137 = vunpack.c.l.b16 %v2723
      %v3138 = vunpack.c.l.b16 %v2724
      %v3139 = vunpack.c.l.b16 %v2725
      %v3140 = vunpack.c.l.b16 %v2726
      %v3141 = vunpack.c.l.b16 %v2727
      %v3142 = vunpack.c.l.b16 %v2728
      %v3143 = vunpack.c.l.b16 %v2729
      %v3144 = vunpack.c.l.b16 %v2730
      %v3145 = vunpack.c.l.b16 %v2731
      %v3146 = vunpack.c.l.b16 %v2732
      %v3147 = vunpack.c.l.b16 %v2733
      %v3148 = vunpack.c.l.b16 %v2734
      %v3149 = vunpack.c.l.b16 %v2735
      %v3150 = vunpack.c.l.b16 %v2736
      %v3151 = vunpack.c.l.b16 %v2737
      %v3152 = vpack.c.b16 %v3137, %v3136
      %v3153 = vpack.c.b16 %v3139, %v3138
      %v3154 = vpack.c.b16 %v3141, %v3140
      %v3155 = vpack.c.b16 %v3143, %v3142
      %v3156 = vpack.c.b16 %v3145, %v3144
      %v3157 = vpack.c.b16 %v3147, %v3146
      %v3158 = vpack.c.b16 %v3149, %v3148
      %v3159 = vpack.c.b16 %v3151, %v3150
      %3168 = vmatpush.bf16.xpose.msra.mxu0 %v3159
      %3169 = vmatpush.bf16.xpose.msra.mxu0 %v3158
      %3170 = vmatpush.bf16.xpose.msra.mxu0 %v3157
      %3171 = vmatpush.bf16.xpose.msra.mxu0 %v3156
      %3172 = vmatpush.bf16.xpose.msra.mxu0 %v3155
      %3173 = vmatpush.bf16.xpose.msra.mxu0 %v3154
      %3174 = vmatpush.bf16.xpose.msra.mxu0 %v3153
      %3175 = vmatpush.bf16.xpose.msra.mxu0 %v3152
      %3176 = vmatmul.bf16.gmra.mxu0 %v720
      %v3177 = vpop.f32.mrf.mxu0
      %v3178 = vadd.f32 0.0, %v3177
      %v3179 = vpop.f32.mrf.mxu0
      %3180 = vdwg.mxu0
      %v3197 = vunpack.c.l.b16 %v2738
      %v3198 = vunpack.c.l.b16 %v2739
      %v3199 = vunpack.c.l.b16 %v2740
      %v3200 = vunpack.c.l.b16 %v2741
      %v3201 = vunpack.c.l.b16 %v2742
      %v3202 = vunpack.c.l.b16 %v2743
      %v3203 = vunpack.c.l.b16 %v2744
      %v3204 = vunpack.c.l.b16 %v2745
      %v3205 = vunpack.c.l.b16 %v2746
      %v3206 = vunpack.c.l.b16 %v2747
      %v3207 = vunpack.c.l.b16 %v2748
      %v3208 = vunpack.c.l.b16 %v2749
      %v3209 = vunpack.c.l.b16 %v2750
      %v3210 = vunpack.c.l.b16 %v2751
      %v3211 = vunpack.c.l.b16 %v2752
      %v3212 = vunpack.c.l.b16 %v2753
      %v3213 = vpack.c.b16 %v3198, %v3197
      %v3214 = vpack.c.b16 %v3200, %v3199
      %v3215 = vpack.c.b16 %v3202, %v3201
      %v3216 = vpack.c.b16 %v3204, %v3203
      %v3217 = vpack.c.b16 %v3206, %v3205
      %v3218 = vpack.c.b16 %v3208, %v3207
      %v3219 = vpack.c.b16 %v3210, %v3209
      %v3220 = vpack.c.b16 %v3212, %v3211
      %3229 = vmatpush.bf16.xpose.msra.mxu0 %v3220
      %3230 = vmatpush.bf16.xpose.msra.mxu0 %v3219
      %3231 = vmatpush.bf16.xpose.msra.mxu0 %v3218
      %3232 = vmatpush.bf16.xpose.msra.mxu0 %v3217
      %3233 = vmatpush.bf16.xpose.msra.mxu0 %v3216
      %3234 = vmatpush.bf16.xpose.msra.mxu0 %v3215
      %3235 = vmatpush.bf16.xpose.msra.mxu0 %v3214
      %3236 = vmatpush.bf16.xpose.msra.mxu0 %v3213
      %3237 = vmatmul.bf16.gmra.mxu0 %v721
      %v3238 = vpop.f32.mrf.mxu0
      %v3239 = vadd.f32 0.0, %v3238
      %v3240 = vpop.f32.mrf.mxu0
      %3241 = vdwg.mxu0
      %v3242 = vld [vmem:[%s5] sm:$0xf]
      %v3243 = vld [vmem:[%s5 + $0x4] sm:$0xf]
      %v3244 = vld [vmem:[%s5 + $0x8] sm:$0xf]
      %v3245 = vld [vmem:[%s5 + $0xc] sm:$0xf]
      %3254 = vst [vmem:[#allocation1] ss:$2 sm:$0xff] %v2812
      %s3255 = scalar_lea.vmem [#allocation1], 1
      %3256 = vst [vmem:[%s3255] ss:$2 sm:$0xff] %v2873
      %s3257 = scalar_lea.vmem [#allocation1], 16
      %3258 = vst [vmem:[%s3257] ss:$2 sm:$0xff] %v2934
      %s3259 = scalar_lea.vmem [#allocation1], 17
      %3260 = vst [vmem:[%s3259] ss:$2 sm:$0xff] %v2995
      %s3261 = scalar_lea.vmem [#allocation1], 32
      %3262 = vst [vmem:[%s3261] ss:$2 sm:$0xff] %v3056
      %s3263 = scalar_lea.vmem [#allocation1], 33
      %3264 = vst [vmem:[%s3263] ss:$2 sm:$0xff] %v3117
      %s3265 = scalar_lea.vmem [#allocation1], 48
      %3266 = vst [vmem:[%s3265] ss:$2 sm:$0xff] %v3178
      %s3267 = scalar_lea.vmem [#allocation1], 49
      %3268 = vst [vmem:[%s3267] ss:$2 sm:$0xff] %v3239
      %v3269 = vld.sshfl [vmem:[#allocation1] sm:$0xff pattern:$0x75316420]
      %v3270 = vld.sshfl [vmem:[#allocation1 + $0x10] sm:$0xff pattern:$0x75316420]
      %v3271 = vld.sshfl [vmem:[#allocation1 + $0x20] sm:$0xff pattern:$0x75316420]
      %v3272 = vld.sshfl [vmem:[#allocation1 + $0x30] sm:$0xff pattern:$0x75316420]
      %v3277 = vpack.c.bf16 %v3269, %v3269
      %v3278 = vpack.c.bf16 %v3270, %v3270
      %v3279 = vpack.c.bf16 %v3271, %v3271
      %v3280 = vpack.c.bf16 %v3272, %v3272
      %v3281 = vld [vmem:[%s6] sm:$0xf]
      %v3282 = vld [vmem:[%s6 + $0x4] sm:$0xf]
      %v3283 = vld [vmem:[%s6 + $0x8] sm:$0xf]
      %v3284 = vld [vmem:[%s6 + $0xc] sm:$0xf]
      %v3289 = vunpack.c.l.b16 %v3281
      %v3290 = vunpack.c.l.b16 %v3282
      %v3291 = vunpack.c.l.b16 %v3283
      %v3292 = vunpack.c.l.b16 %v3284
      %v3293 = vpack.c.b16 %v3290, %v3289
      %v3294 = vpack.c.b16 %v3292, %v3291
      %v3296 = vsel %vm440, %v3293, 0
      %v3299 = vsel %vm440, %v3294, 0
      %v3302 = vsel %vm447, %v327, 0
      %3304 = vmatpush.bf16.msra.mxu0 0
      %3305 = vmatpush.bf16.msra.mxu0 0
      %3306 = vmatpush.bf16.msra.mxu0 0
      %3307 = vmatpush.bf16.msra.mxu0 0
      %3308 = vmatpush.bf16.msra.mxu0 0
      %3309 = vmatpush.bf16.msra.mxu0 0
      %3310 = vmatpush.bf16.msra.mxu0 0
      %3311 = vmatpush.bf16.msra.mxu0 %v3302
      %3312 = vmatmul.bf16.gmra.mxu0 %v3296
      %v3313 = vpop.f32.mrf.mxu0
      %v3314 = vadd.f32 0.0, %v3313
      %v3315 = vpop.f32.mrf.mxu0
      %v3316 = vadd.f32 0.0, %v3315
      %3317 = vmatmul.bf16.gmra.mxu0 %v3299
      %v3318 = vpop.f32.mrf.mxu0
      %v3319 = vadd.f32 0.0, %v3318
      %v3320 = vpop.f32.mrf.mxu0
      %v3321 = vadd.f32 0.0, %v3320
      %3322 = vdwg.mxu0
      %v3327 = vunpack.c.l.b16 %v3242
      %v3328 = vunpack.c.l.b16 %v3243
      %v3329 = vunpack.c.l.b16 %v3244
      %v3330 = vunpack.c.l.b16 %v3245
      %v3331 = vpack.c.b16 %v3328, %v3327
      %v3332 = vpack.c.b16 %v3330, %v3329
      %v3337 = vunpack.c.l.b16 %v3277
      %v3338 = vunpack.c.l.b16 %v3278
      %v3339 = vunpack.c.l.b16 %v3279
      %v3340 = vunpack.c.l.b16 %v3280
      %v3341 = vpack.c.b16 %v3338, %v3337
      %v3342 = vpack.c.b16 %v3340, %v3339
      %v3346 = vsel %vm604, %v3331, 0
      %v3349 = vsel %vm604, %v3332, 0
      %3351 = vmatpush.bf16.msra.mxu0 0
      %3352 = vmatpush.bf16.msra.mxu0 0
      %3353 = vmatpush.bf16.msra.mxu0 0
      %3354 = vmatpush.bf16.msra.mxu0 0
      %3355 = vmatpush.bf16.msra.mxu0 0
      %3356 = vmatpush.bf16.msra.mxu0 0
      %3357 = vmatpush.bf16.msra.mxu0 %v3342
      %3358 = vmatpush.bf16.msra.mxu0 %v3341
      %3359 = vmatmul.bf16.gmra.mxu0 %v3346
      %v3360 = vpop.f32.mrf.mxu0
      %v3361 = vadd.f32 %v3314, %v3360
      %v3362 = vpop.f32.mrf.mxu0
      %v3363 = vadd.f32 %v3316, %v3362
      %3364 = vmatmul.bf16.gmra.mxu0 %v3349
      %v3365 = vpop.f32.mrf.mxu0
      %v3366 = vadd.f32 %v3319, %v3365
      %v3367 = vpop.f32.mrf.mxu0
      %v3368 = vadd.f32 %v3321, %v3367
      %3369 = vdwg.mxu0
      %3371 = vset.pattern.permute.xlu0 0
      %3372 = vperm.xlu0 %3371, %v321
      %v3373 = vpop.permute.xlu0 %3372
      %3376 = vset.pattern.permute.xlu0 0
      %3377 = vperm.xlu0 %3376, %v322
      %v3378 = vpop.permute.xlu0 %3377
      %3381 = vset.pattern.permute.xlu0 0
      %3382 = vperm.xlu0 %3381, %v323
      %v3383 = vpop.permute.xlu0 %3382
      %3386 = vset.pattern.permute.xlu0 0
      %3387 = vperm.xlu0 %3386, %v324
      %v3388 = vpop.permute.xlu0 %3387
      %v3390 = vadd.f32 %v3361, %v3373
      %v3391 = vadd.f32 %v3363, %v3378
      %v3392 = vadd.f32 %v3366, %v3383
      %v3393 = vadd.f32 %v3368, %v3388
      %vm3394 = vcmp.ge.f32.partialorder %v3390, 0.0
      %vm3395 = vcmp.ge.f32.partialorder %v3391, 0.0
      %vm3396 = vcmp.ge.f32.partialorder %v3392, 0.0
      %vm3397 = vcmp.ge.f32.partialorder %v3393, 0.0
      %s3399 = vtos %v326
      %v3400 = vstv %s3399
      %v3402 = vmul.f32 %v3400, %v3390
      %v3403 = vmul.f32 %v3400, %v3391
      %v3404 = vmul.f32 %v3400, %v3392
      %v3405 = vmul.f32 %v3400, %v3393
      %v3406 = vsel %vm3394, %v3390, %v3402
      %v3407 = vsel %vm3395, %v3391, %v3403
      %v3408 = vsel %vm3396, %v3392, %v3404
      %v3409 = vsel %vm3397, %v3393, %v3405
      %3410 = vst [vmem:[%s302] sm:$0xff] %v3406
      %3411 = vst [vmem:[%s302 + $0x8] sm:$0xff] %v3407
      %3412 = vst [vmem:[%s302 + $0x10] sm:$0xff] %v3408
      %3413 = vst [vmem:[%s302 + $0x18] sm:$0xff] %v3409
      %p3414 = scmp.lt.s32.totalorder %s19, 1
      %s3415 = scalar_select %p3414, %s19, 1
      %s3416 = smul.addr %s3415, 4
      %s3417 = smul.addr %s3416, 8
      %s3418 = scalar_lea.vmem %s8, %s3417
      // Predicated region
      $region53: #{tagcn_block_forward.1} parent=51 // pred_check
        %p3419 = pneg %p210
      $region54: #{tagcn_block_forward.1} parent=51 // pred_check_branch
        %3421 = sbr.rel (%p3419) target = $region56
      $region55: #{tagcn_block_forward.1} parent=51 // pred_region
        _
      $region56: #{tagcn_block_forward.1} parent=51 // pred_fallthru
        _
    $region52: #{tagcn_block_forward.1} parent=5 // pred_fallthru
      _
    %p3422 = scmp.le.s32.totalorder 2, %s14
    // Predicated region
    $region57: #{tagcn_block_forward.1} parent=5 // pred_check
      %p3423 = pneg %p3422
    $region58: #{tagcn_block_forward.1} parent=5 // pred_check_branch
      %3425 = sbr.rel (%p3423) target = $region60
    $region59: #{tagcn_block_forward.1} parent=5 // pred_region
      %s3426 = ssub.s32 %s14, 2
      // Predicated region
      $region61: #{tagcn_block_forward.1} parent=59 // pred_check
        %p3427 = pneg %p216
      $region62: #{tagcn_block_forward.1} parent=59 // pred_check_branch
        %3429 = sbr.rel (%p3427) target = $region64
      $region63: #{tagcn_block_forward.1} parent=59 // pred_region
        %p3430 = scmp.lt.s32.totalorder %s20, 1
        %s3431 = scalar_select %p3430, %s20, 1
        %s3432 = smul.addr %s3431, 4
        %s3433 = smul.addr %s3432, 8
        %s3434 = scalar_lea.vmem %s8, %s3433
      $region64: #{tagcn_block_forward.1} parent=59 // pred_fallthru
        _
    $region60: #{tagcn_block_forward.1} parent=5 // pred_fallthru
      _
  $region6: #{tagcn_block_forward.1} parent=0 // loop_footer
    %s18 = sadd.s32 1, %s14
  $region7: #{tagcn_block_forward.1} parent=0 // loop_footer_branch
    %13 = sbr.rel target = $region3
  $region8: #{tagcn_block_forward.1} parent=0 // loop_exit
    _

</llo_original>
